<compile_context>
chip_gen: v7x
topology: tpu7x:2x2x1
jax: 0.10.0
libtpu: 0.0.40
codegen_flags: <defaults>
</compile_context>

<pallas_src>
import math
import functools

import jax
import jax.numpy as jnp
from jax.experimental import pallas as pl
from jax.experimental.pallas import tpu as pltpu

# ----------------------------- configuration --------------------------------
B, S, FX, H = 2, 8, 4, 32          # batch, words, fix_len (pieces/word), hidden
VOCAB = 101
N_MODEL_LAYERS = 4                 # synthetic encoder depth
N_MIX = 4                          # ScalarMix n_layers
NUM_HEADS = 4
HEAD_SIZE = H // NUM_HEADS
ATTEN_LAYER = 2                    # hooked layer (input = hidden state #2)
N_OUT = 16                         # projection output (!= H -> real Linear)
PAD_INDEX = 0
T = S * FX                         # static upper bound on #sub-word pieces
SCALE = 1.0 / math.sqrt(HEAD_SIZE)
SENTINEL = -1e-09                  # reference masked_fill sentinel value


# ----------------------------- Pallas kernel ---------------------------------
def _fused_kernel(h0_ref, w_ref, b_ref, wq_ref, bq_ref, wk_ref, bk_ref,
                  gq_ref, unpack_ref, meanf_ref, pool_ref, wproj_ref,
                  mixw_ref, gamma_ref, emb_ref, rel_ref):
    """Whole-batch fused forward (single grid step, everything VMEM resident).

    h0_ref     [B*T, H]                  embedded + positional packed input
    w_ref      [L, H, H]                 per-layer weights
    b_ref      [L, 1, H]                 per-layer biases
    wq_ref     [NUM_HEADS, H, HEAD_SIZE] head-major query projection
    bq_ref     [NUM_HEADS, 1, HEAD_SIZE]
    wk_ref     [NUM_HEADS, H, HEAD_SIZE] head-major key projection
    bk_ref     [NUM_HEADS, 1, HEAD_SIZE]
    gq_ref     [B*S, B*T]  block-diag one-hot: last-piece query row selector
    unpack_ref [B*T, B*T]  block-diag one-hot: packed key -> (word,piece) slot
    meanf_ref  [B*T, B*S]  block-diag 1/FX mean-over-pieces matrix
    pool_ref   [B*S, B*T]  block-diag 1/len sub-word mean-pool matrix
    wproj_ref  [H, N_OUT]
    mixw_ref   SMEM [N_MIX], gamma_ref SMEM [1]
    emb_ref    [B*S, N_OUT]
    rel_ref    [B, NUM_HEADS, S, S]
    """
    h = h0_ref[...]                                     # [B*T, H]
    n_hidden = N_MODEL_LAYERS + 1
    first_mix = n_hidden - N_MIX

    acc = jnp.zeros_like(h)
    if first_mix <= 0:                                  # embeddings in the mix?
        acc = acc + mixw_ref[0 - first_mix] * h
    attn_in = h
    for l in range(N_MODEL_LAYERS):
        h = jnp.tanh(jnp.dot(h, w_ref[l], preferred_element_type=jnp.float32)
                     + b_ref[l])
        idx = l + 1
        if idx == ATTEN_LAYER:
            attn_in = h                                 # hooked attention input
        if idx >= first_mix:
            acc = acc + mixw_ref[idx - first_mix] * h
    xmix = gamma_ref[0] * acc                           # ScalarMix output

    # --- embedding branch: masked scatter + sub-word mean pool + projection,
    #     folded into one matmul against the precomputed pooling matrix ------
    pooled = jnp.dot(pool_ref[...], xmix, preferred_element_type=jnp.float32)
    emb_ref[...] = jnp.dot(pooled, wproj_ref[...],
                           preferred_element_type=jnp.float32)

    # --- relations branch (hooked attention layer) ---------------------------
    # Only last-piece query rows are ever used downstream -> gather them first.
    aq = jnp.dot(gq_ref[...], attn_in,
                 preferred_element_type=jnp.float32)    # [B*S, H]
    for hh in range(NUM_HEADS):                         # head-major weights =>
        qh = jnp.dot(aq, wq_ref[hh],                    # no in-kernel lane slices
                     preferred_element_type=jnp.float32) + bq_ref[hh]   # [B*S, hs]
        kh = jnp.dot(attn_in, wk_ref[hh],
                     preferred_element_type=jnp.float32) + bk_ref[hh]   # [B*T, hs]
        sh = SCALE * jax.lax.dot_general(
            qh, kh, (((1,), (1,)), ((), ())),
            preferred_element_type=jnp.float32)         # [B*S, B*T]
        # Reference masked_fill/scatter semantics: scores that are exactly 0
        # (sentinel insertion) or exactly -1e-9 (the double masked_fill quirk)
        # end up as 0 after the scatter.  Propagate that set through the
        # one-hot unpack as a {0,1} mask so no float-equality test ever runs
        # on a post-matmul value (robust to MXU rounding).
        zmask = jnp.logical_or(sh == 0.0, sh == SENTINEL).astype(jnp.float32)
        u = jnp.dot(sh, unpack_ref[...],
                    preferred_element_type=jnp.float32)         # [B*S, B*T]
        zg = jnp.dot(zmask, unpack_ref[...],
                     preferred_element_type=jnp.float32)
        u = jnp.where(zg > 0.5, 0.0, u)
        fh = jnp.dot(u, meanf_ref[...],
                     preferred_element_type=jnp.float32)        # [B*S, B*S]
        for bb in range(B):                             # static diagonal blocks
            rel_ref[bb, hh] = fh[bb * S:(bb + 1) * S, bb * S:(bb + 1) * S]


# ----------------------------- Pallas wrapper --------------------------------
def fused_forward(h0, W, b, Wq3, bq3, Wk3, bk3, Gq, Unpack, MeanF, PoolM,
                  Wproj, mix_w, gamma):
    def vspec(shape):
        nd = len(shape)
        return pl.BlockSpec(shape, lambda i: (0,) * nd)

    smem = pl.BlockSpec(memory_space=pltpu.MemorySpace.SMEM)

    flops = 2 * (
        N_MODEL_LAYERS * (B * T) * H * H
        + (B * S) * (B * T) * H
        + NUM_HEADS * ((B * S) * H * HEAD_SIZE
                       + (B * T) * H * HEAD_SIZE
                       + (B * S) * HEAD_SIZE * (B * T)
                       + 2 * (B * S) * (B * T) * (B * T)
                       + (B * S) * (B * T) * (B * S))
        + (B * S) * (B * T) * H
        + (B * S) * H * N_OUT)
    bytes_accessed = 4 * (
        B * T * H + N_MODEL_LAYERS * H * (H + 1)
        + 2 * NUM_HEADS * H * (HEAD_SIZE + 1)
        + 3 * (B * S) * (B * T) + (B * T) * (B * T)
        + H * N_OUT + (B * S) * N_OUT + B * NUM_HEADS * S * S + N_MIX + 1)

    return pl.pallas_call(
        _fused_kernel,
        grid=(1,),                                      # single step, whole batch
        in_specs=[
            vspec((B * T, H)),                          # h0
            vspec((N_MODEL_LAYERS, H, H)),              # W
            vspec((N_MODEL_LAYERS, 1, H)),              # b
            vspec((NUM_HEADS, H, HEAD_SIZE)),           # Wq (head-major)
            vspec((NUM_HEADS, 1, HEAD_SIZE)),           # bq
            vspec((NUM_HEADS, H, HEAD_SIZE)),           # Wk
            vspec((NUM_HEADS, 1, HEAD_SIZE)),           # bk
            vspec((B * S, B * T)),                      # query selector
            vspec((B * T, B * T)),                      # key unpack one-hot
            vspec((B * T, B * S)),                      # mean-over-pieces
            vspec((B * S, B * T)),                      # pooling matrix
            vspec((H, N_OUT)),                          # projection
            smem,                                       # mix weights
            smem,                                       # gamma
        ],
        out_specs=(
            vspec((B * S, N_OUT)),
            vspec((B, NUM_HEADS, S, S)),
        ),
        out_shape=(
            jax.ShapeDtypeStruct((B * S, N_OUT), jnp.float32),
            jax.ShapeDtypeStruct((B, NUM_HEADS, S, S), jnp.float32),
        ),
        compiler_params=pltpu.CompilerParams(
            dimension_semantics=("arbitrary",)),
        cost_estimate=pl.CostEstimate(
            flops=flops,
            transcendentals=N_MODEL_LAYERS * B * T * H,
            bytes_accessed=bytes_accessed),
    )(h0, W, b, Wq3, bq3, Wk3, bk3, Gq, Unpack, MeanF, PoolM, Wproj,
      mix_w, gamma)


# ----------------------------- forward pass ----------------------------------
def forward(tokens, params):
    mask = tokens != PAD_INDEX                              # [B,S,F] bool
    mask_flat = mask.reshape(B, T)
    tok_flat = tokens.reshape(B, T)
    lens_total = mask_flat.sum(-1)                          # [B]

    # pack valid pieces to the left (padding_side='right'), preserving order
    order = jnp.argsort(jnp.logical_not(mask_flat), axis=-1, stable=True)
    packed_tokens = jnp.take_along_axis(tok_flat, order, axis=-1)
    token_mask = jnp.arange(T)[None, :] < lens_total[:, None]
    packed_tokens = jnp.where(token_mask, packed_tokens, PAD_INDEX)

    # embedding + positional offset (tiny gather kept in JAX glue)
    h0 = params['embed'][packed_tokens] + params['pos'][None, :, :]
    h0_flat = h0.reshape(B * T, H).astype(jnp.float32)

    # ---- ragged index plumbing folded into small block-diagonal matrices ----
    piece_idx = jnp.cumsum(mask_flat.astype(jnp.int32), -1) - 1      # [B,T]
    unpack_b = ((piece_idx[:, None, :] == jnp.arange(T)[None, :, None])
                & mask_flat[:, None, :]).astype(jnp.float32)         # [B,T(j),T(p)]
    word_of_packed = unpack_b.reshape(B, T, S, FX).sum(-1)           # [B,T(j),S]
    lens_word = mask.sum(-1)                                         # [B,S]
    inv_lens = 1.0 / jnp.maximum(lens_word, 1).astype(jnp.float32)
    pool_b = jnp.swapaxes(word_of_packed, 1, 2) * inv_lens[:, :, None]  # [B,S,T]
    mean_f = ((jnp.arange(T)[:, None] // FX) ==
              jnp.arange(S)[None, :]).astype(jnp.float32) / FX       # [T,S]
    last_piece = jnp.clip(jnp.cumsum(lens_word, -1) - 1, 0, T - 1)   # [B,S]
    gq_b = (jnp.arange(T)[None, None, :] ==
            last_piece[:, :, None]).astype(jnp.float32)              # [B,S,T]

    bd = jax.scipy.linalg.block_diag
    Unpack = bd(*[unpack_b[bb] for bb in range(B)])                  # [B*T, B*T]
    MeanF = bd(*[mean_f for _ in range(B)])                          # [B*T, B*S]
    PoolM = bd(*[pool_b[bb] for bb in range(B)])                     # [B*S, B*T]
    Gq = bd(*[gq_b[bb] for bb in range(B)])                          # [B*S, B*T]

    # head-major Q/K projection weights (pre-sliced OUTSIDE the kernel)
    Wq3 = params['Wq'].reshape(H, NUM_HEADS, HEAD_SIZE).transpose(1, 0, 2)
    Wk3 = params['Wk'].reshape(H, NUM_HEADS, HEAD_SIZE).transpose(1, 0, 2)
    bq3 = params['bq'].reshape(NUM_HEADS, 1, HEAD_SIZE)
    bk3 = params['bk'].reshape(NUM_HEADS, 1, HEAD_SIZE)

    mix_w = jax.nn.softmax(params['mix_weights'])

    # TODO(synk): long-sequence stride/windowing loop (sequences longer than
    # max_len) is data-dependent Python control flow and is not implemented;
    # these shapes fit in a single window, matching the reference semantics.

    emb_flat, rel = fused_forward(
        h0_flat, params['W'], params['b'], Wq3, bq3, Wk3, bk3,
        Gq, Unpack, MeanF, PoolM, params['W_proj'], mix_w, params['gamma'])
    return emb_flat.reshape(B, S, N_OUT), rel


# --------------------- pure-JAX reference (self-check) ------------------------
def reference_forward(tokens, params):
    mask = tokens != PAD_INDEX
    mask_flat = mask.reshape(B, T)
    tok_flat = tokens.reshape(B, T)
    lens_total = mask_flat.sum(-1)

    order = jnp.argsort(jnp.logical_not(mask_flat), axis=-1, stable=True)
    packed_tokens = jnp.take_along_axis(tok_flat, order, axis=-1)
    token_mask = jnp.arange(T)[None, :] < lens_total[:, None]
    packed_tokens = jnp.where(token_mask, packed_tokens, PAD_INDEX)

    h = params['embed'][packed_tokens] + params['pos'][None]         # [B,T,H]
    hiddens = [h]
    for l in range(N_MODEL_LAYERS):
        h = jnp.tanh(jnp.dot(h, params['W'][l]) + params['b'][l])
        hiddens.append(h)
    mix_w = jax.nn.softmax(params['mix_weights'])
    x = params['gamma'][0] * sum(w * t for w, t in zip(mix_w, hiddens[-N_MIX:]))

    attn_in = hiddens[ATTEN_LAYER]
    q = (jnp.dot(attn_in, params['Wq']) + params['bq']) \
        .reshape(B, T, NUM_HEADS, HEAD_SIZE).transpose(0, 2, 1, 3)
    k = (jnp.dot(attn_in, params['Wk']) + params['bk']) \
        .reshape(B, T, NUM_HEADS, HEAD_SIZE).transpose(0, 2, 1, 3)
    att = jnp.einsum('bhqd,bhkd->bhqk', q, k) * SCALE
    att = jnp.where(att == 0.0, SENTINEL, att)
    att = att * token_mask[:, None, None, :].astype(jnp.float32)

    piece_idx = jnp.clip(jnp.cumsum(mask_flat.astype(jnp.int32), -1) - 1, 0, T - 1)
    key_idx = jnp.broadcast_to(piece_idx[:, None, None, :], (B, NUM_HEADS, T, T))
    filled = jnp.take_along_axis(att, key_idx, axis=-1)
    filled = jnp.where(mask_flat[:, None, None, :], filled, 0.0)
    filled = jnp.where(filled == SENTINEL, 0.0, filled)
    filled = filled.reshape(B, NUM_HEADS, T, S, FX).mean(-1)
    lens_word = mask.sum(-1)
    last_piece = jnp.clip(jnp.cumsum(lens_word, -1) - 1, 0, T - 1)
    gidx = jnp.broadcast_to(last_piece[:, None, :, None], (B, NUM_HEADS, S, S))
    rel = jnp.take_along_axis(filled, gidx, axis=-2)

    gathered = jnp.take_along_axis(
        x, jnp.broadcast_to(piece_idx[:, :, None], (B, T, H)), axis=1)
    x_scat = jnp.where(mask_flat[:, :, None], gathered, 0.0).reshape(B, S, FX, H)
    pooled = x_scat.sum(2) / jnp.maximum(lens_word, 1)[..., None].astype(jnp.float32)
    emb = jnp.dot(pooled, params['W_proj'])
    return emb, rel


# ----------------------------- parameters / main -----------------------------
def make_params(key):
    ks = jax.random.split(key, 8 + 2 * N_MODEL_LAYERS)

    def nrm(k, shape, scale=0.05):
        return scale * jax.random.normal(k, shape, jnp.float32)

    W = jnp.stack([nrm(ks[2 + 2 * l], (H, H)) for l in range(N_MODEL_LAYERS)])
    b = jnp.stack([nrm(ks[3 + 2 * l], (H,)).reshape(1, H)
                   for l in range(N_MODEL_LAYERS)])
    base = 2 + 2 * N_MODEL_LAYERS
    params = {
        'embed': nrm(ks[0], (VOCAB, H)),
        'pos': nrm(ks[1], (T, H)),
        'W': W,                                          # [L, H, H]
        'b': b,                                          # [L, 1, H]
        'Wq': nrm(ks[base + 0], (H, H)),
        'bq': nrm(ks[base + 1], (H,)),
        'Wk': nrm(ks[base + 2], (H, H)),
        'bk': nrm(ks[base + 3], (H,)),
        'W_proj': nrm(ks[base + 4], (H, N_OUT)),
        'mix_weights': jnp.zeros((N_MIX,), jnp.float32),
        'gamma': jnp.array([1.0], jnp.float32),
    }
    return params


if __name__ == "__main__":
    key = jax.random.PRNGKey(0)
    kp, kt, kl = jax.random.split(key, 3)
    params = make_params(kp)

    # deterministic tokens: random piece counts per word, some fully-pad words
    raw = jax.random.randint(kt, (B, S, FX), 1, VOCAB)
    piece_lens = jax.random.randint(kl, (B, S), 1, FX + 1)
    word_valid = jnp.ones((B, S), bool).at[1, S - 2:].set(False)
    piece_mask = (jnp.arange(FX)[None, None, :] < piece_lens[:, :, None]) \
        & word_valid[:, :, None]
    tokens = jnp.where(piece_mask, raw, PAD_INDEX).astype(jnp.int32)

    fwd = jax.jit(functools.partial(forward, params=params))
    emb, rel = fwd(tokens)
    jax.block_until_ready((emb, rel))

    assert emb.shape == (B, S, N_OUT)
    assert rel.shape == (B, NUM_HEADS, S, S)
    assert bool(jnp.all(jnp.isfinite(emb))) and bool(jnp.all(jnp.isfinite(rel)))

    # numerical self-check against a pure-JAX mirror of the module semantics
    ref = jax.jit(functools.partial(reference_forward, params=params))
    emb_ref, rel_ref = ref(tokens)
    jax.block_until_ready((emb_ref, rel_ref))
    assert bool(jnp.allclose(emb, emb_ref, atol=1e-2, rtol=1e-1))
    assert bool(jnp.allclose(rel, rel_ref, atol=1e-2, rtol=1e-1))

    print("KERNEL_OK")
</pallas_src>

<mosaic_0001>
module attributes {stable_mosaic.version = 11 : i64} {
  func.func @_fused_kernel(%arg0: i32, %arg1: memref<64x32xf32, #tpu.memory_space<vmem>>, %arg2: memref<4x32x32xf32, #tpu.memory_space<vmem>>, %arg3: memref<4x1x32xf32, #tpu.memory_space<vmem>>, %arg4: memref<4x32x8xf32, #tpu.memory_space<vmem>>, %arg5: memref<4x1x8xf32, #tpu.memory_space<vmem>>, %arg6: memref<4x32x8xf32, #tpu.memory_space<vmem>>, %arg7: memref<4x1x8xf32, #tpu.memory_space<vmem>>, %arg8: memref<16x64xf32, #tpu.memory_space<vmem>>, %arg9: memref<64x64xf32, #tpu.memory_space<vmem>>, %arg10: memref<64x16xf32, #tpu.memory_space<vmem>>, %arg11: memref<16x64xf32, #tpu.memory_space<vmem>>, %arg12: memref<32x16xf32, #tpu.memory_space<vmem>>, %arg13: memref<4xf32, #tpu.memory_space<smem>>, %arg14: memref<1xf32, #tpu.memory_space<smem>>, %arg15: memref<16x16xf32, #tpu.memory_space<vmem>>, %arg16: memref<2x4x8x8xf32, #tpu.memory_space<vmem>>) attributes {dimension_semantics = [#tpu.dimension_semantics<arbitrary>], iteration_bounds = array<i64: 1>, scalar_prefetch = 0 : i64, scratch_operands = 0 : i64, tpu.core_type = #tpu.core_type<tc>, window_params = [{pipeline_mode = #tpu.pipeline_mode<synchronous>, transform_indices = @transform_0, window_bounds = array<i64: 64, 32>}, {pipeline_mode = #tpu.pipeline_mode<synchronous>, transform_indices = @transform_1, window_bounds = array<i64: 4, 32, 32>}, {pipeline_mode = #tpu.pipeline_mode<synchronous>, transform_indices = @transform_2, window_bounds = array<i64: 4, 1, 32>}, {pipeline_mode = #tpu.pipeline_mode<synchronous>, transform_indices = @transform_3, window_bounds = array<i64: 4, 32, 8>}, {pipeline_mode = #tpu.pipeline_mode<synchronous>, transform_indices = @transform_4, window_bounds = array<i64: 4, 1, 8>}, {pipeline_mode = #tpu.pipeline_mode<synchronous>, transform_indices = @transform_5, window_bounds = array<i64: 4, 32, 8>}, {pipeline_mode = #tpu.pipeline_mode<synchronous>, transform_indices = @transform_6, window_bounds = array<i64: 4, 1, 8>}, {pipeline_mode = #tpu.pipeline_mode<synchronous>, transform_indices = @transform_7, window_bounds = array<i64: 16, 64>}, {pipeline_mode = #tpu.pipeline_mode<synchronous>, transform_indices = @transform_8, window_bounds = array<i64: 64, 64>}, {pipeline_mode = #tpu.pipeline_mode<synchronous>, transform_indices = @transform_9, window_bounds = array<i64: 64, 16>}, {pipeline_mode = #tpu.pipeline_mode<synchronous>, transform_indices = @transform_10, window_bounds = array<i64: 16, 64>}, {pipeline_mode = #tpu.pipeline_mode<synchronous>, transform_indices = @transform_11, window_bounds = array<i64: 32, 16>}, {transform_indices = @transform_12, window_bounds = array<i64: 4>}, {transform_indices = @transform_13, window_bounds = array<i64: 1>}, {pipeline_mode = #tpu.pipeline_mode<synchronous>, transform_indices = @transform_14, window_bounds = array<i64: 16, 16>}, {pipeline_mode = #tpu.pipeline_mode<synchronous>, transform_indices = @transform_15, window_bounds = array<i64: 2, 4, 8, 8>}]} {
    %c0 = arith.constant 0 : index
    %c0_0 = arith.constant 0 : index
    %0 = vector.load %arg1[%c0, %c0_0] : memref<64x32xf32, #tpu.memory_space<vmem>>, vector<64x32xf32>
    %cst = arith.constant 0.000000e+00 : f32
    %1 = vector.broadcast %cst : f32 to vector<64x32xf32>
    %c0_1 = arith.constant 0 : index
    %c0_2 = arith.constant 0 : index
    %c0_3 = arith.constant 0 : index
    %2 = vector.load %arg2[%c0_1, %c0_2, %c0_3] : memref<4x32x32xf32, #tpu.memory_space<vmem>>, vector<1x32x32xf32>
    %3 = vector.shape_cast %2 : vector<1x32x32xf32> to vector<32x32xf32>
    %cst_4 = arith.constant dense<0.000000e+00> : vector<64x32xf32>
    %4 = tpu.matmul %0, %3, %cst_4 {dimension_numbers = #tpu.dot_dimension_numbers<[1], [0], [0], [1], [0, 0, 1, 1], [], []>} : vector<64x32xf32>, vector<32x32xf32>, vector<64x32xf32> -> vector<64x32xf32>
    %c0_5 = arith.constant 0 : index
    %c0_6 = arith.constant 0 : index
    %c0_7 = arith.constant 0 : index
    %5 = vector.load %arg3[%c0_5, %c0_6, %c0_7] : memref<4x1x32xf32, #tpu.memory_space<vmem>>, vector<1x1x32xf32>
    %6 = vector.shape_cast %5 : vector<1x1x32xf32> to vector<1x32xf32>
    %7 = vector.broadcast %6 : vector<1x32xf32> to vector<64x32xf32>
    %8 = arith.addf %4, %7 : vector<64x32xf32>
    %9 = math.tanh %8 : vector<64x32xf32>
    %c0_8 = arith.constant 0 : index
    %10 = memref.load %arg13[%c0_8] : memref<4xf32, #tpu.memory_space<smem>>
    %11 = vector.broadcast %10 : f32 to vector<64x32xf32>
    %12 = arith.mulf %11, %9 : vector<64x32xf32>
    %13 = arith.addf %1, %12 : vector<64x32xf32>
    %c1 = arith.constant 1 : index
    %c0_9 = arith.constant 0 : index
    %c0_10 = arith.constant 0 : index
    %14 = vector.load %arg2[%c1, %c0_9, %c0_10] : memref<4x32x32xf32, #tpu.memory_space<vmem>>, vector<1x32x32xf32>
    %15 = vector.shape_cast %14 : vector<1x32x32xf32> to vector<32x32xf32>
    %cst_11 = arith.constant dense<0.000000e+00> : vector<64x32xf32>
    %16 = tpu.matmul %9, %15, %cst_11 {dimension_numbers = #tpu.dot_dimension_numbers<[1], [0], [0], [1], [0, 0, 1, 1], [], []>} : vector<64x32xf32>, vector<32x32xf32>, vector<64x32xf32> -> vector<64x32xf32>
    %c1_12 = arith.constant 1 : index
    %c0_13 = arith.constant 0 : index
    %c0_14 = arith.constant 0 : index
    %17 = vector.load %arg3[%c1_12, %c0_13, %c0_14] : memref<4x1x32xf32, #tpu.memory_space<vmem>>, vector<1x1x32xf32>
    %18 = vector.shape_cast %17 : vector<1x1x32xf32> to vector<1x32xf32>
    %19 = vector.broadcast %18 : vector<1x32xf32> to vector<64x32xf32>
    %20 = arith.addf %16, %19 : vector<64x32xf32>
    %21 = math.tanh %20 : vector<64x32xf32>
    %c1_15 = arith.constant 1 : index
    %22 = memref.load %arg13[%c1_15] : memref<4xf32, #tpu.memory_space<smem>>
    %23 = vector.broadcast %22 : f32 to vector<64x32xf32>
    %24 = arith.mulf %23, %21 : vector<64x32xf32>
    %25 = arith.addf %13, %24 : vector<64x32xf32>
    %c2 = arith.constant 2 : index
    %c0_16 = arith.constant 0 : index
    %c0_17 = arith.constant 0 : index
    %26 = vector.load %arg2[%c2, %c0_16, %c0_17] : memref<4x32x32xf32, #tpu.memory_space<vmem>>, vector<1x32x32xf32>
    %27 = vector.shape_cast %26 : vector<1x32x32xf32> to vector<32x32xf32>
    %cst_18 = arith.constant dense<0.000000e+00> : vector<64x32xf32>
    %28 = tpu.matmul %21, %27, %cst_18 {dimension_numbers = #tpu.dot_dimension_numbers<[1], [0], [0], [1], [0, 0, 1, 1], [], []>} : vector<64x32xf32>, vector<32x32xf32>, vector<64x32xf32> -> vector<64x32xf32>
    %c2_19 = arith.constant 2 : index
    %c0_20 = arith.constant 0 : index
    %c0_21 = arith.constant 0 : index
    %29 = vector.load %arg3[%c2_19, %c0_20, %c0_21] : memref<4x1x32xf32, #tpu.memory_space<vmem>>, vector<1x1x32xf32>
    %30 = vector.shape_cast %29 : vector<1x1x32xf32> to vector<1x32xf32>
    %31 = vector.broadcast %30 : vector<1x32xf32> to vector<64x32xf32>
    %32 = arith.addf %28, %31 : vector<64x32xf32>
    %33 = math.tanh %32 : vector<64x32xf32>
    %c2_22 = arith.constant 2 : index
    %34 = memref.load %arg13[%c2_22] : memref<4xf32, #tpu.memory_space<smem>>
    %35 = vector.broadcast %34 : f32 to vector<64x32xf32>
    %36 = arith.mulf %35, %33 : vector<64x32xf32>
    %37 = arith.addf %25, %36 : vector<64x32xf32>
    %c3 = arith.constant 3 : index
    %c0_23 = arith.constant 0 : index
    %c0_24 = arith.constant 0 : index
    %38 = vector.load %arg2[%c3, %c0_23, %c0_24] : memref<4x32x32xf32, #tpu.memory_space<vmem>>, vector<1x32x32xf32>
    %39 = vector.shape_cast %38 : vector<1x32x32xf32> to vector<32x32xf32>
    %cst_25 = arith.constant dense<0.000000e+00> : vector<64x32xf32>
    %40 = tpu.matmul %33, %39, %cst_25 {dimension_numbers = #tpu.dot_dimension_numbers<[1], [0], [0], [1], [0, 0, 1, 1], [], []>} : vector<64x32xf32>, vector<32x32xf32>, vector<64x32xf32> -> vector<64x32xf32>
    %c3_26 = arith.constant 3 : index
    %c0_27 = arith.constant 0 : index
    %c0_28 = arith.constant 0 : index
    %41 = vector.load %arg3[%c3_26, %c0_27, %c0_28] : memref<4x1x32xf32, #tpu.memory_space<vmem>>, vector<1x1x32xf32>
    %42 = vector.shape_cast %41 : vector<1x1x32xf32> to vector<1x32xf32>
    %43 = vector.broadcast %42 : vector<1x32xf32> to vector<64x32xf32>
    %44 = arith.addf %40, %43 : vector<64x32xf32>
    %45 = math.tanh %44 : vector<64x32xf32>
    %c3_29 = arith.constant 3 : index
    %46 = memref.load %arg13[%c3_29] : memref<4xf32, #tpu.memory_space<smem>>
    %47 = vector.broadcast %46 : f32 to vector<64x32xf32>
    %48 = arith.mulf %47, %45 : vector<64x32xf32>
    %49 = arith.addf %37, %48 : vector<64x32xf32>
    %c0_30 = arith.constant 0 : index
    %50 = memref.load %arg14[%c0_30] : memref<1xf32, #tpu.memory_space<smem>>
    %51 = vector.broadcast %50 : f32 to vector<64x32xf32>
    %52 = arith.mulf %51, %49 : vector<64x32xf32>
    %c0_31 = arith.constant 0 : index
    %c0_32 = arith.constant 0 : index
    %53 = vector.load %arg11[%c0_31, %c0_32] : memref<16x64xf32, #tpu.memory_space<vmem>>, vector<16x64xf32>
    %cst_33 = arith.constant dense<0.000000e+00> : vector<16x32xf32>
    %54 = tpu.matmul %53, %52, %cst_33 {dimension_numbers = #tpu.dot_dimension_numbers<[1], [0], [0], [1], [0, 0, 1, 1], [], []>} : vector<16x64xf32>, vector<64x32xf32>, vector<16x32xf32> -> vector<16x32xf32>
    %c0_34 = arith.constant 0 : index
    %c0_35 = arith.constant 0 : index
    %55 = vector.load %arg12[%c0_34, %c0_35] : memref<32x16xf32, #tpu.memory_space<vmem>>, vector<32x16xf32>
    %cst_36 = arith.constant dense<0.000000e+00> : vector<16x16xf32>
    %56 = tpu.matmul %54, %55, %cst_36 {dimension_numbers = #tpu.dot_dimension_numbers<[1], [0], [0], [1], [0, 0, 1, 1], [], []>} : vector<16x32xf32>, vector<32x16xf32>, vector<16x16xf32> -> vector<16x16xf32>
    %c0_37 = arith.constant 0 : index
    %c0_38 = arith.constant 0 : index
    %57 = vector.load %arg15[%c0_37, %c0_38] : memref<16x16xf32, #tpu.memory_space<vmem>>, vector<16x16xf32>
    tpu.vector_store %arg15[%c0_37, %c0_38], %56 {strides = array<i32>} : memref<16x16xf32, #tpu.memory_space<vmem>>, vector<16x16xf32>,
    %c0_39 = arith.constant 0 : index
    %c0_40 = arith.constant 0 : index
    %58 = vector.load %arg8[%c0_39, %c0_40] : memref<16x64xf32, #tpu.memory_space<vmem>>, vector<16x64xf32>
    %cst_41 = arith.constant dense<0.000000e+00> : vector<16x32xf32>
    %59 = tpu.matmul %58, %21, %cst_41 {dimension_numbers = #tpu.dot_dimension_numbers<[1], [0], [0], [1], [0, 0, 1, 1], [], []>} : vector<16x64xf32>, vector<64x32xf32>, vector<16x32xf32> -> vector<16x32xf32>
    %c0_42 = arith.constant 0 : index
    %c0_43 = arith.constant 0 : index
    %c0_44 = arith.constant 0 : index
    %60 = vector.load %arg4[%c0_42, %c0_43, %c0_44] : memref<4x32x8xf32, #tpu.memory_space<vmem>>, vector<1x32x8xf32>
    %61 = vector.shape_cast %60 : vector<1x32x8xf32> to vector<32x8xf32>
    %cst_45 = arith.constant dense<0.000000e+00> : vector<16x8xf32>
    %62 = tpu.matmul %59, %61, %cst_45 {dimension_numbers = #tpu.dot_dimension_numbers<[1], [0], [0], [1], [0, 0, 1, 1], [], []>} : vector<16x32xf32>, vector<32x8xf32>, vector<16x8xf32> -> vector<16x8xf32>
    %c0_46 = arith.constant 0 : index
    %c0_47 = arith.constant 0 : index
    %c0_48 = arith.constant 0 : index
    %63 = vector.load %arg5[%c0_46, %c0_47, %c0_48] : memref<4x1x8xf32, #tpu.memory_space<vmem>>, vector<1x1x8xf32>
    %64 = vector.shape_cast %63 : vector<1x1x8xf32> to vector<1x8xf32>
    %65 = vector.broadcast %64 : vector<1x8xf32> to vector<16x8xf32>
    %66 = arith.addf %62, %65 : vector<16x8xf32>
    %c0_49 = arith.constant 0 : index
    %c0_50 = arith.constant 0 : index
    %c0_51 = arith.constant 0 : index
    %67 = vector.load %arg6[%c0_49, %c0_50, %c0_51] : memref<4x32x8xf32, #tpu.memory_space<vmem>>, vector<1x32x8xf32>
    %68 = vector.shape_cast %67 : vector<1x32x8xf32> to vector<32x8xf32>
    %cst_52 = arith.constant dense<0.000000e+00> : vector<64x8xf32>
    %69 = tpu.matmul %21, %68, %cst_52 {dimension_numbers = #tpu.dot_dimension_numbers<[1], [0], [0], [1], [0, 0, 1, 1], [], []>} : vector<64x32xf32>, vector<32x8xf32>, vector<64x8xf32> -> vector<64x8xf32>
    %c0_53 = arith.constant 0 : index
    %c0_54 = arith.constant 0 : index
    %c0_55 = arith.constant 0 : index
    %70 = vector.load %arg7[%c0_53, %c0_54, %c0_55] : memref<4x1x8xf32, #tpu.memory_space<vmem>>, vector<1x1x8xf32>
    %71 = vector.shape_cast %70 : vector<1x1x8xf32> to vector<1x8xf32>
    %72 = vector.broadcast %71 : vector<1x8xf32> to vector<64x8xf32>
    %73 = arith.addf %69, %72 : vector<64x8xf32>
    %cst_56 = arith.constant dense<0.000000e+00> : vector<16x64xf32>
    %74 = tpu.matmul %66, %73, %cst_56 {dimension_numbers = #tpu.dot_dimension_numbers<[1], [1], [0], [0], [0, 0, 1, 0], [], []>} : vector<16x8xf32>, vector<64x8xf32>, vector<16x64xf32> -> vector<16x64xf32>
    %cst_57 = arith.constant 0.353553385 : f32
    %75 = vector.broadcast %cst_57 : f32 to vector<16x64xf32>
    %76 = arith.mulf %75, %74 : vector<16x64xf32>
    %cst_58 = arith.constant 0.000000e+00 : f32
    %77 = vector.broadcast %cst_58 : f32 to vector<16x64xf32>
    %78 = arith.cmpf oeq, %76, %77 : vector<16x64xf32>
    %cst_59 = arith.constant -9.99999971E-10 : f32
    %79 = vector.broadcast %cst_59 : f32 to vector<16x64xf32>
    %80 = arith.cmpf oeq, %76, %79 : vector<16x64xf32>
    %81 = arith.ori %78, %80 : vector<16x64xi1>
    %82 = arith.extui %81 : vector<16x64xi1> to vector<16x64xi32>
    %83 = arith.sitofp %82 : vector<16x64xi32> to vector<16x64xf32>
    %c0_60 = arith.constant 0 : index
    %c0_61 = arith.constant 0 : index
    %84 = vector.load %arg9[%c0_60, %c0_61] : memref<64x64xf32, #tpu.memory_space<vmem>>, vector<64x64xf32>
    %cst_62 = arith.constant dense<0.000000e+00> : vector<16x64xf32>
    %85 = tpu.matmul %76, %84, %cst_62 {dimension_numbers = #tpu.dot_dimension_numbers<[1], [0], [0], [1], [0, 0, 1, 1], [], []>} : vector<16x64xf32>, vector<64x64xf32>, vector<16x64xf32> -> vector<16x64xf32>
    %c0_63 = arith.constant 0 : index
    %c0_64 = arith.constant 0 : index
    %86 = vector.load %arg9[%c0_63, %c0_64] : memref<64x64xf32, #tpu.memory_space<vmem>>, vector<64x64xf32>
    %cst_65 = arith.constant dense<0.000000e+00> : vector<16x64xf32>
    %87 = tpu.matmul %83, %86, %cst_65 {dimension_numbers = #tpu.dot_dimension_numbers<[1], [0], [0], [1], [0, 0, 1, 1], [], []>} : vector<16x64xf32>, vector<64x64xf32>, vector<16x64xf32> -> vector<16x64xf32>
    %cst_66 = arith.constant 5.000000e-01 : f32
    %88 = vector.broadcast %cst_66 : f32 to vector<16x64xf32>
    %89 = arith.cmpf ogt, %87, %88 : vector<16x64xf32>
    %cst_67 = arith.constant 0.000000e+00 : f32
    %90 = vector.broadcast %cst_67 : f32 to vector<16x64xf32>
    %91 = arith.select %89, %90, %85 : vector<16x64xi1>, vector<16x64xf32>
    %c0_68 = arith.constant 0 : index
    %c0_69 = arith.constant 0 : index
    %92 = vector.load %arg10[%c0_68, %c0_69] : memref<64x16xf32, #tpu.memory_space<vmem>>, vector<64x16xf32>
    %cst_70 = arith.constant dense<0.000000e+00> : vector<16x16xf32>
    %93 = tpu.matmul %91, %92, %cst_70 {dimension_numbers = #tpu.dot_dimension_numbers<[1], [0], [0], [1], [0, 0, 1, 1], [], []>} : vector<16x64xf32>, vector<64x16xf32>, vector<16x16xf32> -> vector<16x16xf32>
    %94 = vector.extract_strided_slice %93 {offsets = [0, 0], sizes = [8, 8], strides = [1, 1]} : vector<16x16xf32> to vector<8x8xf32>
    %c0_71 = arith.constant 0 : index
    %c0_72 = arith.constant 0 : index
    %c0_73 = arith.constant 0 : index
    %c0_74 = arith.constant 0 : index
    %95 = vector.load %arg16[%c0_71, %c0_72, %c0_73, %c0_74] : memref<2x4x8x8xf32, #tpu.memory_space<vmem>>, vector<1x1x8x8xf32>
    %96 = vector.shape_cast %95 : vector<1x1x8x8xf32> to vector<8x8xf32>
    %97 = vector.shape_cast %94 : vector<8x8xf32> to vector<1x1x8x8xf32>
    tpu.vector_store %arg16[%c0_71, %c0_72, %c0_73, %c0_74], %97 {strides = array<i32>} : memref<2x4x8x8xf32, #tpu.memory_space<vmem>>, vector<1x1x8x8xf32>,
    %98 = vector.extract_strided_slice %93 {offsets = [8, 8], sizes = [8, 8], strides = [1, 1]} : vector<16x16xf32> to vector<8x8xf32>
    %c1_75 = arith.constant 1 : index
    %c0_76 = arith.constant 0 : index
    %c0_77 = arith.constant 0 : index
    %c0_78 = arith.constant 0 : index
    %99 = vector.load %arg16[%c1_75, %c0_76, %c0_77, %c0_78] : memref<2x4x8x8xf32, #tpu.memory_space<vmem>>, vector<1x1x8x8xf32>
    %100 = vector.shape_cast %99 : vector<1x1x8x8xf32> to vector<8x8xf32>
    %101 = vector.shape_cast %98 : vector<8x8xf32> to vector<1x1x8x8xf32>
    tpu.vector_store %arg16[%c1_75, %c0_76, %c0_77, %c0_78], %101 {strides = array<i32>} : memref<2x4x8x8xf32, #tpu.memory_space<vmem>>, vector<1x1x8x8xf32>,
    %c1_79 = arith.constant 1 : index
    %c0_80 = arith.constant 0 : index
    %c0_81 = arith.constant 0 : index
    %102 = vector.load %arg4[%c1_79, %c0_80, %c0_81] : memref<4x32x8xf32, #tpu.memory_space<vmem>>, vector<1x32x8xf32>
    %103 = vector.shape_cast %102 : vector<1x32x8xf32> to vector<32x8xf32>
    %cst_82 = arith.constant dense<0.000000e+00> : vector<16x8xf32>
    %104 = tpu.matmul %59, %103, %cst_82 {dimension_numbers = #tpu.dot_dimension_numbers<[1], [0], [0], [1], [0, 0, 1, 1], [], []>} : vector<16x32xf32>, vector<32x8xf32>, vector<16x8xf32> -> vector<16x8xf32>
    %c1_83 = arith.constant 1 : index
    %c0_84 = arith.constant 0 : index
    %c0_85 = arith.constant 0 : index
    %105 = vector.load %arg5[%c1_83, %c0_84, %c0_85] : memref<4x1x8xf32, #tpu.memory_space<vmem>>, vector<1x1x8xf32>
    %106 = vector.shape_cast %105 : vector<1x1x8xf32> to vector<1x8xf32>
    %107 = vector.broadcast %106 : vector<1x8xf32> to vector<16x8xf32>
    %108 = arith.addf %104, %107 : vector<16x8xf32>
    %c1_86 = arith.constant 1 : index
    %c0_87 = arith.constant 0 : index
    %c0_88 = arith.constant 0 : index
    %109 = vector.load %arg6[%c1_86, %c0_87, %c0_88] : memref<4x32x8xf32, #tpu.memory_space<vmem>>, vector<1x32x8xf32>
    %110 = vector.shape_cast %109 : vector<1x32x8xf32> to vector<32x8xf32>
    %cst_89 = arith.constant dense<0.000000e+00> : vector<64x8xf32>
    %111 = tpu.matmul %21, %110, %cst_89 {dimension_numbers = #tpu.dot_dimension_numbers<[1], [0], [0], [1], [0, 0, 1, 1], [], []>} : vector<64x32xf32>, vector<32x8xf32>, vector<64x8xf32> -> vector<64x8xf32>
    %c1_90 = arith.constant 1 : index
    %c0_91 = arith.constant 0 : index
    %c0_92 = arith.constant 0 : index
    %112 = vector.load %arg7[%c1_90, %c0_91, %c0_92] : memref<4x1x8xf32, #tpu.memory_space<vmem>>, vector<1x1x8xf32>
    %113 = vector.shape_cast %112 : vector<1x1x8xf32> to vector<1x8xf32>
    %114 = vector.broadcast %113 : vector<1x8xf32> to vector<64x8xf32>
    %115 = arith.addf %111, %114 : vector<64x8xf32>
    %cst_93 = arith.constant dense<0.000000e+00> : vector<16x64xf32>
    %116 = tpu.matmul %108, %115, %cst_93 {dimension_numbers = #tpu.dot_dimension_numbers<[1], [1], [0], [0], [0, 0, 1, 0], [], []>} : vector<16x8xf32>, vector<64x8xf32>, vector<16x64xf32> -> vector<16x64xf32>
    %cst_94 = arith.constant 0.353553385 : f32
    %117 = vector.broadcast %cst_94 : f32 to vector<16x64xf32>
    %118 = arith.mulf %117, %116 : vector<16x64xf32>
    %cst_95 = arith.constant 0.000000e+00 : f32
    %119 = vector.broadcast %cst_95 : f32 to vector<16x64xf32>
    %120 = arith.cmpf oeq, %118, %119 : vector<16x64xf32>
    %cst_96 = arith.constant -9.99999971E-10 : f32
    %121 = vector.broadcast %cst_96 : f32 to vector<16x64xf32>
    %122 = arith.cmpf oeq, %118, %121 : vector<16x64xf32>
    %123 = arith.ori %120, %122 : vector<16x64xi1>
    %124 = arith.extui %123 : vector<16x64xi1> to vector<16x64xi32>
    %125 = arith.sitofp %124 : vector<16x64xi32> to vector<16x64xf32>
    %c0_97 = arith.constant 0 : index
    %c0_98 = arith.constant 0 : index
    %126 = vector.load %arg9[%c0_97, %c0_98] : memref<64x64xf32, #tpu.memory_space<vmem>>, vector<64x64xf32>
    %cst_99 = arith.constant dense<0.000000e+00> : vector<16x64xf32>
    %127 = tpu.matmul %118, %126, %cst_99 {dimension_numbers = #tpu.dot_dimension_numbers<[1], [0], [0], [1], [0, 0, 1, 1], [], []>} : vector<16x64xf32>, vector<64x64xf32>, vector<16x64xf32> -> vector<16x64xf32>
    %c0_100 = arith.constant 0 : index
    %c0_101 = arith.constant 0 : index
    %128 = vector.load %arg9[%c0_100, %c0_101] : memref<64x64xf32, #tpu.memory_space<vmem>>, vector<64x64xf32>
    %cst_102 = arith.constant dense<0.000000e+00> : vector<16x64xf32>
    %129 = tpu.matmul %125, %128, %cst_102 {dimension_numbers = #tpu.dot_dimension_numbers<[1], [0], [0], [1], [0, 0, 1, 1], [], []>} : vector<16x64xf32>, vector<64x64xf32>, vector<16x64xf32> -> vector<16x64xf32>
    %cst_103 = arith.constant 5.000000e-01 : f32
    %130 = vector.broadcast %cst_103 : f32 to vector<16x64xf32>
    %131 = arith.cmpf ogt, %129, %130 : vector<16x64xf32>
    %cst_104 = arith.constant 0.000000e+00 : f32
    %132 = vector.broadcast %cst_104 : f32 to vector<16x64xf32>
    %133 = arith.select %131, %132, %127 : vector<16x64xi1>, vector<16x64xf32>
    %c0_105 = arith.constant 0 : index
    %c0_106 = arith.constant 0 : index
    %134 = vector.load %arg10[%c0_105, %c0_106] : memref<64x16xf32, #tpu.memory_space<vmem>>, vector<64x16xf32>
    %cst_107 = arith.constant dense<0.000000e+00> : vector<16x16xf32>
    %135 = tpu.matmul %133, %134, %cst_107 {dimension_numbers = #tpu.dot_dimension_numbers<[1], [0], [0], [1], [0, 0, 1, 1], [], []>} : vector<16x64xf32>, vector<64x16xf32>, vector<16x16xf32> -> vector<16x16xf32>
    %136 = vector.extract_strided_slice %135 {offsets = [0, 0], sizes = [8, 8], strides = [1, 1]} : vector<16x16xf32> to vector<8x8xf32>
    %c0_108 = arith.constant 0 : index
    %c1_109 = arith.constant 1 : index
    %c0_110 = arith.constant 0 : index
    %c0_111 = arith.constant 0 : index
    %137 = vector.load %arg16[%c0_108, %c1_109, %c0_110, %c0_111] : memref<2x4x8x8xf32, #tpu.memory_space<vmem>>, vector<1x1x8x8xf32>
    %138 = vector.shape_cast %137 : vector<1x1x8x8xf32> to vector<8x8xf32>
    %139 = vector.shape_cast %136 : vector<8x8xf32> to vector<1x1x8x8xf32>
    tpu.vector_store %arg16[%c0_108, %c1_109, %c0_110, %c0_111], %139 {strides = array<i32>} : memref<2x4x8x8xf32, #tpu.memory_space<vmem>>, vector<1x1x8x8xf32>,
    %140 = vector.extract_strided_slice %135 {offsets = [8, 8], sizes = [8, 8], strides = [1, 1]} : vector<16x16xf32> to vector<8x8xf32>
    %c1_112 = arith.constant 1 : index
    %c1_113 = arith.constant 1 : index
    %c0_114 = arith.constant 0 : index
    %c0_115 = arith.constant 0 : index
    %141 = vector.load %arg16[%c1_112, %c1_113, %c0_114, %c0_115] : memref<2x4x8x8xf32, #tpu.memory_space<vmem>>, vector<1x1x8x8xf32>
    %142 = vector.shape_cast %141 : vector<1x1x8x8xf32> to vector<8x8xf32>
    %143 = vector.shape_cast %140 : vector<8x8xf32> to vector<1x1x8x8xf32>
    tpu.vector_store %arg16[%c1_112, %c1_113, %c0_114, %c0_115], %143 {strides = array<i32>} : memref<2x4x8x8xf32, #tpu.memory_space<vmem>>, vector<1x1x8x8xf32>,
    %c2_116 = arith.constant 2 : index
    %c0_117 = arith.constant 0 : index
    %c0_118 = arith.constant 0 : index
    %144 = vector.load %arg4[%c2_116, %c0_117, %c0_118] : memref<4x32x8xf32, #tpu.memory_space<vmem>>, vector<1x32x8xf32>
    %145 = vector.shape_cast %144 : vector<1x32x8xf32> to vector<32x8xf32>
    %cst_119 = arith.constant dense<0.000000e+00> : vector<16x8xf32>
    %146 = tpu.matmul %59, %145, %cst_119 {dimension_numbers = #tpu.dot_dimension_numbers<[1], [0], [0], [1], [0, 0, 1, 1], [], []>} : vector<16x32xf32>, vector<32x8xf32>, vector<16x8xf32> -> vector<16x8xf32>
    %c2_120 = arith.constant 2 : index
    %c0_121 = arith.constant 0 : index
    %c0_122 = arith.constant 0 : index
    %147 = vector.load %arg5[%c2_120, %c0_121, %c0_122] : memref<4x1x8xf32, #tpu.memory_space<vmem>>, vector<1x1x8xf32>
    %148 = vector.shape_cast %147 : vector<1x1x8xf32> to vector<1x8xf32>
    %149 = vector.broadcast %148 : vector<1x8xf32> to vector<16x8xf32>
    %150 = arith.addf %146, %149 : vector<16x8xf32>
    %c2_123 = arith.constant 2 : index
    %c0_124 = arith.constant 0 : index
    %c0_125 = arith.constant 0 : index
    %151 = vector.load %arg6[%c2_123, %c0_124, %c0_125] : memref<4x32x8xf32, #tpu.memory_space<vmem>>, vector<1x32x8xf32>
    %152 = vector.shape_cast %151 : vector<1x32x8xf32> to vector<32x8xf32>
    %cst_126 = arith.constant dense<0.000000e+00> : vector<64x8xf32>
    %153 = tpu.matmul %21, %152, %cst_126 {dimension_numbers = #tpu.dot_dimension_numbers<[1], [0], [0], [1], [0, 0, 1, 1], [], []>} : vector<64x32xf32>, vector<32x8xf32>, vector<64x8xf32> -> vector<64x8xf32>
    %c2_127 = arith.constant 2 : index
    %c0_128 = arith.constant 0 : index
    %c0_129 = arith.constant 0 : index
    %154 = vector.load %arg7[%c2_127, %c0_128, %c0_129] : memref<4x1x8xf32, #tpu.memory_space<vmem>>, vector<1x1x8xf32>
    %155 = vector.shape_cast %154 : vector<1x1x8xf32> to vector<1x8xf32>
    %156 = vector.broadcast %155 : vector<1x8xf32> to vector<64x8xf32>
    %157 = arith.addf %153, %156 : vector<64x8xf32>
    %cst_130 = arith.constant dense<0.000000e+00> : vector<16x64xf32>
    %158 = tpu.matmul %150, %157, %cst_130 {dimension_numbers = #tpu.dot_dimension_numbers<[1], [1], [0], [0], [0, 0, 1, 0], [], []>} : vector<16x8xf32>, vector<64x8xf32>, vector<16x64xf32> -> vector<16x64xf32>
    %cst_131 = arith.constant 0.353553385 : f32
    %159 = vector.broadcast %cst_131 : f32 to vector<16x64xf32>
    %160 = arith.mulf %159, %158 : vector<16x64xf32>
    %cst_132 = arith.constant 0.000000e+00 : f32
    %161 = vector.broadcast %cst_132 : f32 to vector<16x64xf32>
    %162 = arith.cmpf oeq, %160, %161 : vector<16x64xf32>
    %cst_133 = arith.constant -9.99999971E-10 : f32
    %163 = vector.broadcast %cst_133 : f32 to vector<16x64xf32>
    %164 = arith.cmpf oeq, %160, %163 : vector<16x64xf32>
    %165 = arith.ori %162, %164 : vector<16x64xi1>
    %166 = arith.extui %165 : vector<16x64xi1> to vector<16x64xi32>
    %167 = arith.sitofp %166 : vector<16x64xi32> to vector<16x64xf32>
    %c0_134 = arith.constant 0 : index
    %c0_135 = arith.constant 0 : index
    %168 = vector.load %arg9[%c0_134, %c0_135] : memref<64x64xf32, #tpu.memory_space<vmem>>, vector<64x64xf32>
    %cst_136 = arith.constant dense<0.000000e+00> : vector<16x64xf32>
    %169 = tpu.matmul %160, %168, %cst_136 {dimension_numbers = #tpu.dot_dimension_numbers<[1], [0], [0], [1], [0, 0, 1, 1], [], []>} : vector<16x64xf32>, vector<64x64xf32>, vector<16x64xf32> -> vector<16x64xf32>
    %c0_137 = arith.constant 0 : index
    %c0_138 = arith.constant 0 : index
    %170 = vector.load %arg9[%c0_137, %c0_138] : memref<64x64xf32, #tpu.memory_space<vmem>>, vector<64x64xf32>
    %cst_139 = arith.constant dense<0.000000e+00> : vector<16x64xf32>
    %171 = tpu.matmul %167, %170, %cst_139 {dimension_numbers = #tpu.dot_dimension_numbers<[1], [0], [0], [1], [0, 0, 1, 1], [], []>} : vector<16x64xf32>, vector<64x64xf32>, vector<16x64xf32> -> vector<16x64xf32>
    %cst_140 = arith.constant 5.000000e-01 : f32
    %172 = vector.broadcast %cst_140 : f32 to vector<16x64xf32>
    %173 = arith.cmpf ogt, %171, %172 : vector<16x64xf32>
    %cst_141 = arith.constant 0.000000e+00 : f32
    %174 = vector.broadcast %cst_141 : f32 to vector<16x64xf32>
    %175 = arith.select %173, %174, %169 : vector<16x64xi1>, vector<16x64xf32>
    %c0_142 = arith.constant 0 : index
    %c0_143 = arith.constant 0 : index
    %176 = vector.load %arg10[%c0_142, %c0_143] : memref<64x16xf32, #tpu.memory_space<vmem>>, vector<64x16xf32>
    %cst_144 = arith.constant dense<0.000000e+00> : vector<16x16xf32>
    %177 = tpu.matmul %175, %176, %cst_144 {dimension_numbers = #tpu.dot_dimension_numbers<[1], [0], [0], [1], [0, 0, 1, 1], [], []>} : vector<16x64xf32>, vector<64x16xf32>, vector<16x16xf32> -> vector<16x16xf32>
    %178 = vector.extract_strided_slice %177 {offsets = [0, 0], sizes = [8, 8], strides = [1, 1]} : vector<16x16xf32> to vector<8x8xf32>
    %c0_145 = arith.constant 0 : index
    %c2_146 = arith.constant 2 : index
    %c0_147 = arith.constant 0 : index
    %c0_148 = arith.constant 0 : index
    %179 = vector.load %arg16[%c0_145, %c2_146, %c0_147, %c0_148] : memref<2x4x8x8xf32, #tpu.memory_space<vmem>>, vector<1x1x8x8xf32>
    %180 = vector.shape_cast %179 : vector<1x1x8x8xf32> to vector<8x8xf32>
    %181 = vector.shape_cast %178 : vector<8x8xf32> to vector<1x1x8x8xf32>
    tpu.vector_store %arg16[%c0_145, %c2_146, %c0_147, %c0_148], %181 {strides = array<i32>} : memref<2x4x8x8xf32, #tpu.memory_space<vmem>>, vector<1x1x8x8xf32>,
    %182 = vector.extract_strided_slice %177 {offsets = [8, 8], sizes = [8, 8], strides = [1, 1]} : vector<16x16xf32> to vector<8x8xf32>
    %c1_149 = arith.constant 1 : index
    %c2_150 = arith.constant 2 : index
    %c0_151 = arith.constant 0 : index
    %c0_152 = arith.constant 0 : index
    %183 = vector.load %arg16[%c1_149, %c2_150, %c0_151, %c0_152] : memref<2x4x8x8xf32, #tpu.memory_space<vmem>>, vector<1x1x8x8xf32>
    %184 = vector.shape_cast %183 : vector<1x1x8x8xf32> to vector<8x8xf32>
    %185 = vector.shape_cast %182 : vector<8x8xf32> to vector<1x1x8x8xf32>
    tpu.vector_store %arg16[%c1_149, %c2_150, %c0_151, %c0_152], %185 {strides = array<i32>} : memref<2x4x8x8xf32, #tpu.memory_space<vmem>>, vector<1x1x8x8xf32>,
    %c3_153 = arith.constant 3 : index
    %c0_154 = arith.constant 0 : index
    %c0_155 = arith.constant 0 : index
    %186 = vector.load %arg4[%c3_153, %c0_154, %c0_155] : memref<4x32x8xf32, #tpu.memory_space<vmem>>, vector<1x32x8xf32>
    %187 = vector.shape_cast %186 : vector<1x32x8xf32> to vector<32x8xf32>
    %cst_156 = arith.constant dense<0.000000e+00> : vector<16x8xf32>
    %188 = tpu.matmul %59, %187, %cst_156 {dimension_numbers = #tpu.dot_dimension_numbers<[1], [0], [0], [1], [0, 0, 1, 1], [], []>} : vector<16x32xf32>, vector<32x8xf32>, vector<16x8xf32> -> vector<16x8xf32>
    %c3_157 = arith.constant 3 : index
    %c0_158 = arith.constant 0 : index
    %c0_159 = arith.constant 0 : index
    %189 = vector.load %arg5[%c3_157, %c0_158, %c0_159] : memref<4x1x8xf32, #tpu.memory_space<vmem>>, vector<1x1x8xf32>
    %190 = vector.shape_cast %189 : vector<1x1x8xf32> to vector<1x8xf32>
    %191 = vector.broadcast %190 : vector<1x8xf32> to vector<16x8xf32>
    %192 = arith.addf %188, %191 : vector<16x8xf32>
    %c3_160 = arith.constant 3 : index
    %c0_161 = arith.constant 0 : index
    %c0_162 = arith.constant 0 : index
    %193 = vector.load %arg6[%c3_160, %c0_161, %c0_162] : memref<4x32x8xf32, #tpu.memory_space<vmem>>, vector<1x32x8xf32>
    %194 = vector.shape_cast %193 : vector<1x32x8xf32> to vector<32x8xf32>
    %cst_163 = arith.constant dense<0.000000e+00> : vector<64x8xf32>
    %195 = tpu.matmul %21, %194, %cst_163 {dimension_numbers = #tpu.dot_dimension_numbers<[1], [0], [0], [1], [0, 0, 1, 1], [], []>} : vector<64x32xf32>, vector<32x8xf32>, vector<64x8xf32> -> vector<64x8xf32>
    %c3_164 = arith.constant 3 : index
    %c0_165 = arith.constant 0 : index
    %c0_166 = arith.constant 0 : index
    %196 = vector.load %arg7[%c3_164, %c0_165, %c0_166] : memref<4x1x8xf32, #tpu.memory_space<vmem>>, vector<1x1x8xf32>
    %197 = vector.shape_cast %196 : vector<1x1x8xf32> to vector<1x8xf32>
    %198 = vector.broadcast %197 : vector<1x8xf32> to vector<64x8xf32>
    %199 = arith.addf %195, %198 : vector<64x8xf32>
    %cst_167 = arith.constant dense<0.000000e+00> : vector<16x64xf32>
    %200 = tpu.matmul %192, %199, %cst_167 {dimension_numbers = #tpu.dot_dimension_numbers<[1], [1], [0], [0], [0, 0, 1, 0], [], []>} : vector<16x8xf32>, vector<64x8xf32>, vector<16x64xf32> -> vector<16x64xf32>
    %cst_168 = arith.constant 0.353553385 : f32
    %201 = vector.broadcast %cst_168 : f32 to vector<16x64xf32>
    %202 = arith.mulf %201, %200 : vector<16x64xf32>
    %cst_169 = arith.constant 0.000000e+00 : f32
    %203 = vector.broadcast %cst_169 : f32 to vector<16x64xf32>
    %204 = arith.cmpf oeq, %202, %203 : vector<16x64xf32>
    %cst_170 = arith.constant -9.99999971E-10 : f32
    %205 = vector.broadcast %cst_170 : f32 to vector<16x64xf32>
    %206 = arith.cmpf oeq, %202, %205 : vector<16x64xf32>
    %207 = arith.ori %204, %206 : vector<16x64xi1>
    %208 = arith.extui %207 : vector<16x64xi1> to vector<16x64xi32>
    %209 = arith.sitofp %208 : vector<16x64xi32> to vector<16x64xf32>
    %c0_171 = arith.constant 0 : index
    %c0_172 = arith.constant 0 : index
    %210 = vector.load %arg9[%c0_171, %c0_172] : memref<64x64xf32, #tpu.memory_space<vmem>>, vector<64x64xf32>
    %cst_173 = arith.constant dense<0.000000e+00> : vector<16x64xf32>
    %211 = tpu.matmul %202, %210, %cst_173 {dimension_numbers = #tpu.dot_dimension_numbers<[1], [0], [0], [1], [0, 0, 1, 1], [], []>} : vector<16x64xf32>, vector<64x64xf32>, vector<16x64xf32> -> vector<16x64xf32>
    %c0_174 = arith.constant 0 : index
    %c0_175 = arith.constant 0 : index
    %212 = vector.load %arg9[%c0_174, %c0_175] : memref<64x64xf32, #tpu.memory_space<vmem>>, vector<64x64xf32>
    %cst_176 = arith.constant dense<0.000000e+00> : vector<16x64xf32>
    %213 = tpu.matmul %209, %212, %cst_176 {dimension_numbers = #tpu.dot_dimension_numbers<[1], [0], [0], [1], [0, 0, 1, 1], [], []>} : vector<16x64xf32>, vector<64x64xf32>, vector<16x64xf32> -> vector<16x64xf32>
    %cst_177 = arith.constant 5.000000e-01 : f32
    %214 = vector.broadcast %cst_177 : f32 to vector<16x64xf32>
    %215 = arith.cmpf ogt, %213, %214 : vector<16x64xf32>
    %cst_178 = arith.constant 0.000000e+00 : f32
    %216 = vector.broadcast %cst_178 : f32 to vector<16x64xf32>
    %217 = arith.select %215, %216, %211 : vector<16x64xi1>, vector<16x64xf32>
    %c0_179 = arith.constant 0 : index
    %c0_180 = arith.constant 0 : index
    %218 = vector.load %arg10[%c0_179, %c0_180] : memref<64x16xf32, #tpu.memory_space<vmem>>, vector<64x16xf32>
    %cst_181 = arith.constant dense<0.000000e+00> : vector<16x16xf32>
    %219 = tpu.matmul %217, %218, %cst_181 {dimension_numbers = #tpu.dot_dimension_numbers<[1], [0], [0], [1], [0, 0, 1, 1], [], []>} : vector<16x64xf32>, vector<64x16xf32>, vector<16x16xf32> -> vector<16x16xf32>
    %220 = vector.extract_strided_slice %219 {offsets = [0, 0], sizes = [8, 8], strides = [1, 1]} : vector<16x16xf32> to vector<8x8xf32>
    %c0_182 = arith.constant 0 : index
    %c3_183 = arith.constant 3 : index
    %c0_184 = arith.constant 0 : index
    %c0_185 = arith.constant 0 : index
    %221 = vector.load %arg16[%c0_182, %c3_183, %c0_184, %c0_185] : memref<2x4x8x8xf32, #tpu.memory_space<vmem>>, vector<1x1x8x8xf32>
    %222 = vector.shape_cast %221 : vector<1x1x8x8xf32> to vector<8x8xf32>
    %223 = vector.shape_cast %220 : vector<8x8xf32> to vector<1x1x8x8xf32>
    tpu.vector_store %arg16[%c0_182, %c3_183, %c0_184, %c0_185], %223 {strides = array<i32>} : memref<2x4x8x8xf32, #tpu.memory_space<vmem>>, vector<1x1x8x8xf32>,
    %224 = vector.extract_strided_slice %219 {offsets = [8, 8], sizes = [8, 8], strides = [1, 1]} : vector<16x16xf32> to vector<8x8xf32>
    %c1_186 = arith.constant 1 : index
    %c3_187 = arith.constant 3 : index
    %c0_188 = arith.constant 0 : index
    %c0_189 = arith.constant 0 : index
    %225 = vector.load %arg16[%c1_186, %c3_187, %c0_188, %c0_189] : memref<2x4x8x8xf32, #tpu.memory_space<vmem>>, vector<1x1x8x8xf32>
    %226 = vector.shape_cast %225 : vector<1x1x8x8xf32> to vector<8x8xf32>
    %227 = vector.shape_cast %224 : vector<8x8xf32> to vector<1x1x8x8xf32>
    tpu.vector_store %arg16[%c1_186, %c3_187, %c0_188, %c0_189], %227 {strides = array<i32>} : memref<2x4x8x8xf32, #tpu.memory_space<vmem>>, vector<1x1x8x8xf32>,
    return
  }
  func.func @transform_0(%arg0: i32) -> (i32, i32) {
    %c0_i32 = arith.constant 0 : i32
    %c0_i32_0 = arith.constant 0 : i32
    %c0_i32_1 = arith.constant 0 : i32
    return %c0_i32, %c0_i32_0 : i32, i32
  }
  func.func @transform_1(%arg0: i32) -> (i32, i32, i32) {
    %c0_i32 = arith.constant 0 : i32
    %c0_i32_0 = arith.constant 0 : i32
    %c0_i32_1 = arith.constant 0 : i32
    %c0_i32_2 = arith.constant 0 : i32
    return %c0_i32, %c0_i32_0, %c0_i32_1 : i32, i32, i32
  }
  func.func @transform_2(%arg0: i32) -> (i32, i32, i32) {
    %c0_i32 = arith.constant 0 : i32
    %c0_i32_0 = arith.constant 0 : i32
    %c0_i32_1 = arith.constant 0 : i32
    %c0_i32_2 = arith.constant 0 : i32
    return %c0_i32, %c0_i32_0, %c0_i32_1 : i32, i32, i32
  }
  func.func @transform_3(%arg0: i32) -> (i32, i32, i32) {
    %c0_i32 = arith.constant 0 : i32
    %c0_i32_0 = arith.constant 0 : i32
    %c0_i32_1 = arith.constant 0 : i32
    %c0_i32_2 = arith.constant 0 : i32
    return %c0_i32, %c0_i32_0, %c0_i32_1 : i32, i32, i32
  }
  func.func @transform_4(%arg0: i32) -> (i32, i32, i32) {
    %c0_i32 = arith.constant 0 : i32
    %c0_i32_0 = arith.constant 0 : i32
    %c0_i32_1 = arith.constant 0 : i32
    %c0_i32_2 = arith.constant 0 : i32
    return %c0_i32, %c0_i32_0, %c0_i32_1 : i32, i32, i32
  }
  func.func @transform_5(%arg0: i32) -> (i32, i32, i32) {
    %c0_i32 = arith.constant 0 : i32
    %c0_i32_0 = arith.constant 0 : i32
    %c0_i32_1 = arith.constant 0 : i32
    %c0_i32_2 = arith.constant 0 : i32
    return %c0_i32, %c0_i32_0, %c0_i32_1 : i32, i32, i32
  }
  func.func @transform_6(%arg0: i32) -> (i32, i32, i32) {
    %c0_i32 = arith.constant 0 : i32
    %c0_i32_0 = arith.constant 0 : i32
    %c0_i32_1 = arith.constant 0 : i32
    %c0_i32_2 = arith.constant 0 : i32
    return %c0_i32, %c0_i32_0, %c0_i32_1 : i32, i32, i32
  }
  func.func @transform_7(%arg0: i32) -> (i32, i32) {
    %c0_i32 = arith.constant 0 : i32
    %c0_i32_0 = arith.constant 0 : i32
    %c0_i32_1 = arith.constant 0 : i32
    return %c0_i32, %c0_i32_0 : i32, i32
  }
  func.func @transform_8(%arg0: i32) -> (i32, i32) {
    %c0_i32 = arith.constant 0 : i32
    %c0_i32_0 = arith.constant 0 : i32
    %c0_i32_1 = arith.constant 0 : i32
    return %c0_i32, %c0_i32_0 : i32, i32
  }
  func.func @transform_9(%arg0: i32) -> (i32, i32) {
    %c0_i32 = arith.constant 0 : i32
    %c0_i32_0 = arith.constant 0 : i32
    %c0_i32_1 = arith.constant 0 : i32
    return %c0_i32, %c0_i32_0 : i32, i32
  }
  func.func @transform_10(%arg0: i32) -> (i32, i32) {
    %c0_i32 = arith.constant 0 : i32
    %c0_i32_0 = arith.constant 0 : i32
    %c0_i32_1 = arith.constant 0 : i32
    return %c0_i32, %c0_i32_0 : i32, i32
  }
  func.func @transform_11(%arg0: i32) -> (i32, i32) {
    %c0_i32 = arith.constant 0 : i32
    %c0_i32_0 = arith.constant 0 : i32
    %c0_i32_1 = arith.constant 0 : i32
    return %c0_i32, %c0_i32_0 : i32, i32
  }
  func.func @transform_12(%arg0: i32) -> i32 {
    %c0_i32 = arith.constant 0 : i32
    %c0_i32_0 = arith.constant 0 : i32
    return %c0_i32 : i32
  }
  func.func @transform_13(%arg0: i32) -> i32 {
    %c0_i32 = arith.constant 0 : i32
    %c0_i32_0 = arith.constant 0 : i32
    return %c0_i32 : i32
  }
  func.func @transform_14(%arg0: i32) -> (i32, i32) {
    %c0_i32 = arith.constant 0 : i32
    %c0_i32_0 = arith.constant 0 : i32
    %c0_i32_1 = arith.constant 0 : i32
    return %c0_i32, %c0_i32_0 : i32, i32
  }
  func.func @transform_15(%arg0: i32) -> (i32, i32, i32, i32) {
    %c0_i32 = arith.constant 0 : i32
    %c0_i32_0 = arith.constant 0 : i32
    %c0_i32_1 = arith.constant 0 : i32
    %c0_i32_2 = arith.constant 0 : i32
    %c0_i32_3 = arith.constant 0 : i32
    return %c0_i32, %c0_i32_0, %c0_i32_1, %c0_i32_2 : i32, i32, i32, i32
  }
}

</mosaic_0001>

<llo_original>
// kernel: forward.1
$region0: #{forward.1}
  #allocation0 [shape = 'u32[]', space=smem, size = 0x4, offset = 0x4, fixed_abs, tag = 'smem constant byte address 0x4 - core index']
  #allocation1 [shape = 'u32[144,128]{1,0:T(1,128)}', space=vmem, size = 0x12000, scoped, tag = 'internal scratch']
  #allocation2 [shape = 'f32[1]{0:T(128)S(6)}', space=smem, size = 0x200, scoped, tag = 'scoped memory for forward.1']
  %s0 = inlined_call_operand.vmem [shape: f32[64,32], index: 0, kind: input, shape index: {}]
  %s1 = inlined_call_operand.vmem [shape: f32[4,32,32], index: 1, kind: input, shape index: {}]
  %s2 = inlined_call_operand.vmem [shape: f32[4,1,32], index: 2, kind: input, shape index: {}]
  %s3 = inlined_call_operand.vmem [shape: f32[4,32,8], index: 3, kind: input, shape index: {}]
  %s4 = inlined_call_operand.vmem [shape: f32[4,1,8], index: 4, kind: input, shape index: {}]
  %s5 = inlined_call_operand.vmem [shape: f32[4,32,8], index: 5, kind: input, shape index: {}]
  %s6 = inlined_call_operand.vmem [shape: f32[4,1,8], index: 6, kind: input, shape index: {}]
  %s7 = inlined_call_operand.vmem [shape: f32[16,64], index: 7, kind: input, shape index: {}]
  %s8 = inlined_call_operand.vmem [shape: f32[64,64], index: 8, kind: input, shape index: {}]
  %s9 = inlined_call_operand.vmem [shape: f32[64,16], index: 9, kind: input, shape index: {}]
  %s10 = inlined_call_operand.vmem [shape: f32[16,64], index: 10, kind: input, shape index: {}]
  %s11 = inlined_call_operand.vmem [shape: f32[32,16], index: 11, kind: input, shape index: {}]
  %s12 = inlined_call_operand.vmem [shape: f32[4], index: 12, kind: input, shape index: {}]
  %s13 = inlined_call_operand.<no memory space> [shape: f32[1], index: 13, kind: input, shape index: {}]
  %s14 = inlined_call_operand.hbm [shape: f32[16,16], index: 14, kind: output, shape index: {0}]
  %s15 = inlined_call_operand.hbm [shape: f32[2,4,8,8], index: 15, kind: output, shape index: {1}]
  %16 = xla_tuple %s14, %s15
  %s17 = sld [smem:[#allocation0]]
  $region78: #{forward.1} parent=0
    _
  %s19 = ssub.s32 1, %s17
  %s20 = scalar_select 0, %s19, %s17
  %21 = sst [smem:[#allocation2]] %s13
  $region1: #{forward.1} parent=0
    #allocation3 [shape = 'u8[512]{0}', space=smem, size = 0x200, scoped, tag = 'input window, operand 12, single buffered']
    #allocation4 [shape = 's32[1]{0}', space=sflag, size = 0x4, scoped, tag = 'scoped memory for forward.1']
    #allocation5 [shape = 's32[1]{0}', space=sflag, size = 0x4, scoped, tag = 'scoped memory for forward.1']
    #allocation6 [shape = 'u8[8192]{0}', space=vmem, size = 0x2000, scoped, tag = 'output window, operand 0, single buffered']
    #allocation7 [shape = 'u8[32768]{0}', space=vmem, size = 0x8000, scoped, tag = 'output window, operand 1, single buffered']
    #allocation8 [shape = 's32[1]{0}', space=sflag, size = 0x4, scoped, tag = 'scoped memory for forward.1']
    %22 = vsyncpa [#allocation5], 0
    %23 = vsyncpa [#allocation4], 0
    %24 = vsyncpa [#allocation8], 0
    // Predicated region
    $region2: #{forward.1} parent=1 // pred_check
      _
    $region3: #{forward.1} parent=1 // pred_check_branch
      %26 = sbr.rel (0) target = $region5
    $region4: #{forward.1} parent=1 // pred_region
      _
    $region5: #{forward.1} parent=1 // pred_fallthru
      _
    // Predicated region
    $region6: #{forward.1} parent=1 // pred_check
      _
    $region7: #{forward.1} parent=1 // pred_check_branch
      %28 = sbr.rel (0) target = $region9
    $region8: #{forward.1} parent=1 // pred_region
      _
    $region9: #{forward.1} parent=1 // pred_fallthru
      _
    // Predicated region
    $region10: #{forward.1} parent=1 // pred_check
      _
    $region11: #{forward.1} parent=1 // pred_check_branch
      %30 = sbr.rel (0) target = $region13
    $region12: #{forward.1} parent=1 // pred_region
      _
    $region13: #{forward.1} parent=1 // pred_fallthru
      _
    // Predicated region
    $region14: #{forward.1} parent=1 // pred_check
      _
    $region15: #{forward.1} parent=1 // pred_check_branch
      %32 = sbr.rel (0) target = $region17
    $region16: #{forward.1} parent=1 // pred_region
      _
    $region17: #{forward.1} parent=1 // pred_fallthru
      _
    // Predicated region
    $region18: #{forward.1} parent=1 // pred_check
      _
    $region19: #{forward.1} parent=1 // pred_check_branch
      %34 = sbr.rel (0) target = $region21
    $region20: #{forward.1} parent=1 // pred_region
      _
    $region21: #{forward.1} parent=1 // pred_fallthru
      _
    // Predicated region
    $region22: #{forward.1} parent=1 // pred_check
      _
    $region23: #{forward.1} parent=1 // pred_check_branch
      %36 = sbr.rel (0) target = $region25
    $region24: #{forward.1} parent=1 // pred_region
      _
    $region25: #{forward.1} parent=1 // pred_fallthru
      _
    // Predicated region
    $region26: #{forward.1} parent=1 // pred_check
      _
    $region27: #{forward.1} parent=1 // pred_check_branch
      %38 = sbr.rel (0) target = $region29
    $region28: #{forward.1} parent=1 // pred_region
      _
    $region29: #{forward.1} parent=1 // pred_fallthru
      _
    // Predicated region
    $region30: #{forward.1} parent=1 // pred_check
      _
    $region31: #{forward.1} parent=1 // pred_check_branch
      %40 = sbr.rel (0) target = $region33
    $region32: #{forward.1} parent=1 // pred_region
      _
    $region33: #{forward.1} parent=1 // pred_fallthru
      _
    // Predicated region
    $region34: #{forward.1} parent=1 // pred_check
      _
    $region35: #{forward.1} parent=1 // pred_check_branch
      %42 = sbr.rel (0) target = $region37
    $region36: #{forward.1} parent=1 // pred_region
      _
    $region37: #{forward.1} parent=1 // pred_fallthru
      _
    // Predicated region
    $region38: #{forward.1} parent=1 // pred_check
      _
    $region39: #{forward.1} parent=1 // pred_check_branch
      %44 = sbr.rel (0) target = $region41
    $region40: #{forward.1} parent=1 // pred_region
      _
    $region41: #{forward.1} parent=1 // pred_fallthru
      _
    // Predicated region
    $region42: #{forward.1} parent=1 // pred_check
      _
    $region43: #{forward.1} parent=1 // pred_check_branch
      %46 = sbr.rel (0) target = $region45
    $region44: #{forward.1} parent=1 // pred_region
      _
    $region45: #{forward.1} parent=1 // pred_fallthru
      _
    // Predicated region
    $region46: #{forward.1} parent=1 // pred_check
      _
    $region47: #{forward.1} parent=1 // pred_check_branch
      %48 = sbr.rel (0) target = $region49
    $region48: #{forward.1} parent=1 // pred_region
      _
    $region49: #{forward.1} parent=1 // pred_fallthru
      _
    // Predicated region
    $region50: #{forward.1} parent=1 // pred_check
      _
    $region51: #{forward.1} parent=1 // pred_check_branch
      %50 = sbr.rel (0) target = $region53
    $region52: #{forward.1} parent=1 // pred_region
      %s52 = ssub.s32 16, 16
      %53 = vsyncadd [#allocation5], %s52
      %s55 = sshll.u32 %s12, 4
      %s56 = int_to_ptr.vmem [resolvable:$true] %s55
      %58 = dma.vmem_to_smem %s56, 16, [#allocation3], [#allocation5]
    $region53: #{forward.1} parent=1 // pred_fallthru
      _
    // Predicated region
    $region54: #{forward.1} parent=1 // pred_check
      _
    $region55: #{forward.1} parent=1 // pred_check_branch
      %60 = sbr.rel (0) target = $region57
    $region56: #{forward.1} parent=1 // pred_region
      _
    $region57: #{forward.1} parent=1 // pred_fallthru
      _
    // Predicated region
    $region58: #{forward.1} parent=1 // pred_check
      _
    $region59: #{forward.1} parent=1 // pred_check_branch
      %62 = sbr.rel (0) target = $region61
    $region60: #{forward.1} parent=1 // pred_region
      %63 = dma.done [#allocation5], 16
    $region61: #{forward.1} parent=1 // pred_fallthru
      _
    %64 = sfence
    %v65 = vld [vmem:[%s0] sm:$0xff]
    %v66 = vld [vmem:[%s0 + $0x8] sm:$0xff]
    %v67 = vld [vmem:[%s0 + $0x10] sm:$0xff]
    %v68 = vld [vmem:[%s0 + $0x18] sm:$0xff]
    %v69 = vld [vmem:[%s0 + $0x20] sm:$0xff]
    %v70 = vld [vmem:[%s0 + $0x28] sm:$0xff]
    %v71 = vld [vmem:[%s0 + $0x30] sm:$0xff]
    %v72 = vld [vmem:[%s0 + $0x38] sm:$0xff]
    %v73 = vld [vmem:[%s1] sm:$0xff]
    %v74 = vld [vmem:[%s1 + $0x8] sm:$0xff]
    %v75 = vld [vmem:[%s1 + $0x10] sm:$0xff]
    %v76 = vld [vmem:[%s1 + $0x18] sm:$0xff]
    %v77 = vld [vmem:[%s2] sm:$0x1]
    %v79 = vlaneseq
    %v80 = vshrl.u32 %v79, 7
    %v81 = vsub.s32 0, %v80
    %v82 = vrot.slane %v77, %v81
    %vm84 = vcmask 261120
    %v86 = vsel %vm84, %v65, 0
    %v89 = vsel %vm84, %v66, 0
    %v92 = vsel %vm84, %v67, 0
    %v95 = vsel %vm84, %v68, 0
    %v98 = vsel %vm84, %v69, 0
    %v101 = vsel %vm84, %v70, 0
    %v104 = vsel %vm84, %v71, 0
    %v107 = vsel %vm84, %v72, 0
    %109 = vmatprep.subr.mxu0 0.0
    %110 = vmatpush1.msra.mxu0 %v73
    %111 = vmatprep.subr.mxu0 0.0
    %112 = vmatpush1.msra.mxu0 %v74
    %113 = vmatprep.subr.mxu0 0.0
    %114 = vmatpush1.msra.mxu0 %v75
    %115 = vmatprep.subr.mxu0 0.0
    %116 = vmatpush1.msra.mxu0 %v76
    %117 = vmatprep.subr.mxu0 0.0
    %118 = vmatpush1.msra.mxu0 0.0
    %119 = vmatprep.subr.mxu0 0.0
    %120 = vmatpush1.msra.mxu0 0.0
    %121 = vmatprep.subr.mxu0 0.0
    %122 = vmatpush1.msra.mxu0 0.0
    %123 = vmatprep.subr.mxu0 0.0
    %124 = vmatpush1.msra.mxu0 0.0
    %125 = vmatprep.subr.mxu0 0.0
    %126 = vmatpush1.msra.mxu0 0.0
    %127 = vmatprep.subr.mxu0 0.0
    %128 = vmatpush1.msra.mxu0 0.0
    %129 = vmatprep.subr.mxu0 0.0
    %130 = vmatpush1.msra.mxu0 0.0
    %131 = vmatprep.subr.mxu0 0.0
    %132 = vmatpush1.msra.mxu0 0.0
    %133 = vmatprep.subr.mxu0 0.0
    %134 = vmatpush1.msra.mxu0 0.0
    %135 = vmatprep.subr.mxu0 0.0
    %136 = vmatpush1.msra.mxu0 0.0
    %137 = vmatprep.subr.mxu0 0.0
    %138 = vmatpush1.msra.mxu0 0.0
    %139 = vmatprep.subr.mxu0 0.0
    %140 = vmatpush1.msra.mxu0 0.0
    %141 = vmatprep.subr.mxu0 0.0
    %142 = vmatpush1.msra.mxu0 0.0
    %143 = vmatprep.subr.mxu0 0.0
    %144 = vmatpush1.msra.mxu0 0.0
    %145 = vmatprep.subr.mxu0 0.0
    %146 = vmatpush1.msra.mxu0 0.0
    %147 = vmatprep.subr.mxu0 0.0
    %148 = vmatpush1.msra.mxu0 0.0
    %149 = vmatprep.subr.mxu0 0.0
    %150 = vmatpush1.msra.mxu0 0.0
    %151 = vmatprep.subr.mxu0 0.0
    %152 = vmatpush1.msra.mxu0 0.0
    %153 = vmatprep.subr.mxu0 0.0
    %154 = vmatpush1.msra.mxu0 0.0
    %155 = vmatprep.subr.mxu0 0.0
    %156 = vmatpush1.msra.mxu0 0.0
    %157 = vmatprep.subr.mxu0 0.0
    %158 = vmatpush1.msra.mxu0 0.0
    %159 = vmatprep.subr.mxu0 0.0
    %160 = vmatpush1.msra.mxu0 0.0
    %161 = vmatprep.subr.mxu0 0.0
    %162 = vmatpush1.msra.mxu0 0.0
    %163 = vmatprep.subr.mxu0 0.0
    %164 = vmatpush1.msra.mxu0 0.0
    %165 = vmatprep.subr.mxu0 0.0
    %166 = vmatpush1.msra.mxu0 0.0
    %167 = vmatprep.subr.mxu0 0.0
    %168 = vmatpush1.msra.mxu0 0.0
    %169 = vmatprep.subr.mxu0 0.0
    %170 = vmatpush1.msra.mxu0 0.0
    %171 = vmatprep.subr.mxu0 0.0
    %172 = vmatpush1.msra.mxu0 0.0
    %173 = vmatprep.mubr.f32.mxu0 0.0
    %174 = vmatmul.mubr.f32.gmra.mrb[0].mxu0 %v86
    %v175 = vpop.f32.mrb[0].mxu0
    %v176 = vadd.f32 %v82, %v175
    %v177 = vpop.f32.mrb[0].mxu0
    %178 = vmatprep.mubr.f32.mxu0 0.0
    %179 = vmatmul.mubr.f32.gmra.mrb[0].mxu0 %v89
    %v180 = vpop.f32.mrb[0].mxu0
    %v181 = vadd.f32 %v82, %v180
    %v182 = vpop.f32.mrb[0].mxu0
    %183 = vmatprep.mubr.f32.mxu0 0.0
    %184 = vmatmul.mubr.f32.gmra.mrb[0].mxu0 %v92
    %v185 = vpop.f32.mrb[0].mxu0
    %v186 = vadd.f32 %v82, %v185
    %v187 = vpop.f32.mrb[0].mxu0
    %188 = vmatprep.mubr.f32.mxu0 0.0
    %189 = vmatmul.mubr.f32.gmra.mrb[0].mxu0 %v95
    %v190 = vpop.f32.mrb[0].mxu0
    %v191 = vadd.f32 %v82, %v190
    %v192 = vpop.f32.mrb[0].mxu0
    %193 = vmatprep.mubr.f32.mxu0 0.0
    %194 = vmatmul.mubr.f32.gmra.mrb[0].mxu0 %v98
    %v195 = vpop.f32.mrb[0].mxu0
    %v196 = vadd.f32 %v82, %v195
    %v197 = vpop.f32.mrb[0].mxu0
    %198 = vmatprep.mubr.f32.mxu0 0.0
    %199 = vmatmul.mubr.f32.gmra.mrb[0].mxu0 %v101
    %v200 = vpop.f32.mrb[0].mxu0
    %v201 = vadd.f32 %v82, %v200
    %v202 = vpop.f32.mrb[0].mxu0
    %203 = vmatprep.mubr.f32.mxu0 0.0
    %204 = vmatmul.mubr.f32.gmra.mrb[0].mxu0 %v104
    %v205 = vpop.f32.mrb[0].mxu0
    %v206 = vadd.f32 %v82, %v205
    %v207 = vpop.f32.mrb[0].mxu0
    %208 = vmatprep.mubr.f32.mxu0 0.0
    %209 = vmatmul.mubr.f32.gmra.mrb[0].mxu0 %v107
    %v210 = vpop.f32.mrb[0].mxu0
    %v211 = vadd.f32 %v82, %v210
    %v212 = vpop.f32.mrb[0].mxu0
    %213 = vdwg.mxu0
    %v214 = vtanh.pop %v176
    %v215 = vtanh.pop %v181
    %v216 = vtanh.pop %v186
    %v217 = vtanh.pop %v191
    %v218 = vtanh.pop %v196
    %v219 = vtanh.pop %v201
    %v220 = vtanh.pop %v206
    %v221 = vtanh.pop %v211
    %s222 = sld [smem:[#allocation3]]
    %v223 = vstv %s222
    %v224 = vmul.f32 %v223, %v214
    %v225 = vmul.f32 %v223, %v215
    %v226 = vmul.f32 %v223, %v216
    %v227 = vmul.f32 %v223, %v217
    %v228 = vmul.f32 %v223, %v218
    %v229 = vmul.f32 %v223, %v219
    %v230 = vmul.f32 %v223, %v220
    %v231 = vmul.f32 %v223, %v221
    %v232 = vadd.f32 %v224, 0.0
    %v233 = vadd.f32 %v225, 0.0
    %v234 = vadd.f32 %v226, 0.0
    %v235 = vadd.f32 %v227, 0.0
    %v236 = vadd.f32 %v228, 0.0
    %v237 = vadd.f32 %v229, 0.0
    %v238 = vadd.f32 %v230, 0.0
    %v239 = vadd.f32 %v231, 0.0
    %s240 = scalar_lea.vmem %s1, 32
    %v241 = vld [vmem:[%s240] sm:$0xff]
    %v242 = vld [vmem:[%s240 + $0x8] sm:$0xff]
    %v243 = vld [vmem:[%s240 + $0x10] sm:$0xff]
    %v244 = vld [vmem:[%s240 + $0x18] sm:$0xff]
    %s245 = scalar_lea.vmem %s2, 1
    %v246 = vld [vmem:[%s245] sm:$0x1]
    %v248 = vlaneseq
    %v249 = vshrl.u32 %v248, 7
    %v250 = vsub.s32 0, %v249
    %v251 = vrot.slane %v246, %v250
    %v254 = vsel %vm84, %v214, 0
    %v257 = vsel %vm84, %v215, 0
    %v260 = vsel %vm84, %v216, 0
    %v263 = vsel %vm84, %v217, 0
    %v266 = vsel %vm84, %v218, 0
    %v269 = vsel %vm84, %v219, 0
    %v272 = vsel %vm84, %v220, 0
    %v275 = vsel %vm84, %v221, 0
    %277 = vmatprep.subr.mxu0 0.0
    %278 = vmatpush1.msra.mxu0 %v241
    %279 = vmatprep.subr.mxu0 0.0
    %280 = vmatpush1.msra.mxu0 %v242
    %281 = vmatprep.subr.mxu0 0.0
    %282 = vmatpush1.msra.mxu0 %v243
    %283 = vmatprep.subr.mxu0 0.0
    %284 = vmatpush1.msra.mxu0 %v244
    %285 = vmatprep.subr.mxu0 0.0
    %286 = vmatpush1.msra.mxu0 0.0
    %287 = vmatprep.subr.mxu0 0.0
    %288 = vmatpush1.msra.mxu0 0.0
    %289 = vmatprep.subr.mxu0 0.0
    %290 = vmatpush1.msra.mxu0 0.0
    %291 = vmatprep.subr.mxu0 0.0
    %292 = vmatpush1.msra.mxu0 0.0
    %293 = vmatprep.subr.mxu0 0.0
    %294 = vmatpush1.msra.mxu0 0.0
    %295 = vmatprep.subr.mxu0 0.0
    %296 = vmatpush1.msra.mxu0 0.0
    %297 = vmatprep.subr.mxu0 0.0
    %298 = vmatpush1.msra.mxu0 0.0
    %299 = vmatprep.subr.mxu0 0.0
    %300 = vmatpush1.msra.mxu0 0.0
    %301 = vmatprep.subr.mxu0 0.0
    %302 = vmatpush1.msra.mxu0 0.0
    %303 = vmatprep.subr.mxu0 0.0
    %304 = vmatpush1.msra.mxu0 0.0
    %305 = vmatprep.subr.mxu0 0.0
    %306 = vmatpush1.msra.mxu0 0.0
    %307 = vmatprep.subr.mxu0 0.0
    %308 = vmatpush1.msra.mxu0 0.0
    %309 = vmatprep.subr.mxu0 0.0
    %310 = vmatpush1.msra.mxu0 0.0
    %311 = vmatprep.subr.mxu0 0.0
    %312 = vmatpush1.msra.mxu0 0.0
    %313 = vmatprep.subr.mxu0 0.0
    %314 = vmatpush1.msra.mxu0 0.0
    %315 = vmatprep.subr.mxu0 0.0
    %316 = vmatpush1.msra.mxu0 0.0
    %317 = vmatprep.subr.mxu0 0.0
    %318 = vmatpush1.msra.mxu0 0.0
    %319 = vmatprep.subr.mxu0 0.0
    %320 = vmatpush1.msra.mxu0 0.0
    %321 = vmatprep.subr.mxu0 0.0
    %322 = vmatpush1.msra.mxu0 0.0
    %323 = vmatprep.subr.mxu0 0.0
    %324 = vmatpush1.msra.mxu0 0.0
    %325 = vmatprep.subr.mxu0 0.0
    %326 = vmatpush1.msra.mxu0 0.0
    %327 = vmatprep.subr.mxu0 0.0
    %328 = vmatpush1.msra.mxu0 0.0
    %329 = vmatprep.subr.mxu0 0.0
    %330 = vmatpush1.msra.mxu0 0.0
    %331 = vmatprep.subr.mxu0 0.0
    %332 = vmatpush1.msra.mxu0 0.0
    %333 = vmatprep.subr.mxu0 0.0
    %334 = vmatpush1.msra.mxu0 0.0
    %335 = vmatprep.subr.mxu0 0.0
    %336 = vmatpush1.msra.mxu0 0.0
    %337 = vmatprep.subr.mxu0 0.0
    %338 = vmatpush1.msra.mxu0 0.0
    %339 = vmatprep.subr.mxu0 0.0
    %340 = vmatpush1.msra.mxu0 0.0
    %341 = vmatprep.mubr.f32.mxu0 0.0
    %342 = vmatmul.mubr.f32.gmra.mrb[0].mxu0 %v254
    %v343 = vpop.f32.mrb[0].mxu0
    %v344 = vadd.f32 %v251, %v343
    %v345 = vpop.f32.mrb[0].mxu0
    %346 = vmatprep.mubr.f32.mxu0 0.0
    %347 = vmatmul.mubr.f32.gmra.mrb[0].mxu0 %v257
    %v348 = vpop.f32.mrb[0].mxu0
    %v349 = vadd.f32 %v251, %v348
    %v350 = vpop.f32.mrb[0].mxu0
    %351 = vmatprep.mubr.f32.mxu0 0.0
    %352 = vmatmul.mubr.f32.gmra.mrb[0].mxu0 %v260
    %v353 = vpop.f32.mrb[0].mxu0
    %v354 = vadd.f32 %v251, %v353
    %v355 = vpop.f32.mrb[0].mxu0
    %356 = vmatprep.mubr.f32.mxu0 0.0
    %357 = vmatmul.mubr.f32.gmra.mrb[0].mxu0 %v263
    %v358 = vpop.f32.mrb[0].mxu0
    %v359 = vadd.f32 %v251, %v358
    %v360 = vpop.f32.mrb[0].mxu0
    %361 = vmatprep.mubr.f32.mxu0 0.0
    %362 = vmatmul.mubr.f32.gmra.mrb[0].mxu0 %v266
    %v363 = vpop.f32.mrb[0].mxu0
    %v364 = vadd.f32 %v251, %v363
    %v365 = vpop.f32.mrb[0].mxu0
    %366 = vmatprep.mubr.f32.mxu0 0.0
    %367 = vmatmul.mubr.f32.gmra.mrb[0].mxu0 %v269
    %v368 = vpop.f32.mrb[0].mxu0
    %v369 = vadd.f32 %v251, %v368
    %v370 = vpop.f32.mrb[0].mxu0
    %371 = vmatprep.mubr.f32.mxu0 0.0
    %372 = vmatmul.mubr.f32.gmra.mrb[0].mxu0 %v272
    %v373 = vpop.f32.mrb[0].mxu0
    %v374 = vadd.f32 %v251, %v373
    %v375 = vpop.f32.mrb[0].mxu0
    %376 = vmatprep.mubr.f32.mxu0 0.0
    %377 = vmatmul.mubr.f32.gmra.mrb[0].mxu0 %v275
    %v378 = vpop.f32.mrb[0].mxu0
    %v379 = vadd.f32 %v251, %v378
    %v380 = vpop.f32.mrb[0].mxu0
    %381 = vdwg.mxu0
    %v382 = vtanh.pop %v344
    %v383 = vtanh.pop %v349
    %v384 = vtanh.pop %v354
    %v385 = vtanh.pop %v359
    %v386 = vtanh.pop %v364
    %v387 = vtanh.pop %v369
    %v388 = vtanh.pop %v374
    %v389 = vtanh.pop %v379
    %s390 = sld [smem:[#allocation3 + $0x1]]
    %v391 = vstv %s390
    %v392 = vmul.f32 %v391, %v382
    %v393 = vmul.f32 %v391, %v383
    %v394 = vmul.f32 %v391, %v384
    %v395 = vmul.f32 %v391, %v385
    %v396 = vmul.f32 %v391, %v386
    %v397 = vmul.f32 %v391, %v387
    %v398 = vmul.f32 %v391, %v388
    %v399 = vmul.f32 %v391, %v389
    %v400 = vadd.f32 %v232, %v392
    %v401 = vadd.f32 %v233, %v393
    %v402 = vadd.f32 %v234, %v394
    %v403 = vadd.f32 %v235, %v395
    %v404 = vadd.f32 %v236, %v396
    %v405 = vadd.f32 %v237, %v397
    %v406 = vadd.f32 %v238, %v398
    %v407 = vadd.f32 %v239, %v399
    %s408 = scalar_lea.vmem %s1, 64
    %v409 = vld [vmem:[%s408] sm:$0xff]
    %v410 = vld [vmem:[%s408 + $0x8] sm:$0xff]
    %v411 = vld [vmem:[%s408 + $0x10] sm:$0xff]
    %v412 = vld [vmem:[%s408 + $0x18] sm:$0xff]
    %s413 = scalar_lea.vmem %s2, 2
    %v414 = vld [vmem:[%s413] sm:$0x1]
    %v416 = vlaneseq
    %v417 = vshrl.u32 %v416, 7
    %v418 = vsub.s32 0, %v417
    %v419 = vrot.slane %v414, %v418
    %v422 = vsel %vm84, %v382, 0
    %v425 = vsel %vm84, %v383, 0
    %v428 = vsel %vm84, %v384, 0
    %v431 = vsel %vm84, %v385, 0
    %v434 = vsel %vm84, %v386, 0
    %v437 = vsel %vm84, %v387, 0
    %v440 = vsel %vm84, %v388, 0
    %v443 = vsel %vm84, %v389, 0
    %445 = vmatprep.subr.mxu0 0.0
    %446 = vmatpush1.msra.mxu0 %v409
    %447 = vmatprep.subr.mxu0 0.0
    %448 = vmatpush1.msra.mxu0 %v410
    %449 = vmatprep.subr.mxu0 0.0
    %450 = vmatpush1.msra.mxu0 %v411
    %451 = vmatprep.subr.mxu0 0.0
    %452 = vmatpush1.msra.mxu0 %v412
    %453 = vmatprep.subr.mxu0 0.0
    %454 = vmatpush1.msra.mxu0 0.0
    %455 = vmatprep.subr.mxu0 0.0
    %456 = vmatpush1.msra.mxu0 0.0
    %457 = vmatprep.subr.mxu0 0.0
    %458 = vmatpush1.msra.mxu0 0.0
    %459 = vmatprep.subr.mxu0 0.0
    %460 = vmatpush1.msra.mxu0 0.0
    %461 = vmatprep.subr.mxu0 0.0
    %462 = vmatpush1.msra.mxu0 0.0
    %463 = vmatprep.subr.mxu0 0.0
    %464 = vmatpush1.msra.mxu0 0.0
    %465 = vmatprep.subr.mxu0 0.0
    %466 = vmatpush1.msra.mxu0 0.0
    %467 = vmatprep.subr.mxu0 0.0
    %468 = vmatpush1.msra.mxu0 0.0
    %469 = vmatprep.subr.mxu0 0.0
    %470 = vmatpush1.msra.mxu0 0.0
    %471 = vmatprep.subr.mxu0 0.0
    %472 = vmatpush1.msra.mxu0 0.0
    %473 = vmatprep.subr.mxu0 0.0
    %474 = vmatpush1.msra.mxu0 0.0
    %475 = vmatprep.subr.mxu0 0.0
    %476 = vmatpush1.msra.mxu0 0.0
    %477 = vmatprep.subr.mxu0 0.0
    %478 = vmatpush1.msra.mxu0 0.0
    %479 = vmatprep.subr.mxu0 0.0
    %480 = vmatpush1.msra.mxu0 0.0
    %481 = vmatprep.subr.mxu0 0.0
    %482 = vmatpush1.msra.mxu0 0.0
    %483 = vmatprep.subr.mxu0 0.0
    %484 = vmatpush1.msra.mxu0 0.0
    %485 = vmatprep.subr.mxu0 0.0
    %486 = vmatpush1.msra.mxu0 0.0
    %487 = vmatprep.subr.mxu0 0.0
    %488 = vmatpush1.msra.mxu0 0.0
    %489 = vmatprep.subr.mxu0 0.0
    %490 = vmatpush1.msra.mxu0 0.0
    %491 = vmatprep.subr.mxu0 0.0
    %492 = vmatpush1.msra.mxu0 0.0
    %493 = vmatprep.subr.mxu0 0.0
    %494 = vmatpush1.msra.mxu0 0.0
    %495 = vmatprep.subr.mxu0 0.0
    %496 = vmatpush1.msra.mxu0 0.0
    %497 = vmatprep.subr.mxu0 0.0
    %498 = vmatpush1.msra.mxu0 0.0
    %499 = vmatprep.subr.mxu0 0.0
    %500 = vmatpush1.msra.mxu0 0.0
    %501 = vmatprep.subr.mxu0 0.0
    %502 = vmatpush1.msra.mxu0 0.0
    %503 = vmatprep.subr.mxu0 0.0
    %504 = vmatpush1.msra.mxu0 0.0
    %505 = vmatprep.subr.mxu0 0.0
    %506 = vmatpush1.msra.mxu0 0.0
    %507 = vmatprep.subr.mxu0 0.0
    %508 = vmatpush1.msra.mxu0 0.0
    %509 = vmatprep.mubr.f32.mxu0 0.0
    %510 = vmatmul.mubr.f32.gmra.mrb[0].mxu0 %v422
    %v511 = vpop.f32.mrb[0].mxu0
    %v512 = vadd.f32 %v419, %v511
    %v513 = vpop.f32.mrb[0].mxu0
    %514 = vmatprep.mubr.f32.mxu0 0.0
    %515 = vmatmul.mubr.f32.gmra.mrb[0].mxu0 %v425
    %v516 = vpop.f32.mrb[0].mxu0
    %v517 = vadd.f32 %v419, %v516
    %v518 = vpop.f32.mrb[0].mxu0
    %519 = vmatprep.mubr.f32.mxu0 0.0
    %520 = vmatmul.mubr.f32.gmra.mrb[0].mxu0 %v428
    %v521 = vpop.f32.mrb[0].mxu0
    %v522 = vadd.f32 %v419, %v521
    %v523 = vpop.f32.mrb[0].mxu0
    %524 = vmatprep.mubr.f32.mxu0 0.0
    %525 = vmatmul.mubr.f32.gmra.mrb[0].mxu0 %v431
    %v526 = vpop.f32.mrb[0].mxu0
    %v527 = vadd.f32 %v419, %v526
    %v528 = vpop.f32.mrb[0].mxu0
    %529 = vmatprep.mubr.f32.mxu0 0.0
    %530 = vmatmul.mubr.f32.gmra.mrb[0].mxu0 %v434
    %v531 = vpop.f32.mrb[0].mxu0
    %v532 = vadd.f32 %v419, %v531
    %v533 = vpop.f32.mrb[0].mxu0
    %534 = vmatprep.mubr.f32.mxu0 0.0
    %535 = vmatmul.mubr.f32.gmra.mrb[0].mxu0 %v437
    %v536 = vpop.f32.mrb[0].mxu0
    %v537 = vadd.f32 %v419, %v536
    %v538 = vpop.f32.mrb[0].mxu0
    %539 = vmatprep.mubr.f32.mxu0 0.0
    %540 = vmatmul.mubr.f32.gmra.mrb[0].mxu0 %v440
    %v541 = vpop.f32.mrb[0].mxu0
    %v542 = vadd.f32 %v419, %v541
    %v543 = vpop.f32.mrb[0].mxu0
    %544 = vmatprep.mubr.f32.mxu0 0.0
    %545 = vmatmul.mubr.f32.gmra.mrb[0].mxu0 %v443
    %v546 = vpop.f32.mrb[0].mxu0
    %v547 = vadd.f32 %v419, %v546
    %v548 = vpop.f32.mrb[0].mxu0
    %549 = vdwg.mxu0
    %v550 = vtanh.pop %v512
    %v551 = vtanh.pop %v517
    %v552 = vtanh.pop %v522
    %v553 = vtanh.pop %v527
    %v554 = vtanh.pop %v532
    %v555 = vtanh.pop %v537
    %v556 = vtanh.pop %v542
    %v557 = vtanh.pop %v547
    %s558 = sld [smem:[#allocation3 + $0x2]]
    %v559 = vstv %s558
    %v560 = vmul.f32 %v559, %v550
    %v561 = vmul.f32 %v559, %v551
    %v562 = vmul.f32 %v559, %v552
    %v563 = vmul.f32 %v559, %v553
    %v564 = vmul.f32 %v559, %v554
    %v565 = vmul.f32 %v559, %v555
    %v566 = vmul.f32 %v559, %v556
    %v567 = vmul.f32 %v559, %v557
    %v568 = vadd.f32 %v400, %v560
    %v569 = vadd.f32 %v401, %v561
    %v570 = vadd.f32 %v402, %v562
    %v571 = vadd.f32 %v403, %v563
    %v572 = vadd.f32 %v404, %v564
    %v573 = vadd.f32 %v405, %v565
    %v574 = vadd.f32 %v406, %v566
    %v575 = vadd.f32 %v407, %v567
    %s576 = scalar_lea.vmem %s1, 96
    %v577 = vld [vmem:[%s576] sm:$0xff]
    %v578 = vld [vmem:[%s576 + $0x8] sm:$0xff]
    %v579 = vld [vmem:[%s576 + $0x10] sm:$0xff]
    %v580 = vld [vmem:[%s576 + $0x18] sm:$0xff]
    %s581 = scalar_lea.vmem %s2, 3
    %v582 = vld [vmem:[%s581] sm:$0x1]
    %v584 = vlaneseq
    %v585 = vshrl.u32 %v584, 7
    %v586 = vsub.s32 0, %v585
    %v587 = vrot.slane %v582, %v586
    %v590 = vsel %vm84, %v550, 0
    %v593 = vsel %vm84, %v551, 0
    %v596 = vsel %vm84, %v552, 0
    %v599 = vsel %vm84, %v553, 0
    %v602 = vsel %vm84, %v554, 0
    %v605 = vsel %vm84, %v555, 0
    %v608 = vsel %vm84, %v556, 0
    %v611 = vsel %vm84, %v557, 0
    %613 = vmatprep.subr.mxu0 0.0
    %614 = vmatpush1.msra.mxu0 %v577
    %615 = vmatprep.subr.mxu0 0.0
    %616 = vmatpush1.msra.mxu0 %v578
    %617 = vmatprep.subr.mxu0 0.0
    %618 = vmatpush1.msra.mxu0 %v579
    %619 = vmatprep.subr.mxu0 0.0
    %620 = vmatpush1.msra.mxu0 %v580
    %621 = vmatprep.subr.mxu0 0.0
    %622 = vmatpush1.msra.mxu0 0.0
    %623 = vmatprep.subr.mxu0 0.0
    %624 = vmatpush1.msra.mxu0 0.0
    %625 = vmatprep.subr.mxu0 0.0
    %626 = vmatpush1.msra.mxu0 0.0
    %627 = vmatprep.subr.mxu0 0.0
    %628 = vmatpush1.msra.mxu0 0.0
    %629 = vmatprep.subr.mxu0 0.0
    %630 = vmatpush1.msra.mxu0 0.0
    %631 = vmatprep.subr.mxu0 0.0
    %632 = vmatpush1.msra.mxu0 0.0
    %633 = vmatprep.subr.mxu0 0.0
    %634 = vmatpush1.msra.mxu0 0.0
    %635 = vmatprep.subr.mxu0 0.0
    %636 = vmatpush1.msra.mxu0 0.0
    %637 = vmatprep.subr.mxu0 0.0
    %638 = vmatpush1.msra.mxu0 0.0
    %639 = vmatprep.subr.mxu0 0.0
    %640 = vmatpush1.msra.mxu0 0.0
    %641 = vmatprep.subr.mxu0 0.0
    %642 = vmatpush1.msra.mxu0 0.0
    %643 = vmatprep.subr.mxu0 0.0
    %644 = vmatpush1.msra.mxu0 0.0
    %645 = vmatprep.subr.mxu0 0.0
    %646 = vmatpush1.msra.mxu0 0.0
    %647 = vmatprep.subr.mxu0 0.0
    %648 = vmatpush1.msra.mxu0 0.0
    %649 = vmatprep.subr.mxu0 0.0
    %650 = vmatpush1.msra.mxu0 0.0
    %651 = vmatprep.subr.mxu0 0.0
    %652 = vmatpush1.msra.mxu0 0.0
    %653 = vmatprep.subr.mxu0 0.0
    %654 = vmatpush1.msra.mxu0 0.0
    %655 = vmatprep.subr.mxu0 0.0
    %656 = vmatpush1.msra.mxu0 0.0
    %657 = vmatprep.subr.mxu0 0.0
    %658 = vmatpush1.msra.mxu0 0.0
    %659 = vmatprep.subr.mxu0 0.0
    %660 = vmatpush1.msra.mxu0 0.0
    %661 = vmatprep.subr.mxu0 0.0
    %662 = vmatpush1.msra.mxu0 0.0
    %663 = vmatprep.subr.mxu0 0.0
    %664 = vmatpush1.msra.mxu0 0.0
    %665 = vmatprep.subr.mxu0 0.0
    %666 = vmatpush1.msra.mxu0 0.0
    %667 = vmatprep.subr.mxu0 0.0
    %668 = vmatpush1.msra.mxu0 0.0
    %669 = vmatprep.subr.mxu0 0.0
    %670 = vmatpush1.msra.mxu0 0.0
    %671 = vmatprep.subr.mxu0 0.0
    %672 = vmatpush1.msra.mxu0 0.0
    %673 = vmatprep.subr.mxu0 0.0
    %674 = vmatpush1.msra.mxu0 0.0
    %675 = vmatprep.subr.mxu0 0.0
    %676 = vmatpush1.msra.mxu0 0.0
    %677 = vmatprep.mubr.f32.mxu0 0.0
    %678 = vmatmul.mubr.f32.gmra.mrb[0].mxu0 %v590
    %v679 = vpop.f32.mrb[0].mxu0
    %v680 = vadd.f32 %v587, %v679
    %v681 = vpop.f32.mrb[0].mxu0
    %682 = vmatprep.mubr.f32.mxu0 0.0
    %683 = vmatmul.mubr.f32.gmra.mrb[0].mxu0 %v593
    %v684 = vpop.f32.mrb[0].mxu0
    %v685 = vadd.f32 %v587, %v684
    %v686 = vpop.f32.mrb[0].mxu0
    %687 = vmatprep.mubr.f32.mxu0 0.0
    %688 = vmatmul.mubr.f32.gmra.mrb[0].mxu0 %v596
    %v689 = vpop.f32.mrb[0].mxu0
    %v690 = vadd.f32 %v587, %v689
    %v691 = vpop.f32.mrb[0].mxu0
    %692 = vmatprep.mubr.f32.mxu0 0.0
    %693 = vmatmul.mubr.f32.gmra.mrb[0].mxu0 %v599
    %v694 = vpop.f32.mrb[0].mxu0
    %v695 = vadd.f32 %v587, %v694
    %v696 = vpop.f32.mrb[0].mxu0
    %697 = vmatprep.mubr.f32.mxu0 0.0
    %698 = vmatmul.mubr.f32.gmra.mrb[0].mxu0 %v602
    %v699 = vpop.f32.mrb[0].mxu0
    %v700 = vadd.f32 %v587, %v699
    %v701 = vpop.f32.mrb[0].mxu0
    %702 = vmatprep.mubr.f32.mxu0 0.0
    %703 = vmatmul.mubr.f32.gmra.mrb[0].mxu0 %v605
    %v704 = vpop.f32.mrb[0].mxu0
    %v705 = vadd.f32 %v587, %v704
    %v706 = vpop.f32.mrb[0].mxu0
    %707 = vmatprep.mubr.f32.mxu0 0.0
    %708 = vmatmul.mubr.f32.gmra.mrb[0].mxu0 %v608
    %v709 = vpop.f32.mrb[0].mxu0
    %v710 = vadd.f32 %v587, %v709
    %v711 = vpop.f32.mrb[0].mxu0
    %712 = vmatprep.mubr.f32.mxu0 0.0
    %713 = vmatmul.mubr.f32.gmra.mrb[0].mxu0 %v611
    %v714 = vpop.f32.mrb[0].mxu0
    %v715 = vadd.f32 %v587, %v714
    %v716 = vpop.f32.mrb[0].mxu0
    %717 = vdwg.mxu0
    %v718 = vtanh.pop %v680
    %v719 = vtanh.pop %v685
    %v720 = vtanh.pop %v690
    %v721 = vtanh.pop %v695
    %v722 = vtanh.pop %v700
    %v723 = vtanh.pop %v705
    %v724 = vtanh.pop %v710
    %v725 = vtanh.pop %v715
    %s726 = sld [smem:[#allocation3 + $0x3]]
    %v727 = vstv %s726
    %v728 = vmul.f32 %v727, %v718
    %v729 = vmul.f32 %v727, %v719
    %v730 = vmul.f32 %v727, %v720
    %v731 = vmul.f32 %v727, %v721
    %v732 = vmul.f32 %v727, %v722
    %v733 = vmul.f32 %v727, %v723
    %v734 = vmul.f32 %v727, %v724
    %v735 = vmul.f32 %v727, %v725
    %v736 = vadd.f32 %v568, %v728
    %v737 = vadd.f32 %v569, %v729
    %v738 = vadd.f32 %v570, %v730
    %v739 = vadd.f32 %v571, %v731
    %v740 = vadd.f32 %v572, %v732
    %v741 = vadd.f32 %v573, %v733
    %v742 = vadd.f32 %v574, %v734
    %v743 = vadd.f32 %v575, %v735
    %s744 = sld [smem:[#allocation2]]
    %v745 = vstv %s744
    %v746 = vmul.f32 %v745, %v736
    %v747 = vmul.f32 %v745, %v737
    %v748 = vmul.f32 %v745, %v738
    %v749 = vmul.f32 %v745, %v739
    %v750 = vmul.f32 %v745, %v740
    %v751 = vmul.f32 %v745, %v741
    %v752 = vmul.f32 %v745, %v742
    %v753 = vmul.f32 %v745, %v743
    %v754 = vld [vmem:[%s10] sm:$0xff]
    %v755 = vld [vmem:[%s10 + $0x8] sm:$0xff]
    %vm756 = vcmask 523264
    %v758 = vsel %vm756, %v754, 0
    %v761 = vsel %vm756, %v755, 0
    %763 = vmatprep.subr.mxu0 0.0
    %764 = vmatpush1.msra.mxu0 %v746
    %765 = vmatprep.subr.mxu0 0.0
    %766 = vmatpush1.msra.mxu0 %v747
    %767 = vmatprep.subr.mxu0 0.0
    %768 = vmatpush1.msra.mxu0 %v748
    %769 = vmatprep.subr.mxu0 0.0
    %770 = vmatpush1.msra.mxu0 %v749
    %771 = vmatprep.subr.mxu0 0.0
    %772 = vmatpush1.msra.mxu0 %v750
    %773 = vmatprep.subr.mxu0 0.0
    %774 = vmatpush1.msra.mxu0 %v751
    %775 = vmatprep.subr.mxu0 0.0
    %776 = vmatpush1.msra.mxu0 %v752
    %777 = vmatprep.subr.mxu0 0.0
    %778 = vmatpush1.msra.mxu0 %v753
    %779 = vmatprep.subr.mxu0 0.0
    %780 = vmatpush1.msra.mxu0 0.0
    %781 = vmatprep.subr.mxu0 0.0
    %782 = vmatpush1.msra.mxu0 0.0
    %783 = vmatprep.subr.mxu0 0.0
    %784 = vmatpush1.msra.mxu0 0.0
    %785 = vmatprep.subr.mxu0 0.0
    %786 = vmatpush1.msra.mxu0 0.0
    %787 = vmatprep.subr.mxu0 0.0
    %788 = vmatpush1.msra.mxu0 0.0
    %789 = vmatprep.subr.mxu0 0.0
    %790 = vmatpush1.msra.mxu0 0.0
    %791 = vmatprep.subr.mxu0 0.0
    %792 = vmatpush1.msra.mxu0 0.0
    %793 = vmatprep.subr.mxu0 0.0
    %794 = vmatpush1.msra.mxu0 0.0
    %795 = vmatprep.subr.mxu0 0.0
    %796 = vmatpush1.msra.mxu0 0.0
    %797 = vmatprep.subr.mxu0 0.0
    %798 = vmatpush1.msra.mxu0 0.0
    %799 = vmatprep.subr.mxu0 0.0
    %800 = vmatpush1.msra.mxu0 0.0
    %801 = vmatprep.subr.mxu0 0.0
    %802 = vmatpush1.msra.mxu0 0.0
    %803 = vmatprep.subr.mxu0 0.0
    %804 = vmatpush1.msra.mxu0 0.0
    %805 = vmatprep.subr.mxu0 0.0
    %806 = vmatpush1.msra.mxu0 0.0
    %807 = vmatprep.subr.mxu0 0.0
    %808 = vmatpush1.msra.mxu0 0.0
    %809 = vmatprep.subr.mxu0 0.0
    %810 = vmatpush1.msra.mxu0 0.0
    %811 = vmatprep.subr.mxu0 0.0
    %812 = vmatpush1.msra.mxu0 0.0
    %813 = vmatprep.subr.mxu0 0.0
    %814 = vmatpush1.msra.mxu0 0.0
    %815 = vmatprep.subr.mxu0 0.0
    %816 = vmatpush1.msra.mxu0 0.0
    %817 = vmatprep.subr.mxu0 0.0
    %818 = vmatpush1.msra.mxu0 0.0
    %819 = vmatprep.subr.mxu0 0.0
    %820 = vmatpush1.msra.mxu0 0.0
    %821 = vmatprep.subr.mxu0 0.0
    %822 = vmatpush1.msra.mxu0 0.0
    %823 = vmatprep.subr.mxu0 0.0
    %824 = vmatpush1.msra.mxu0 0.0
    %825 = vmatprep.subr.mxu0 0.0
    %826 = vmatpush1.msra.mxu0 0.0
    %827 = vmatprep.mubr.f32.mxu0 0.0
    %828 = vmatmul.mubr.f32.gmra.mrb[0].mxu0 %v758
    %v829 = vpop.f32.mrb[0].mxu0
    %v830 = vadd.f32 0.0, %v829
    %v831 = vpop.f32.mrb[0].mxu0
    %832 = vmatprep.mubr.f32.mxu0 0.0
    %833 = vmatmul.mubr.f32.gmra.mrb[0].mxu0 %v761
    %v834 = vpop.f32.mrb[0].mxu0
    %v835 = vadd.f32 0.0, %v834
    %v836 = vpop.f32.mrb[0].mxu0
    %837 = vdwg.mxu0
    %v838 = vld [vmem:[%s11] sm:$0xff]
    %v839 = vld [vmem:[%s11 + $0x8] sm:$0xff]
    %v840 = vld [vmem:[%s11 + $0x10] sm:$0xff]
    %v841 = vld [vmem:[%s11 + $0x18] sm:$0xff]
    %v843 = vsel %vm84, %v830, 0
    %v846 = vsel %vm84, %v835, 0
    %848 = vmatprep.subr.mxu0 0.0
    %849 = vmatpush1.msra.mxu0 %v838
    %850 = vmatprep.subr.mxu0 0.0
    %851 = vmatpush1.msra.mxu0 %v839
    %852 = vmatprep.subr.mxu0 0.0
    %853 = vmatpush1.msra.mxu0 %v840
    %854 = vmatprep.subr.mxu0 0.0
    %855 = vmatpush1.msra.mxu0 %v841
    %856 = vmatprep.subr.mxu0 0.0
    %857 = vmatpush1.msra.mxu0 0.0
    %858 = vmatprep.subr.mxu0 0.0
    %859 = vmatpush1.msra.mxu0 0.0
    %860 = vmatprep.subr.mxu0 0.0
    %861 = vmatpush1.msra.mxu0 0.0
    %862 = vmatprep.subr.mxu0 0.0
    %863 = vmatpush1.msra.mxu0 0.0
    %864 = vmatprep.subr.mxu0 0.0
    %865 = vmatpush1.msra.mxu0 0.0
    %866 = vmatprep.subr.mxu0 0.0
    %867 = vmatpush1.msra.mxu0 0.0
    %868 = vmatprep.subr.mxu0 0.0
    %869 = vmatpush1.msra.mxu0 0.0
    %870 = vmatprep.subr.mxu0 0.0
    %871 = vmatpush1.msra.mxu0 0.0
    %872 = vmatprep.subr.mxu0 0.0
    %873 = vmatpush1.msra.mxu0 0.0
    %874 = vmatprep.subr.mxu0 0.0
    %875 = vmatpush1.msra.mxu0 0.0
    %876 = vmatprep.subr.mxu0 0.0
    %877 = vmatpush1.msra.mxu0 0.0
    %878 = vmatprep.subr.mxu0 0.0
    %879 = vmatpush1.msra.mxu0 0.0
    %880 = vmatprep.subr.mxu0 0.0
    %881 = vmatpush1.msra.mxu0 0.0
    %882 = vmatprep.subr.mxu0 0.0
    %883 = vmatpush1.msra.mxu0 0.0
    %884 = vmatprep.subr.mxu0 0.0
    %885 = vmatpush1.msra.mxu0 0.0
    %886 = vmatprep.subr.mxu0 0.0
    %887 = vmatpush1.msra.mxu0 0.0
    %888 = vmatprep.subr.mxu0 0.0
    %889 = vmatpush1.msra.mxu0 0.0
    %890 = vmatprep.subr.mxu0 0.0
    %891 = vmatpush1.msra.mxu0 0.0
    %892 = vmatprep.subr.mxu0 0.0
    %893 = vmatpush1.msra.mxu0 0.0
    %894 = vmatprep.subr.mxu0 0.0
    %895 = vmatpush1.msra.mxu0 0.0
    %896 = vmatprep.subr.mxu0 0.0
    %897 = vmatpush1.msra.mxu0 0.0
    %898 = vmatprep.subr.mxu0 0.0
    %899 = vmatpush1.msra.mxu0 0.0
    %900 = vmatprep.subr.mxu0 0.0
    %901 = vmatpush1.msra.mxu0 0.0
    %902 = vmatprep.subr.mxu0 0.0
    %903 = vmatpush1.msra.mxu0 0.0
    %904 = vmatprep.subr.mxu0 0.0
    %905 = vmatpush1.msra.mxu0 0.0
    %906 = vmatprep.subr.mxu0 0.0
    %907 = vmatpush1.msra.mxu0 0.0
    %908 = vmatprep.subr.mxu0 0.0
    %909 = vmatpush1.msra.mxu0 0.0
    %910 = vmatprep.subr.mxu0 0.0
    %911 = vmatpush1.msra.mxu0 0.0
    %912 = vmatprep.mubr.f32.mxu0 0.0
    %913 = vmatmul.mubr.f32.gmra.mrb[0].mxu0 %v843
    %v914 = vpop.f32.mrb[0].mxu0
    %v915 = vadd.f32 0.0, %v914
    %v916 = vpop.f32.mrb[0].mxu0
    %917 = vmatprep.mubr.f32.mxu0 0.0
    %918 = vmatmul.mubr.f32.gmra.mrb[0].mxu0 %v846
    %v919 = vpop.f32.mrb[0].mxu0
    %v920 = vadd.f32 0.0, %v919
    %v921 = vpop.f32.mrb[0].mxu0
    %922 = vdwg.mxu0
    %vm923 = vcmask 130048
    %924 = vst.msk [vmem:[#allocation6] sm:$0xff] %vm923, %v915
    %925 = vst.msk [vmem:[#allocation6 + $0x8] sm:$0xff] %vm923, %v920
    %v926 = vld [vmem:[%s7] sm:$0xff]
    %v927 = vld [vmem:[%s7 + $0x8] sm:$0xff]
    %v929 = vsel %vm756, %v926, 0
    %v932 = vsel %vm756, %v927, 0
    %934 = vmatprep.subr.mxu0 0.0
    %935 = vmatpush1.msra.mxu0 %v382
    %936 = vmatprep.subr.mxu0 0.0
    %937 = vmatpush1.msra.mxu0 %v383
    %938 = vmatprep.subr.mxu0 0.0
    %939 = vmatpush1.msra.mxu0 %v384
    %940 = vmatprep.subr.mxu0 0.0
    %941 = vmatpush1.msra.mxu0 %v385
    %942 = vmatprep.subr.mxu0 0.0
    %943 = vmatpush1.msra.mxu0 %v386
    %944 = vmatprep.subr.mxu0 0.0
    %945 = vmatpush1.msra.mxu0 %v387
    %946 = vmatprep.subr.mxu0 0.0
    %947 = vmatpush1.msra.mxu0 %v388
    %948 = vmatprep.subr.mxu0 0.0
    %949 = vmatpush1.msra.mxu0 %v389
    %950 = vmatprep.subr.mxu0 0.0
    %951 = vmatpush1.msra.mxu0 0.0
    %952 = vmatprep.subr.mxu0 0.0
    %953 = vmatpush1.msra.mxu0 0.0
    %954 = vmatprep.subr.mxu0 0.0
    %955 = vmatpush1.msra.mxu0 0.0
    %956 = vmatprep.subr.mxu0 0.0
    %957 = vmatpush1.msra.mxu0 0.0
    %958 = vmatprep.subr.mxu0 0.0
    %959 = vmatpush1.msra.mxu0 0.0
    %960 = vmatprep.subr.mxu0 0.0
    %961 = vmatpush1.msra.mxu0 0.0
    %962 = vmatprep.subr.mxu0 0.0
    %963 = vmatpush1.msra.mxu0 0.0
    %964 = vmatprep.subr.mxu0 0.0
    %965 = vmatpush1.msra.mxu0 0.0
    %966 = vmatprep.subr.mxu0 0.0
    %967 = vmatpush1.msra.mxu0 0.0
    %968 = vmatprep.subr.mxu0 0.0
    %969 = vmatpush1.msra.mxu0 0.0
    %970 = vmatprep.subr.mxu0 0.0
    %971 = vmatpush1.msra.mxu0 0.0
    %972 = vmatprep.subr.mxu0 0.0
    %973 = vmatpush1.msra.mxu0 0.0
    %974 = vmatprep.subr.mxu0 0.0
    %975 = vmatpush1.msra.mxu0 0.0
    %976 = vmatprep.subr.mxu0 0.0
    %977 = vmatpush1.msra.mxu0 0.0
    %978 = vmatprep.subr.mxu0 0.0
    %979 = vmatpush1.msra.mxu0 0.0
    %980 = vmatprep.subr.mxu0 0.0
    %981 = vmatpush1.msra.mxu0 0.0
    %982 = vmatprep.subr.mxu0 0.0
    %983 = vmatpush1.msra.mxu0 0.0
    %984 = vmatprep.subr.mxu0 0.0
    %985 = vmatpush1.msra.mxu0 0.0
    %986 = vmatprep.subr.mxu0 0.0
    %987 = vmatpush1.msra.mxu0 0.0
    %988 = vmatprep.subr.mxu0 0.0
    %989 = vmatpush1.msra.mxu0 0.0
    %990 = vmatprep.subr.mxu0 0.0
    %991 = vmatpush1.msra.mxu0 0.0
    %992 = vmatprep.subr.mxu0 0.0
    %993 = vmatpush1.msra.mxu0 0.0
    %994 = vmatprep.subr.mxu0 0.0
    %995 = vmatpush1.msra.mxu0 0.0
    %996 = vmatprep.subr.mxu0 0.0
    %997 = vmatpush1.msra.mxu0 0.0
    %998 = vmatprep.mubr.f32.mxu0 0.0
    %999 = vmatmul.mubr.f32.gmra.mrb[0].mxu0 %v929
    %v1000 = vpop.f32.mrb[0].mxu0
    %v1001 = vadd.f32 0.0, %v1000
    %v1002 = vpop.f32.mrb[0].mxu0
    %1003 = vmatprep.mubr.f32.mxu0 0.0
    %1004 = vmatmul.mubr.f32.gmra.mrb[0].mxu0 %v932
    %v1005 = vpop.f32.mrb[0].mxu0
    %v1006 = vadd.f32 0.0, %v1005
    %v1007 = vpop.f32.mrb[0].mxu0
    %1008 = vdwg.mxu0
    %v1009 = vld [vmem:[%s3] sm:$0xff]
    %v1010 = vld [vmem:[%s3 + $0x8] sm:$0xff]
    %v1011 = vld [vmem:[%s3 + $0x10] sm:$0xff]
    %v1012 = vld [vmem:[%s3 + $0x18] sm:$0xff]
    %v1013 = vld [vmem:[%s4] sm:$0x1]
    %v1015 = vlaneseq
    %v1016 = vshrl.u32 %v1015, 7
    %v1017 = vsub.s32 0, %v1016
    %v1018 = vrot.slane %v1013, %v1017
    %v1021 = vsel %vm84, %v1001, 0
    %v1024 = vsel %vm84, %v1006, 0
    %1026 = vmatprep.subr.mxu0 0.0
    %1027 = vmatpush1.msra.mxu0 %v1009
    %1028 = vmatprep.subr.mxu0 0.0
    %1029 = vmatpush1.msra.mxu0 %v1010
    %1030 = vmatprep.subr.mxu0 0.0
    %1031 = vmatpush1.msra.mxu0 %v1011
    %1032 = vmatprep.subr.mxu0 0.0
    %1033 = vmatpush1.msra.mxu0 %v1012
    %1034 = vmatprep.subr.mxu0 0.0
    %1035 = vmatpush1.msra.mxu0 0.0
    %1036 = vmatprep.subr.mxu0 0.0
    %1037 = vmatpush1.msra.mxu0 0.0
    %1038 = vmatprep.subr.mxu0 0.0
    %1039 = vmatpush1.msra.mxu0 0.0
    %1040 = vmatprep.subr.mxu0 0.0
    %1041 = vmatpush1.msra.mxu0 0.0
    %1042 = vmatprep.subr.mxu0 0.0
    %1043 = vmatpush1.msra.mxu0 0.0
    %1044 = vmatprep.subr.mxu0 0.0
    %1045 = vmatpush1.msra.mxu0 0.0
    %1046 = vmatprep.subr.mxu0 0.0
    %1047 = vmatpush1.msra.mxu0 0.0
    %1048 = vmatprep.subr.mxu0 0.0
    %1049 = vmatpush1.msra.mxu0 0.0
    %1050 = vmatprep.subr.mxu0 0.0
    %1051 = vmatpush1.msra.mxu0 0.0
    %1052 = vmatprep.subr.mxu0 0.0
    %1053 = vmatpush1.msra.mxu0 0.0
    %1054 = vmatprep.subr.mxu0 0.0
    %1055 = vmatpush1.msra.mxu0 0.0
    %1056 = vmatprep.subr.mxu0 0.0
    %1057 = vmatpush1.msra.mxu0 0.0
    %1058 = vmatprep.subr.mxu0 0.0
    %1059 = vmatpush1.msra.mxu0 0.0
    %1060 = vmatprep.subr.mxu0 0.0
    %1061 = vmatpush1.msra.mxu0 0.0
    %1062 = vmatprep.subr.mxu0 0.0
    %1063 = vmatpush1.msra.mxu0 0.0
    %1064 = vmatprep.subr.mxu0 0.0
    %1065 = vmatpush1.msra.mxu0 0.0
    %1066 = vmatprep.subr.mxu0 0.0
    %1067 = vmatpush1.msra.mxu0 0.0
    %1068 = vmatprep.subr.mxu0 0.0
    %1069 = vmatpush1.msra.mxu0 0.0
    %1070 = vmatprep.subr.mxu0 0.0
    %1071 = vmatpush1.msra.mxu0 0.0
    %1072 = vmatprep.subr.mxu0 0.0
    %1073 = vmatpush1.msra.mxu0 0.0
    %1074 = vmatprep.subr.mxu0 0.0
    %1075 = vmatpush1.msra.mxu0 0.0
    %1076 = vmatprep.subr.mxu0 0.0
    %1077 = vmatpush1.msra.mxu0 0.0
    %1078 = vmatprep.subr.mxu0 0.0
    %1079 = vmatpush1.msra.mxu0 0.0
    %1080 = vmatprep.subr.mxu0 0.0
    %1081 = vmatpush1.msra.mxu0 0.0
    %1082 = vmatprep.subr.mxu0 0.0
    %1083 = vmatpush1.msra.mxu0 0.0
    %1084 = vmatprep.subr.mxu0 0.0
    %1085 = vmatpush1.msra.mxu0 0.0
    %1086 = vmatprep.subr.mxu0 0.0
    %1087 = vmatpush1.msra.mxu0 0.0
    %1088 = vmatprep.subr.mxu0 0.0
    %1089 = vmatpush1.msra.mxu0 0.0
    %1090 = vmatprep.mubr.f32.mxu0 0.0
    %1091 = vmatmul.mubr.f32.gmra.mrb[0].mxu0 %v1021
    %v1092 = vpop.f32.mrb[0].mxu0
    %v1093 = vadd.f32 %v1018, %v1092
    %v1094 = vpop.f32.mrb[0].mxu0
    %1095 = vmatprep.mubr.f32.mxu0 0.0
    %1096 = vmatmul.mubr.f32.gmra.mrb[0].mxu0 %v1024
    %v1097 = vpop.f32.mrb[0].mxu0
    %v1098 = vadd.f32 %v1018, %v1097
    %v1099 = vpop.f32.mrb[0].mxu0
    %1100 = vdwg.mxu0
    %v1101 = vld [vmem:[%s5] sm:$0xff]
    %v1102 = vld [vmem:[%s5 + $0x8] sm:$0xff]
    %v1103 = vld [vmem:[%s5 + $0x10] sm:$0xff]
    %v1104 = vld [vmem:[%s5 + $0x18] sm:$0xff]
    %v1105 = vld [vmem:[%s6] sm:$0x1]
    %v1107 = vlaneseq
    %v1108 = vshrl.u32 %v1107, 7
    %v1109 = vsub.s32 0, %v1108
    %v1110 = vrot.slane %v1105, %v1109
    %1112 = vmatprep.subr.mxu0 0.0
    %1113 = vmatpush1.msra.mxu0 %v1101
    %1114 = vmatprep.subr.mxu0 0.0
    %1115 = vmatpush1.msra.mxu0 %v1102
    %1116 = vmatprep.subr.mxu0 0.0
    %1117 = vmatpush1.msra.mxu0 %v1103
    %1118 = vmatprep.subr.mxu0 0.0
    %1119 = vmatpush1.msra.mxu0 %v1104
    %1120 = vmatprep.subr.mxu0 0.0
    %1121 = vmatpush1.msra.mxu0 0.0
    %1122 = vmatprep.subr.mxu0 0.0
    %1123 = vmatpush1.msra.mxu0 0.0
    %1124 = vmatprep.subr.mxu0 0.0
    %1125 = vmatpush1.msra.mxu0 0.0
    %1126 = vmatprep.subr.mxu0 0.0
    %1127 = vmatpush1.msra.mxu0 0.0
    %1128 = vmatprep.subr.mxu0 0.0
    %1129 = vmatpush1.msra.mxu0 0.0
    %1130 = vmatprep.subr.mxu0 0.0
    %1131 = vmatpush1.msra.mxu0 0.0
    %1132 = vmatprep.subr.mxu0 0.0
    %1133 = vmatpush1.msra.mxu0 0.0
    %1134 = vmatprep.subr.mxu0 0.0
    %1135 = vmatpush1.msra.mxu0 0.0
    %1136 = vmatprep.subr.mxu0 0.0
    %1137 = vmatpush1.msra.mxu0 0.0
    %1138 = vmatprep.subr.mxu0 0.0
    %1139 = vmatpush1.msra.mxu0 0.0
    %1140 = vmatprep.subr.mxu0 0.0
    %1141 = vmatpush1.msra.mxu0 0.0
    %1142 = vmatprep.subr.mxu0 0.0
    %1143 = vmatpush1.msra.mxu0 0.0
    %1144 = vmatprep.subr.mxu0 0.0
    %1145 = vmatpush1.msra.mxu0 0.0
    %1146 = vmatprep.subr.mxu0 0.0
    %1147 = vmatpush1.msra.mxu0 0.0
    %1148 = vmatprep.subr.mxu0 0.0
    %1149 = vmatpush1.msra.mxu0 0.0
    %1150 = vmatprep.subr.mxu0 0.0
    %1151 = vmatpush1.msra.mxu0 0.0
    %1152 = vmatprep.subr.mxu0 0.0
    %1153 = vmatpush1.msra.mxu0 0.0
    %1154 = vmatprep.subr.mxu0 0.0
    %1155 = vmatpush1.msra.mxu0 0.0
    %1156 = vmatprep.subr.mxu0 0.0
    %1157 = vmatpush1.msra.mxu0 0.0
    %1158 = vmatprep.subr.mxu0 0.0
    %1159 = vmatpush1.msra.mxu0 0.0
    %1160 = vmatprep.subr.mxu0 0.0
    %1161 = vmatpush1.msra.mxu0 0.0
    %1162 = vmatprep.subr.mxu0 0.0
    %1163 = vmatpush1.msra.mxu0 0.0
    %1164 = vmatprep.subr.mxu0 0.0
    %1165 = vmatpush1.msra.mxu0 0.0
    %1166 = vmatprep.subr.mxu0 0.0
    %1167 = vmatpush1.msra.mxu0 0.0
    %1168 = vmatprep.subr.mxu0 0.0
    %1169 = vmatpush1.msra.mxu0 0.0
    %1170 = vmatprep.subr.mxu0 0.0
    %1171 = vmatpush1.msra.mxu0 0.0
    %1172 = vmatprep.subr.mxu0 0.0
    %1173 = vmatpush1.msra.mxu0 0.0
    %1174 = vmatprep.subr.mxu0 0.0
    %1175 = vmatpush1.msra.mxu0 0.0
    %1176 = vmatprep.mubr.f32.mxu0 0.0
    %1177 = vmatmul.mubr.f32.gmra.mrb[0].mxu0 %v422
    %v1178 = vpop.f32.mrb[0].mxu0
    %v1179 = vadd.f32 %v1110, %v1178
    %v1180 = vpop.f32.mrb[0].mxu0
    %1181 = vmatprep.mubr.f32.mxu0 0.0
    %1182 = vmatmul.mubr.f32.gmra.mrb[0].mxu0 %v425
    %v1183 = vpop.f32.mrb[0].mxu0
    %v1184 = vadd.f32 %v1110, %v1183
    %v1185 = vpop.f32.mrb[0].mxu0
    %1186 = vmatprep.mubr.f32.mxu0 0.0
    %1187 = vmatmul.mubr.f32.gmra.mrb[0].mxu0 %v428
    %v1188 = vpop.f32.mrb[0].mxu0
    %v1189 = vadd.f32 %v1110, %v1188
    %v1190 = vpop.f32.mrb[0].mxu0
    %1191 = vmatprep.mubr.f32.mxu0 0.0
    %1192 = vmatmul.mubr.f32.gmra.mrb[0].mxu0 %v431
    %v1193 = vpop.f32.mrb[0].mxu0
    %v1194 = vadd.f32 %v1110, %v1193
    %v1195 = vpop.f32.mrb[0].mxu0
    %1196 = vmatprep.mubr.f32.mxu0 0.0
    %1197 = vmatmul.mubr.f32.gmra.mrb[0].mxu0 %v434
    %v1198 = vpop.f32.mrb[0].mxu0
    %v1199 = vadd.f32 %v1110, %v1198
    %v1200 = vpop.f32.mrb[0].mxu0
    %1201 = vmatprep.mubr.f32.mxu0 0.0
    %1202 = vmatmul.mubr.f32.gmra.mrb[0].mxu0 %v437
    %v1203 = vpop.f32.mrb[0].mxu0
    %v1204 = vadd.f32 %v1110, %v1203
    %v1205 = vpop.f32.mrb[0].mxu0
    %1206 = vmatprep.mubr.f32.mxu0 0.0
    %1207 = vmatmul.mubr.f32.gmra.mrb[0].mxu0 %v440
    %v1208 = vpop.f32.mrb[0].mxu0
    %v1209 = vadd.f32 %v1110, %v1208
    %v1210 = vpop.f32.mrb[0].mxu0
    %1211 = vmatprep.mubr.f32.mxu0 0.0
    %1212 = vmatmul.mubr.f32.gmra.mrb[0].mxu0 %v443
    %v1213 = vpop.f32.mrb[0].mxu0
    %v1214 = vadd.f32 %v1110, %v1213
    %v1215 = vpop.f32.mrb[0].mxu0
    %1216 = vdwg.mxu0
    %vm1217 = vcmask 64512
    %v1219 = vsel %vm1217, %v1093, 0
    %v1222 = vsel %vm1217, %v1098, 0
    %v1225 = vsel %vm1217, %v1179, 0
    %v1228 = vsel %vm1217, %v1184, 0
    %v1231 = vsel %vm1217, %v1189, 0
    %v1234 = vsel %vm1217, %v1194, 0
    %v1237 = vsel %vm1217, %v1199, 0
    %v1240 = vsel %vm1217, %v1204, 0
    %v1243 = vsel %vm1217, %v1209, 0
    %v1246 = vsel %vm1217, %v1214, 0
    %1248 = vmatprep.subr.mxu0 0.0
    %1249 = vmatpush1.xpose.msra.mxu0 %v1225
    %1250 = vmatprep.subr.mxu0 0.0
    %1251 = vmatpush1.xpose.msra.mxu0 %v1228
    %1252 = vmatprep.subr.mxu0 0.0
    %1253 = vmatpush1.xpose.msra.mxu0 %v1231
    %1254 = vmatprep.subr.mxu0 0.0
    %1255 = vmatpush1.xpose.msra.mxu0 %v1234
    %1256 = vmatprep.subr.mxu0 0.0
    %1257 = vmatpush1.xpose.msra.mxu0 %v1237
    %1258 = vmatprep.subr.mxu0 0.0
    %1259 = vmatpush1.xpose.msra.mxu0 %v1240
    %1260 = vmatprep.subr.mxu0 0.0
    %1261 = vmatpush1.xpose.msra.mxu0 %v1243
    %1262 = vmatprep.subr.mxu0 0.0
    %1263 = vmatpush1.xpose.msra.mxu0 %v1246
    %1264 = vmatprep.subr.mxu0 0.0
    %1265 = vmatpush1.xpose.msra.mxu0 0.0
    %1266 = vmatprep.subr.mxu0 0.0
    %1267 = vmatpush1.xpose.msra.mxu0 0.0
    %1268 = vmatprep.subr.mxu0 0.0
    %1269 = vmatpush1.xpose.msra.mxu0 0.0
    %1270 = vmatprep.subr.mxu0 0.0
    %1271 = vmatpush1.xpose.msra.mxu0 0.0
    %1272 = vmatprep.subr.mxu0 0.0
    %1273 = vmatpush1.xpose.msra.mxu0 0.0
    %1274 = vmatprep.subr.mxu0 0.0
    %1275 = vmatpush1.xpose.msra.mxu0 0.0
    %1276 = vmatprep.subr.mxu0 0.0
    %1277 = vmatpush1.xpose.msra.mxu0 0.0
    %1278 = vmatprep.subr.mxu0 0.0
    %1279 = vmatpush1.xpose.msra.mxu0 0.0
    %1280 = vmatprep.subr.mxu0 0.0
    %1281 = vmatpush1.xpose.msra.mxu0 0.0
    %1282 = vmatprep.subr.mxu0 0.0
    %1283 = vmatpush1.xpose.msra.mxu0 0.0
    %1284 = vmatprep.subr.mxu0 0.0
    %1285 = vmatpush1.xpose.msra.mxu0 0.0
    %1286 = vmatprep.subr.mxu0 0.0
    %1287 = vmatpush1.xpose.msra.mxu0 0.0
    %1288 = vmatprep.subr.mxu0 0.0
    %1289 = vmatpush1.xpose.msra.mxu0 0.0
    %1290 = vmatprep.subr.mxu0 0.0
    %1291 = vmatpush1.xpose.msra.mxu0 0.0
    %1292 = vmatprep.subr.mxu0 0.0
    %1293 = vmatpush1.xpose.msra.mxu0 0.0
    %1294 = vmatprep.subr.mxu0 0.0
    %1295 = vmatpush1.xpose.msra.mxu0 0.0
    %1296 = vmatprep.subr.mxu0 0.0
    %1297 = vmatpush1.xpose.msra.mxu0 0.0
    %1298 = vmatprep.subr.mxu0 0.0
    %1299 = vmatpush1.xpose.msra.mxu0 0.0
    %1300 = vmatprep.subr.mxu0 0.0
    %1301 = vmatpush1.xpose.msra.mxu0 0.0
    %1302 = vmatprep.subr.mxu0 0.0
    %1303 = vmatpush1.xpose.msra.mxu0 0.0
    %1304 = vmatprep.subr.mxu0 0.0
    %1305 = vmatpush1.xpose.msra.mxu0 0.0
    %1306 = vmatprep.subr.mxu0 0.0
    %1307 = vmatpush1.xpose.msra.mxu0 0.0
    %1308 = vmatprep.subr.mxu0 0.0
    %1309 = vmatpush1.xpose.msra.mxu0 0.0
    %1310 = vmatprep.subr.mxu0 0.0
    %1311 = vmatpush1.xpose.msra.mxu0 0.0
    %1312 = vmatprep.mubr.f32.mxu0 0.0
    %1313 = vmatmul.mubr.f32.gmra.mrb[0].mxu0 %v1219
    %v1314 = vpop.f32.mrb[0].mxu0
    %v1315 = vadd.f32 0.0, %v1314
    %v1316 = vpop.f32.mrb[0].mxu0
    %1317 = vmatprep.mubr.f32.mxu0 0.0
    %1318 = vmatmul.mubr.f32.gmra.mrb[0].mxu0 %v1222
    %v1319 = vpop.f32.mrb[0].mxu0
    %v1320 = vadd.f32 0.0, %v1319
    %v1321 = vpop.f32.mrb[0].mxu0
    %1322 = vdwg.mxu0
    %v1323 = vmul.f32 %v1315, 0.35355338
    %v1324 = vmul.f32 %v1320, 0.35355338
    %vm1325 = vcmp.eq.f32.partialorder %v1323, 0.0
    %vm1326 = vcmp.eq.f32.partialorder %v1324, 0.0
    %vm1327 = vcmp.eq.f32.partialorder %v1323, -1e-09
    %vm1328 = vcmp.eq.f32.partialorder %v1324, -1e-09
    %vm1329 = vmor %vm1325, %vm1327
    %vm1330 = vmor %vm1326, %vm1328
    %v1331 = vsel %vm1329, 1, 0
    %v1332 = vsel %vm1330, 1, 0
    %v1333 = vcvt.s32.f32 %v1331
    %v1334 = vcvt.s32.f32 %v1332
    %v1335 = vld [vmem:[%s8] sm:$0xff]
    %v1336 = vld [vmem:[%s8 + $0x8] sm:$0xff]
    %v1337 = vld [vmem:[%s8 + $0x10] sm:$0xff]
    %v1338 = vld [vmem:[%s8 + $0x18] sm:$0xff]
    %v1339 = vld [vmem:[%s8 + $0x20] sm:$0xff]
    %v1340 = vld [vmem:[%s8 + $0x28] sm:$0xff]
    %v1341 = vld [vmem:[%s8 + $0x30] sm:$0xff]
    %v1342 = vld [vmem:[%s8 + $0x38] sm:$0xff]
    %v1344 = vsel %vm756, %v1323, 0
    %v1347 = vsel %vm756, %v1324, 0
    %1349 = vmatprep.subr.mxu0 0.0
    %1350 = vmatpush1.msra.mxu0 %v1335
    %1351 = vmatprep.subr.mxu0 0.0
    %1352 = vmatpush1.msra.mxu0 %v1336
    %1353 = vmatprep.subr.mxu0 0.0
    %1354 = vmatpush1.msra.mxu0 %v1337
    %1355 = vmatprep.subr.mxu0 0.0
    %1356 = vmatpush1.msra.mxu0 %v1338
    %1357 = vmatprep.subr.mxu0 0.0
    %1358 = vmatpush1.msra.mxu0 %v1339
    %1359 = vmatprep.subr.mxu0 0.0
    %1360 = vmatpush1.msra.mxu0 %v1340
    %1361 = vmatprep.subr.mxu0 0.0
    %1362 = vmatpush1.msra.mxu0 %v1341
    %1363 = vmatprep.subr.mxu0 0.0
    %1364 = vmatpush1.msra.mxu0 %v1342
    %1365 = vmatprep.subr.mxu0 0.0
    %1366 = vmatpush1.msra.mxu0 0.0
    %1367 = vmatprep.subr.mxu0 0.0
    %1368 = vmatpush1.msra.mxu0 0.0
    %1369 = vmatprep.subr.mxu0 0.0
    %1370 = vmatpush1.msra.mxu0 0.0
    %1371 = vmatprep.subr.mxu0 0.0
    %1372 = vmatpush1.msra.mxu0 0.0
    %1373 = vmatprep.subr.mxu0 0.0
    %1374 = vmatpush1.msra.mxu0 0.0
    %1375 = vmatprep.subr.mxu0 0.0
    %1376 = vmatpush1.msra.mxu0 0.0
    %1377 = vmatprep.subr.mxu0 0.0
    %1378 = vmatpush1.msra.mxu0 0.0
    %1379 = vmatprep.subr.mxu0 0.0
    %1380 = vmatpush1.msra.mxu0 0.0
    %1381 = vmatprep.subr.mxu0 0.0
    %1382 = vmatpush1.msra.mxu0 0.0
    %1383 = vmatprep.subr.mxu0 0.0
    %1384 = vmatpush1.msra.mxu0 0.0
    %1385 = vmatprep.subr.mxu0 0.0
    %1386 = vmatpush1.msra.mxu0 0.0
    %1387 = vmatprep.subr.mxu0 0.0
    %1388 = vmatpush1.msra.mxu0 0.0
    %1389 = vmatprep.subr.mxu0 0.0
    %1390 = vmatpush1.msra.mxu0 0.0
    %1391 = vmatprep.subr.mxu0 0.0
    %1392 = vmatpush1.msra.mxu0 0.0
    %1393 = vmatprep.subr.mxu0 0.0
    %1394 = vmatpush1.msra.mxu0 0.0
    %1395 = vmatprep.subr.mxu0 0.0
    %1396 = vmatpush1.msra.mxu0 0.0
    %1397 = vmatprep.subr.mxu0 0.0
    %1398 = vmatpush1.msra.mxu0 0.0
    %1399 = vmatprep.subr.mxu0 0.0
    %1400 = vmatpush1.msra.mxu0 0.0
    %1401 = vmatprep.subr.mxu0 0.0
    %1402 = vmatpush1.msra.mxu0 0.0
    %1403 = vmatprep.subr.mxu0 0.0
    %1404 = vmatpush1.msra.mxu0 0.0
    %1405 = vmatprep.subr.mxu0 0.0
    %1406 = vmatpush1.msra.mxu0 0.0
    %1407 = vmatprep.subr.mxu0 0.0
    %1408 = vmatpush1.msra.mxu0 0.0
    %1409 = vmatprep.subr.mxu0 0.0
    %1410 = vmatpush1.msra.mxu0 0.0
    %1411 = vmatprep.subr.mxu0 0.0
    %1412 = vmatpush1.msra.mxu0 0.0
    %1413 = vmatprep.mubr.f32.mxu0 0.0
    %1414 = vmatmul.mubr.f32.gmra.mrb[0].mxu0 %v1344
    %v1415 = vpop.f32.mrb[0].mxu0
    %v1416 = vadd.f32 0.0, %v1415
    %v1417 = vpop.f32.mrb[0].mxu0
    %1418 = vmatprep.mubr.f32.mxu0 0.0
    %1419 = vmatmul.mubr.f32.gmra.mrb[0].mxu0 %v1347
    %v1420 = vpop.f32.mrb[0].mxu0
    %v1421 = vadd.f32 0.0, %v1420
    %v1422 = vpop.f32.mrb[0].mxu0
    %1423 = vdwg.mxu0
    %v1425 = vsel %vm756, %v1333, 0
    %v1428 = vsel %vm756, %v1334, 0
    %1430 = vmatprep.subr.mxu0 0.0
    %1431 = vmatpush1.msra.mxu0 %v1335
    %1432 = vmatprep.subr.mxu0 0.0
    %1433 = vmatpush1.msra.mxu0 %v1336
    %1434 = vmatprep.subr.mxu0 0.0
    %1435 = vmatpush1.msra.mxu0 %v1337
    %1436 = vmatprep.subr.mxu0 0.0
    %1437 = vmatpush1.msra.mxu0 %v1338
    %1438 = vmatprep.subr.mxu0 0.0
    %1439 = vmatpush1.msra.mxu0 %v1339
    %1440 = vmatprep.subr.mxu0 0.0
    %1441 = vmatpush1.msra.mxu0 %v1340
    %1442 = vmatprep.subr.mxu0 0.0
    %1443 = vmatpush1.msra.mxu0 %v1341
    %1444 = vmatprep.subr.mxu0 0.0
    %1445 = vmatpush1.msra.mxu0 %v1342
    %1446 = vmatprep.subr.mxu0 0.0
    %1447 = vmatpush1.msra.mxu0 0.0
    %1448 = vmatprep.subr.mxu0 0.0
    %1449 = vmatpush1.msra.mxu0 0.0
    %1450 = vmatprep.subr.mxu0 0.0
    %1451 = vmatpush1.msra.mxu0 0.0
    %1452 = vmatprep.subr.mxu0 0.0
    %1453 = vmatpush1.msra.mxu0 0.0
    %1454 = vmatprep.subr.mxu0 0.0
    %1455 = vmatpush1.msra.mxu0 0.0
    %1456 = vmatprep.subr.mxu0 0.0
    %1457 = vmatpush1.msra.mxu0 0.0
    %1458 = vmatprep.subr.mxu0 0.0
    %1459 = vmatpush1.msra.mxu0 0.0
    %1460 = vmatprep.subr.mxu0 0.0
    %1461 = vmatpush1.msra.mxu0 0.0
    %1462 = vmatprep.subr.mxu0 0.0
    %1463 = vmatpush1.msra.mxu0 0.0
    %1464 = vmatprep.subr.mxu0 0.0
    %1465 = vmatpush1.msra.mxu0 0.0
    %1466 = vmatprep.subr.mxu0 0.0
    %1467 = vmatpush1.msra.mxu0 0.0
    %1468 = vmatprep.subr.mxu0 0.0
    %1469 = vmatpush1.msra.mxu0 0.0
    %1470 = vmatprep.subr.mxu0 0.0
    %1471 = vmatpush1.msra.mxu0 0.0
    %1472 = vmatprep.subr.mxu0 0.0
    %1473 = vmatpush1.msra.mxu0 0.0
    %1474 = vmatprep.subr.mxu0 0.0
    %1475 = vmatpush1.msra.mxu0 0.0
    %1476 = vmatprep.subr.mxu0 0.0
    %1477 = vmatpush1.msra.mxu0 0.0
    %1478 = vmatprep.subr.mxu0 0.0
    %1479 = vmatpush1.msra.mxu0 0.0
    %1480 = vmatprep.subr.mxu0 0.0
    %1481 = vmatpush1.msra.mxu0 0.0
    %1482 = vmatprep.subr.mxu0 0.0
    %1483 = vmatpush1.msra.mxu0 0.0
    %1484 = vmatprep.subr.mxu0 0.0
    %1485 = vmatpush1.msra.mxu0 0.0
    %1486 = vmatprep.subr.mxu0 0.0
    %1487 = vmatpush1.msra.mxu0 0.0
    %1488 = vmatprep.subr.mxu0 0.0
    %1489 = vmatpush1.msra.mxu0 0.0
    %1490 = vmatprep.subr.mxu0 0.0
    %1491 = vmatpush1.msra.mxu0 0.0
    %1492 = vmatprep.subr.mxu0 0.0
    %1493 = vmatpush1.msra.mxu0 0.0
    %1494 = vmatprep.mubr.f32.mxu0 0.0
    %1495 = vmatmul.mubr.f32.gmra.mrb[0].mxu0 %v1425
    %v1496 = vpop.f32.mrb[0].mxu0
    %v1497 = vadd.f32 0.0, %v1496
    %v1498 = vpop.f32.mrb[0].mxu0
    %1499 = vmatprep.mubr.f32.mxu0 0.0
    %1500 = vmatmul.mubr.f32.gmra.mrb[0].mxu0 %v1428
    %v1501 = vpop.f32.mrb[0].mxu0
    %v1502 = vadd.f32 0.0, %v1501
    %v1503 = vpop.f32.mrb[0].mxu0
    %1504 = vdwg.mxu0
    %vm1505 = vcmp.gt.f32.partialorder %v1497, 0.5
    %vm1506 = vcmp.gt.f32.partialorder %v1502, 0.5
    %v1507 = vsel %vm1505, 0.0, %v1416
    %v1508 = vsel %vm1506, 0.0, %v1421
    %v1509 = vld [vmem:[%s9] sm:$0xff]
    %v1510 = vld [vmem:[%s9 + $0x8] sm:$0xff]
    %v1511 = vld [vmem:[%s9 + $0x10] sm:$0xff]
    %v1512 = vld [vmem:[%s9 + $0x18] sm:$0xff]
    %v1513 = vld [vmem:[%s9 + $0x20] sm:$0xff]
    %v1514 = vld [vmem:[%s9 + $0x28] sm:$0xff]
    %v1515 = vld [vmem:[%s9 + $0x30] sm:$0xff]
    %v1516 = vld [vmem:[%s9 + $0x38] sm:$0xff]
    %v1518 = vsel %vm756, %v1507, 0
    %v1521 = vsel %vm756, %v1508, 0
    %1523 = vmatprep.subr.mxu0 0.0
    %1524 = vmatpush1.msra.mxu0 %v1509
    %1525 = vmatprep.subr.mxu0 0.0
    %1526 = vmatpush1.msra.mxu0 %v1510
    %1527 = vmatprep.subr.mxu0 0.0
    %1528 = vmatpush1.msra.mxu0 %v1511
    %1529 = vmatprep.subr.mxu0 0.0
    %1530 = vmatpush1.msra.mxu0 %v1512
    %1531 = vmatprep.subr.mxu0 0.0
    %1532 = vmatpush1.msra.mxu0 %v1513
    %1533 = vmatprep.subr.mxu0 0.0
    %1534 = vmatpush1.msra.mxu0 %v1514
    %1535 = vmatprep.subr.mxu0 0.0
    %1536 = vmatpush1.msra.mxu0 %v1515
    %1537 = vmatprep.subr.mxu0 0.0
    %1538 = vmatpush1.msra.mxu0 %v1516
    %1539 = vmatprep.subr.mxu0 0.0
    %1540 = vmatpush1.msra.mxu0 0.0
    %1541 = vmatprep.subr.mxu0 0.0
    %1542 = vmatpush1.msra.mxu0 0.0
    %1543 = vmatprep.subr.mxu0 0.0
    %1544 = vmatpush1.msra.mxu0 0.0
    %1545 = vmatprep.subr.mxu0 0.0
    %1546 = vmatpush1.msra.mxu0 0.0
    %1547 = vmatprep.subr.mxu0 0.0
    %1548 = vmatpush1.msra.mxu0 0.0
    %1549 = vmatprep.subr.mxu0 0.0
    %1550 = vmatpush1.msra.mxu0 0.0
    %1551 = vmatprep.subr.mxu0 0.0
    %1552 = vmatpush1.msra.mxu0 0.0
    %1553 = vmatprep.subr.mxu0 0.0
    %1554 = vmatpush1.msra.mxu0 0.0
    %1555 = vmatprep.subr.mxu0 0.0
    %1556 = vmatpush1.msra.mxu0 0.0
    %1557 = vmatprep.subr.mxu0 0.0
    %1558 = vmatpush1.msra.mxu0 0.0
    %1559 = vmatprep.subr.mxu0 0.0
    %1560 = vmatpush1.msra.mxu0 0.0
    %1561 = vmatprep.subr.mxu0 0.0
    %1562 = vmatpush1.msra.mxu0 0.0
    %1563 = vmatprep.subr.mxu0 0.0
    %1564 = vmatpush1.msra.mxu0 0.0
    %1565 = vmatprep.subr.mxu0 0.0
    %1566 = vmatpush1.msra.mxu0 0.0
    %1567 = vmatprep.subr.mxu0 0.0
    %1568 = vmatpush1.msra.mxu0 0.0
    %1569 = vmatprep.subr.mxu0 0.0
    %1570 = vmatpush1.msra.mxu0 0.0
    %1571 = vmatprep.subr.mxu0 0.0
    %1572 = vmatpush1.msra.mxu0 0.0
    %1573 = vmatprep.subr.mxu0 0.0
    %1574 = vmatpush1.msra.mxu0 0.0
    %1575 = vmatprep.subr.mxu0 0.0
    %1576 = vmatpush1.msra.mxu0 0.0
    %1577 = vmatprep.subr.mxu0 0.0
    %1578 = vmatpush1.msra.mxu0 0.0
    %1579 = vmatprep.subr.mxu0 0.0
    %1580 = vmatpush1.msra.mxu0 0.0
    %1581 = vmatprep.subr.mxu0 0.0
    %1582 = vmatpush1.msra.mxu0 0.0
    %1583 = vmatprep.subr.mxu0 0.0
    %1584 = vmatpush1.msra.mxu0 0.0
    %1585 = vmatprep.subr.mxu0 0.0
    %1586 = vmatpush1.msra.mxu0 0.0
    %1587 = vmatprep.mubr.f32.mxu0 0.0
    %1588 = vmatmul.mubr.f32.gmra.mrb[0].mxu0 %v1518
    %v1589 = vpop.f32.mrb[0].mxu0
    %v1590 = vadd.f32 0.0, %v1589
    %v1591 = vpop.f32.mrb[0].mxu0
    %1592 = vmatprep.mubr.f32.mxu0 0.0
    %1593 = vmatmul.mubr.f32.gmra.mrb[0].mxu0 %v1521
    %v1594 = vpop.f32.mrb[0].mxu0
    %v1595 = vadd.f32 0.0, %v1594
    %v1596 = vpop.f32.mrb[0].mxu0
    %1597 = vdwg.mxu0
    %1598 = vst.msk [vmem:[#allocation7] sm:$0xff] %vm1217, %v1590
    %1600 = vrot.lane.b32.xlu0 %v1595, 120
    %v1601 = vpop.permute.xlu0 %1600
    %s1603 = scalar_lea.vmem [#allocation7], 32
    %1604 = vst.msk [vmem:[%s1603] sm:$0xff] %vm1217, %v1601
    %s1605 = scalar_lea.vmem %s3, 32
    %v1606 = vld [vmem:[%s1605] sm:$0xff]
    %v1607 = vld [vmem:[%s1605 + $0x8] sm:$0xff]
    %v1608 = vld [vmem:[%s1605 + $0x10] sm:$0xff]
    %v1609 = vld [vmem:[%s1605 + $0x18] sm:$0xff]
    %s1610 = scalar_lea.vmem %s4, 1
    %v1611 = vld [vmem:[%s1610] sm:$0x1]
    %v1613 = vlaneseq
    %v1614 = vshrl.u32 %v1613, 7
    %v1615 = vsub.s32 0, %v1614
    %v1616 = vrot.slane %v1611, %v1615
    %1618 = vmatprep.subr.mxu0 0.0
    %1619 = vmatpush1.msra.mxu0 %v1606
    %1620 = vmatprep.subr.mxu0 0.0
    %1621 = vmatpush1.msra.mxu0 %v1607
    %1622 = vmatprep.subr.mxu0 0.0
    %1623 = vmatpush1.msra.mxu0 %v1608
    %1624 = vmatprep.subr.mxu0 0.0
    %1625 = vmatpush1.msra.mxu0 %v1609
    %1626 = vmatprep.subr.mxu0 0.0
    %1627 = vmatpush1.msra.mxu0 0.0
    %1628 = vmatprep.subr.mxu0 0.0
    %1629 = vmatpush1.msra.mxu0 0.0
    %1630 = vmatprep.subr.mxu0 0.0
    %1631 = vmatpush1.msra.mxu0 0.0
    %1632 = vmatprep.subr.mxu0 0.0
    %1633 = vmatpush1.msra.mxu0 0.0
    %1634 = vmatprep.subr.mxu0 0.0
    %1635 = vmatpush1.msra.mxu0 0.0
    %1636 = vmatprep.subr.mxu0 0.0
    %1637 = vmatpush1.msra.mxu0 0.0
    %1638 = vmatprep.subr.mxu0 0.0
    %1639 = vmatpush1.msra.mxu0 0.0
    %1640 = vmatprep.subr.mxu0 0.0
    %1641 = vmatpush1.msra.mxu0 0.0
    %1642 = vmatprep.subr.mxu0 0.0
    %1643 = vmatpush1.msra.mxu0 0.0
    %1644 = vmatprep.subr.mxu0 0.0
    %1645 = vmatpush1.msra.mxu0 0.0
    %1646 = vmatprep.subr.mxu0 0.0
    %1647 = vmatpush1.msra.mxu0 0.0
    %1648 = vmatprep.subr.mxu0 0.0
    %1649 = vmatpush1.msra.mxu0 0.0
    %1650 = vmatprep.subr.mxu0 0.0
    %1651 = vmatpush1.msra.mxu0 0.0
    %1652 = vmatprep.subr.mxu0 0.0
    %1653 = vmatpush1.msra.mxu0 0.0
    %1654 = vmatprep.subr.mxu0 0.0
    %1655 = vmatpush1.msra.mxu0 0.0
    %1656 = vmatprep.subr.mxu0 0.0
    %1657 = vmatpush1.msra.mxu0 0.0
    %1658 = vmatprep.subr.mxu0 0.0
    %1659 = vmatpush1.msra.mxu0 0.0
    %1660 = vmatprep.subr.mxu0 0.0
    %1661 = vmatpush1.msra.mxu0 0.0
    %1662 = vmatprep.subr.mxu0 0.0
    %1663 = vmatpush1.msra.mxu0 0.0
    %1664 = vmatprep.subr.mxu0 0.0
    %1665 = vmatpush1.msra.mxu0 0.0
    %1666 = vmatprep.subr.mxu0 0.0
    %1667 = vmatpush1.msra.mxu0 0.0
    %1668 = vmatprep.subr.mxu0 0.0
    %1669 = vmatpush1.msra.mxu0 0.0
    %1670 = vmatprep.subr.mxu0 0.0
    %1671 = vmatpush1.msra.mxu0 0.0
    %1672 = vmatprep.subr.mxu0 0.0
    %1673 = vmatpush1.msra.mxu0 0.0
    %1674 = vmatprep.subr.mxu0 0.0
    %1675 = vmatpush1.msra.mxu0 0.0
    %1676 = vmatprep.subr.mxu0 0.0
    %1677 = vmatpush1.msra.mxu0 0.0
    %1678 = vmatprep.subr.mxu0 0.0
    %1679 = vmatpush1.msra.mxu0 0.0
    %1680 = vmatprep.subr.mxu0 0.0
    %1681 = vmatpush1.msra.mxu0 0.0
    %1682 = vmatprep.mubr.f32.mxu0 0.0
    %1683 = vmatmul.mubr.f32.gmra.mrb[0].mxu0 %v1021
    %v1684 = vpop.f32.mrb[0].mxu0
    %v1685 = vadd.f32 %v1616, %v1684
    %v1686 = vpop.f32.mrb[0].mxu0
    %1687 = vmatprep.mubr.f32.mxu0 0.0
    %1688 = vmatmul.mubr.f32.gmra.mrb[0].mxu0 %v1024
    %v1689 = vpop.f32.mrb[0].mxu0
    %v1690 = vadd.f32 %v1616, %v1689
    %v1691 = vpop.f32.mrb[0].mxu0
    %1692 = vdwg.mxu0
    %s1693 = scalar_lea.vmem %s5, 32
    %v1694 = vld [vmem:[%s1693] sm:$0xff]
    %v1695 = vld [vmem:[%s1693 + $0x8] sm:$0xff]
    %v1696 = vld [vmem:[%s1693 + $0x10] sm:$0xff]
    %v1697 = vld [vmem:[%s1693 + $0x18] sm:$0xff]
    %s1698 = scalar_lea.vmem %s6, 1
    %v1699 = vld [vmem:[%s1698] sm:$0x1]
    %v1701 = vlaneseq
    %v1702 = vshrl.u32 %v1701, 7
    %v1703 = vsub.s32 0, %v1702
    %v1704 = vrot.slane %v1699, %v1703
    %1706 = vmatprep.subr.mxu0 0.0
    %1707 = vmatpush1.msra.mxu0 %v1694
    %1708 = vmatprep.subr.mxu0 0.0
    %1709 = vmatpush1.msra.mxu0 %v1695
    %1710 = vmatprep.subr.mxu0 0.0
    %1711 = vmatpush1.msra.mxu0 %v1696
    %1712 = vmatprep.subr.mxu0 0.0
    %1713 = vmatpush1.msra.mxu0 %v1697
    %1714 = vmatprep.subr.mxu0 0.0
    %1715 = vmatpush1.msra.mxu0 0.0
    %1716 = vmatprep.subr.mxu0 0.0
    %1717 = vmatpush1.msra.mxu0 0.0
    %1718 = vmatprep.subr.mxu0 0.0
    %1719 = vmatpush1.msra.mxu0 0.0
    %1720 = vmatprep.subr.mxu0 0.0
    %1721 = vmatpush1.msra.mxu0 0.0
    %1722 = vmatprep.subr.mxu0 0.0
    %1723 = vmatpush1.msra.mxu0 0.0
    %1724 = vmatprep.subr.mxu0 0.0
    %1725 = vmatpush1.msra.mxu0 0.0
    %1726 = vmatprep.subr.mxu0 0.0
    %1727 = vmatpush1.msra.mxu0 0.0
    %1728 = vmatprep.subr.mxu0 0.0
    %1729 = vmatpush1.msra.mxu0 0.0
    %1730 = vmatprep.subr.mxu0 0.0
    %1731 = vmatpush1.msra.mxu0 0.0
    %1732 = vmatprep.subr.mxu0 0.0
    %1733 = vmatpush1.msra.mxu0 0.0
    %1734 = vmatprep.subr.mxu0 0.0
    %1735 = vmatpush1.msra.mxu0 0.0
    %1736 = vmatprep.subr.mxu0 0.0
    %1737 = vmatpush1.msra.mxu0 0.0
    %1738 = vmatprep.subr.mxu0 0.0
    %1739 = vmatpush1.msra.mxu0 0.0
    %1740 = vmatprep.subr.mxu0 0.0
    %1741 = vmatpush1.msra.mxu0 0.0
    %1742 = vmatprep.subr.mxu0 0.0
    %1743 = vmatpush1.msra.mxu0 0.0
    %1744 = vmatprep.subr.mxu0 0.0
    %1745 = vmatpush1.msra.mxu0 0.0
    %1746 = vmatprep.subr.mxu0 0.0
    %1747 = vmatpush1.msra.mxu0 0.0
    %1748 = vmatprep.subr.mxu0 0.0
    %1749 = vmatpush1.msra.mxu0 0.0
    %1750 = vmatprep.subr.mxu0 0.0
    %1751 = vmatpush1.msra.mxu0 0.0
    %1752 = vmatprep.subr.mxu0 0.0
    %1753 = vmatpush1.msra.mxu0 0.0
    %1754 = vmatprep.subr.mxu0 0.0
    %1755 = vmatpush1.msra.mxu0 0.0
    %1756 = vmatprep.subr.mxu0 0.0
    %1757 = vmatpush1.msra.mxu0 0.0
    %1758 = vmatprep.subr.mxu0 0.0
    %1759 = vmatpush1.msra.mxu0 0.0
    %1760 = vmatprep.subr.mxu0 0.0
    %1761 = vmatpush1.msra.mxu0 0.0
    %1762 = vmatprep.subr.mxu0 0.0
    %1763 = vmatpush1.msra.mxu0 0.0
    %1764 = vmatprep.subr.mxu0 0.0
    %1765 = vmatpush1.msra.mxu0 0.0
    %1766 = vmatprep.subr.mxu0 0.0
    %1767 = vmatpush1.msra.mxu0 0.0
    %1768 = vmatprep.subr.mxu0 0.0
    %1769 = vmatpush1.msra.mxu0 0.0
    %1770 = vmatprep.mubr.f32.mxu0 0.0
    %1771 = vmatmul.mubr.f32.gmra.mrb[0].mxu0 %v422
    %v1772 = vpop.f32.mrb[0].mxu0
    %v1773 = vadd.f32 %v1704, %v1772
    %v1774 = vpop.f32.mrb[0].mxu0
    %1775 = vmatprep.mubr.f32.mxu0 0.0
    %1776 = vmatmul.mubr.f32.gmra.mrb[0].mxu0 %v425
    %v1777 = vpop.f32.mrb[0].mxu0
    %v1778 = vadd.f32 %v1704, %v1777
    %v1779 = vpop.f32.mrb[0].mxu0
    %1780 = vmatprep.mubr.f32.mxu0 0.0
    %1781 = vmatmul.mubr.f32.gmra.mrb[0].mxu0 %v428
    %v1782 = vpop.f32.mrb[0].mxu0
    %v1783 = vadd.f32 %v1704, %v1782
    %v1784 = vpop.f32.mrb[0].mxu0
    %1785 = vmatprep.mubr.f32.mxu0 0.0
    %1786 = vmatmul.mubr.f32.gmra.mrb[0].mxu0 %v431
    %v1787 = vpop.f32.mrb[0].mxu0
    %v1788 = vadd.f32 %v1704, %v1787
    %v1789 = vpop.f32.mrb[0].mxu0
    %1790 = vmatprep.mubr.f32.mxu0 0.0
    %1791 = vmatmul.mubr.f32.gmra.mrb[0].mxu0 %v434
    %v1792 = vpop.f32.mrb[0].mxu0
    %v1793 = vadd.f32 %v1704, %v1792
    %v1794 = vpop.f32.mrb[0].mxu0
    %1795 = vmatprep.mubr.f32.mxu0 0.0
    %1796 = vmatmul.mubr.f32.gmra.mrb[0].mxu0 %v437
    %v1797 = vpop.f32.mrb[0].mxu0
    %v1798 = vadd.f32 %v1704, %v1797
    %v1799 = vpop.f32.mrb[0].mxu0
    %1800 = vmatprep.mubr.f32.mxu0 0.0
    %1801 = vmatmul.mubr.f32.gmra.mrb[0].mxu0 %v440
    %v1802 = vpop.f32.mrb[0].mxu0
    %v1803 = vadd.f32 %v1704, %v1802
    %v1804 = vpop.f32.mrb[0].mxu0
    %1805 = vmatprep.mubr.f32.mxu0 0.0
    %1806 = vmatmul.mubr.f32.gmra.mrb[0].mxu0 %v443
    %v1807 = vpop.f32.mrb[0].mxu0
    %v1808 = vadd.f32 %v1704, %v1807
    %v1809 = vpop.f32.mrb[0].mxu0
    %1810 = vdwg.mxu0
    %v1812 = vsel %vm1217, %v1685, 0
    %v1815 = vsel %vm1217, %v1690, 0
    %v1818 = vsel %vm1217, %v1773, 0
    %v1821 = vsel %vm1217, %v1778, 0
    %v1824 = vsel %vm1217, %v1783, 0
    %v1827 = vsel %vm1217, %v1788, 0
    %v1830 = vsel %vm1217, %v1793, 0
    %v1833 = vsel %vm1217, %v1798, 0
    %v1836 = vsel %vm1217, %v1803, 0
    %v1839 = vsel %vm1217, %v1808, 0
    %1841 = vmatprep.subr.mxu0 0.0
    %1842 = vmatpush1.xpose.msra.mxu0 %v1818
    %1843 = vmatprep.subr.mxu0 0.0
    %1844 = vmatpush1.xpose.msra.mxu0 %v1821
    %1845 = vmatprep.subr.mxu0 0.0
    %1846 = vmatpush1.xpose.msra.mxu0 %v1824
    %1847 = vmatprep.subr.mxu0 0.0
    %1848 = vmatpush1.xpose.msra.mxu0 %v1827
    %1849 = vmatprep.subr.mxu0 0.0
    %1850 = vmatpush1.xpose.msra.mxu0 %v1830
    %1851 = vmatprep.subr.mxu0 0.0
    %1852 = vmatpush1.xpose.msra.mxu0 %v1833
    %1853 = vmatprep.subr.mxu0 0.0
    %1854 = vmatpush1.xpose.msra.mxu0 %v1836
    %1855 = vmatprep.subr.mxu0 0.0
    %1856 = vmatpush1.xpose.msra.mxu0 %v1839
    %1857 = vmatprep.subr.mxu0 0.0
    %1858 = vmatpush1.xpose.msra.mxu0 0.0
    %1859 = vmatprep.subr.mxu0 0.0
    %1860 = vmatpush1.xpose.msra.mxu0 0.0
    %1861 = vmatprep.subr.mxu0 0.0
    %1862 = vmatpush1.xpose.msra.mxu0 0.0
    %1863 = vmatprep.subr.mxu0 0.0
    %1864 = vmatpush1.xpose.msra.mxu0 0.0
    %1865 = vmatprep.subr.mxu0 0.0
    %1866 = vmatpush1.xpose.msra.mxu0 0.0
    %1867 = vmatprep.subr.mxu0 0.0
    %1868 = vmatpush1.xpose.msra.mxu0 0.0
    %1869 = vmatprep.subr.mxu0 0.0
    %1870 = vmatpush1.xpose.msra.mxu0 0.0
    %1871 = vmatprep.subr.mxu0 0.0
    %1872 = vmatpush1.xpose.msra.mxu0 0.0
    %1873 = vmatprep.subr.mxu0 0.0
    %1874 = vmatpush1.xpose.msra.mxu0 0.0
    %1875 = vmatprep.subr.mxu0 0.0
    %1876 = vmatpush1.xpose.msra.mxu0 0.0
    %1877 = vmatprep.subr.mxu0 0.0
    %1878 = vmatpush1.xpose.msra.mxu0 0.0
    %1879 = vmatprep.subr.mxu0 0.0
    %1880 = vmatpush1.xpose.msra.mxu0 0.0
    %1881 = vmatprep.subr.mxu0 0.0
    %1882 = vmatpush1.xpose.msra.mxu0 0.0
    %1883 = vmatprep.subr.mxu0 0.0
    %1884 = vmatpush1.xpose.msra.mxu0 0.0
    %1885 = vmatprep.subr.mxu0 0.0
    %1886 = vmatpush1.xpose.msra.mxu0 0.0
    %1887 = vmatprep.subr.mxu0 0.0
    %1888 = vmatpush1.xpose.msra.mxu0 0.0
    %1889 = vmatprep.subr.mxu0 0.0
    %1890 = vmatpush1.xpose.msra.mxu0 0.0
    %1891 = vmatprep.subr.mxu0 0.0
    %1892 = vmatpush1.xpose.msra.mxu0 0.0
    %1893 = vmatprep.subr.mxu0 0.0
    %1894 = vmatpush1.xpose.msra.mxu0 0.0
    %1895 = vmatprep.subr.mxu0 0.0
    %1896 = vmatpush1.xpose.msra.mxu0 0.0
    %1897 = vmatprep.subr.mxu0 0.0
    %1898 = vmatpush1.xpose.msra.mxu0 0.0
    %1899 = vmatprep.subr.mxu0 0.0
    %1900 = vmatpush1.xpose.msra.mxu0 0.0
    %1901 = vmatprep.subr.mxu0 0.0
    %1902 = vmatpush1.xpose.msra.mxu0 0.0
    %1903 = vmatprep.subr.mxu0 0.0
    %1904 = vmatpush1.xpose.msra.mxu0 0.0
    %1905 = vmatprep.mubr.f32.mxu0 0.0
    %1906 = vmatmul.mubr.f32.gmra.mrb[0].mxu0 %v1812
    %v1907 = vpop.f32.mrb[0].mxu0
    %v1908 = vadd.f32 0.0, %v1907
    %v1909 = vpop.f32.mrb[0].mxu0
    %1910 = vmatprep.mubr.f32.mxu0 0.0
    %1911 = vmatmul.mubr.f32.gmra.mrb[0].mxu0 %v1815
    %v1912 = vpop.f32.mrb[0].mxu0
    %v1913 = vadd.f32 0.0, %v1912
    %v1914 = vpop.f32.mrb[0].mxu0
    %1915 = vdwg.mxu0
    %v1916 = vmul.f32 %v1908, 0.35355338
    %v1917 = vmul.f32 %v1913, 0.35355338
    %vm1918 = vcmp.eq.f32.partialorder %v1916, 0.0
    %vm1919 = vcmp.eq.f32.partialorder %v1917, 0.0
    %vm1920 = vcmp.eq.f32.partialorder %v1916, -1e-09
    %vm1921 = vcmp.eq.f32.partialorder %v1917, -1e-09
    %vm1922 = vmor %vm1918, %vm1920
    %vm1923 = vmor %vm1919, %vm1921
    %v1924 = vsel %vm1922, 1, 0
    %v1925 = vsel %vm1923, 1, 0
    %v1926 = vcvt.s32.f32 %v1924
    %v1927 = vcvt.s32.f32 %v1925
    %v1928 = vld [vmem:[%s8] sm:$0xff]
    %v1929 = vld [vmem:[%s8 + $0x8] sm:$0xff]
    %v1930 = vld [vmem:[%s8 + $0x10] sm:$0xff]
    %v1931 = vld [vmem:[%s8 + $0x18] sm:$0xff]
    %v1932 = vld [vmem:[%s8 + $0x20] sm:$0xff]
    %v1933 = vld [vmem:[%s8 + $0x28] sm:$0xff]
    %v1934 = vld [vmem:[%s8 + $0x30] sm:$0xff]
    %v1935 = vld [vmem:[%s8 + $0x38] sm:$0xff]
    %v1937 = vsel %vm756, %v1916, 0
    %v1940 = vsel %vm756, %v1917, 0
    %1942 = vmatprep.subr.mxu0 0.0
    %1943 = vmatpush1.msra.mxu0 %v1928
    %1944 = vmatprep.subr.mxu0 0.0
    %1945 = vmatpush1.msra.mxu0 %v1929
    %1946 = vmatprep.subr.mxu0 0.0
    %1947 = vmatpush1.msra.mxu0 %v1930
    %1948 = vmatprep.subr.mxu0 0.0
    %1949 = vmatpush1.msra.mxu0 %v1931
    %1950 = vmatprep.subr.mxu0 0.0
    %1951 = vmatpush1.msra.mxu0 %v1932
    %1952 = vmatprep.subr.mxu0 0.0
    %1953 = vmatpush1.msra.mxu0 %v1933
    %1954 = vmatprep.subr.mxu0 0.0
    %1955 = vmatpush1.msra.mxu0 %v1934
    %1956 = vmatprep.subr.mxu0 0.0
    %1957 = vmatpush1.msra.mxu0 %v1935
    %1958 = vmatprep.subr.mxu0 0.0
    %1959 = vmatpush1.msra.mxu0 0.0
    %1960 = vmatprep.subr.mxu0 0.0
    %1961 = vmatpush1.msra.mxu0 0.0
    %1962 = vmatprep.subr.mxu0 0.0
    %1963 = vmatpush1.msra.mxu0 0.0
    %1964 = vmatprep.subr.mxu0 0.0
    %1965 = vmatpush1.msra.mxu0 0.0
    %1966 = vmatprep.subr.mxu0 0.0
    %1967 = vmatpush1.msra.mxu0 0.0
    %1968 = vmatprep.subr.mxu0 0.0
    %1969 = vmatpush1.msra.mxu0 0.0
    %1970 = vmatprep.subr.mxu0 0.0
    %1971 = vmatpush1.msra.mxu0 0.0
    %1972 = vmatprep.subr.mxu0 0.0
    %1973 = vmatpush1.msra.mxu0 0.0
    %1974 = vmatprep.subr.mxu0 0.0
    %1975 = vmatpush1.msra.mxu0 0.0
    %1976 = vmatprep.subr.mxu0 0.0
    %1977 = vmatpush1.msra.mxu0 0.0
    %1978 = vmatprep.subr.mxu0 0.0
    %1979 = vmatpush1.msra.mxu0 0.0
    %1980 = vmatprep.subr.mxu0 0.0
    %1981 = vmatpush1.msra.mxu0 0.0
    %1982 = vmatprep.subr.mxu0 0.0
    %1983 = vmatpush1.msra.mxu0 0.0
    %1984 = vmatprep.subr.mxu0 0.0
    %1985 = vmatpush1.msra.mxu0 0.0
    %1986 = vmatprep.subr.mxu0 0.0
    %1987 = vmatpush1.msra.mxu0 0.0
    %1988 = vmatprep.subr.mxu0 0.0
    %1989 = vmatpush1.msra.mxu0 0.0
    %1990 = vmatprep.subr.mxu0 0.0
    %1991 = vmatpush1.msra.mxu0 0.0
    %1992 = vmatprep.subr.mxu0 0.0
    %1993 = vmatpush1.msra.mxu0 0.0
    %1994 = vmatprep.subr.mxu0 0.0
    %1995 = vmatpush1.msra.mxu0 0.0
    %1996 = vmatprep.subr.mxu0 0.0
    %1997 = vmatpush1.msra.mxu0 0.0
    %1998 = vmatprep.subr.mxu0 0.0
    %1999 = vmatpush1.msra.mxu0 0.0
    %2000 = vmatprep.subr.mxu0 0.0
    %2001 = vmatpush1.msra.mxu0 0.0
    %2002 = vmatprep.subr.mxu0 0.0
    %2003 = vmatpush1.msra.mxu0 0.0
    %2004 = vmatprep.subr.mxu0 0.0
    %2005 = vmatpush1.msra.mxu0 0.0
    %2006 = vmatprep.mubr.f32.mxu0 0.0
    %2007 = vmatmul.mubr.f32.gmra.mrb[0].mxu0 %v1937
    %v2008 = vpop.f32.mrb[0].mxu0
    %v2009 = vadd.f32 0.0, %v2008
    %v2010 = vpop.f32.mrb[0].mxu0
    %2011 = vmatprep.mubr.f32.mxu0 0.0
    %2012 = vmatmul.mubr.f32.gmra.mrb[0].mxu0 %v1940
    %v2013 = vpop.f32.mrb[0].mxu0
    %v2014 = vadd.f32 0.0, %v2013
    %v2015 = vpop.f32.mrb[0].mxu0
    %2016 = vdwg.mxu0
    %v2018 = vsel %vm756, %v1926, 0
    %v2021 = vsel %vm756, %v1927, 0
    %2023 = vmatprep.subr.mxu0 0.0
    %2024 = vmatpush1.msra.mxu0 %v1928
    %2025 = vmatprep.subr.mxu0 0.0
    %2026 = vmatpush1.msra.mxu0 %v1929
    %2027 = vmatprep.subr.mxu0 0.0
    %2028 = vmatpush1.msra.mxu0 %v1930
    %2029 = vmatprep.subr.mxu0 0.0
    %2030 = vmatpush1.msra.mxu0 %v1931
    %2031 = vmatprep.subr.mxu0 0.0
    %2032 = vmatpush1.msra.mxu0 %v1932
    %2033 = vmatprep.subr.mxu0 0.0
    %2034 = vmatpush1.msra.mxu0 %v1933
    %2035 = vmatprep.subr.mxu0 0.0
    %2036 = vmatpush1.msra.mxu0 %v1934
    %2037 = vmatprep.subr.mxu0 0.0
    %2038 = vmatpush1.msra.mxu0 %v1935
    %2039 = vmatprep.subr.mxu0 0.0
    %2040 = vmatpush1.msra.mxu0 0.0
    %2041 = vmatprep.subr.mxu0 0.0
    %2042 = vmatpush1.msra.mxu0 0.0
    %2043 = vmatprep.subr.mxu0 0.0
    %2044 = vmatpush1.msra.mxu0 0.0
    %2045 = vmatprep.subr.mxu0 0.0
    %2046 = vmatpush1.msra.mxu0 0.0
    %2047 = vmatprep.subr.mxu0 0.0
    %2048 = vmatpush1.msra.mxu0 0.0
    %2049 = vmatprep.subr.mxu0 0.0
    %2050 = vmatpush1.msra.mxu0 0.0
    %2051 = vmatprep.subr.mxu0 0.0
    %2052 = vmatpush1.msra.mxu0 0.0
    %2053 = vmatprep.subr.mxu0 0.0
    %2054 = vmatpush1.msra.mxu0 0.0
    %2055 = vmatprep.subr.mxu0 0.0
    %2056 = vmatpush1.msra.mxu0 0.0
    %2057 = vmatprep.subr.mxu0 0.0
    %2058 = vmatpush1.msra.mxu0 0.0
    %2059 = vmatprep.subr.mxu0 0.0
    %2060 = vmatpush1.msra.mxu0 0.0
    %2061 = vmatprep.subr.mxu0 0.0
    %2062 = vmatpush1.msra.mxu0 0.0
    %2063 = vmatprep.subr.mxu0 0.0
    %2064 = vmatpush1.msra.mxu0 0.0
    %2065 = vmatprep.subr.mxu0 0.0
    %2066 = vmatpush1.msra.mxu0 0.0
    %2067 = vmatprep.subr.mxu0 0.0
    %2068 = vmatpush1.msra.mxu0 0.0
    %2069 = vmatprep.subr.mxu0 0.0
    %2070 = vmatpush1.msra.mxu0 0.0
    %2071 = vmatprep.subr.mxu0 0.0
    %2072 = vmatpush1.msra.mxu0 0.0
    %2073 = vmatprep.subr.mxu0 0.0
    %2074 = vmatpush1.msra.mxu0 0.0
    %2075 = vmatprep.subr.mxu0 0.0
    %2076 = vmatpush1.msra.mxu0 0.0
    %2077 = vmatprep.subr.mxu0 0.0
    %2078 = vmatpush1.msra.mxu0 0.0
    %2079 = vmatprep.subr.mxu0 0.0
    %2080 = vmatpush1.msra.mxu0 0.0
    %2081 = vmatprep.subr.mxu0 0.0
    %2082 = vmatpush1.msra.mxu0 0.0
    %2083 = vmatprep.subr.mxu0 0.0
    %2084 = vmatpush1.msra.mxu0 0.0
    %2085 = vmatprep.subr.mxu0 0.0
    %2086 = vmatpush1.msra.mxu0 0.0
    %2087 = vmatprep.mubr.f32.mxu0 0.0
    %2088 = vmatmul.mubr.f32.gmra.mrb[0].mxu0 %v2018
    %v2089 = vpop.f32.mrb[0].mxu0
    %v2090 = vadd.f32 0.0, %v2089
    %v2091 = vpop.f32.mrb[0].mxu0
    %2092 = vmatprep.mubr.f32.mxu0 0.0
    %2093 = vmatmul.mubr.f32.gmra.mrb[0].mxu0 %v2021
    %v2094 = vpop.f32.mrb[0].mxu0
    %v2095 = vadd.f32 0.0, %v2094
    %v2096 = vpop.f32.mrb[0].mxu0
    %2097 = vdwg.mxu0
    %vm2098 = vcmp.gt.f32.partialorder %v2090, 0.5
    %vm2099 = vcmp.gt.f32.partialorder %v2095, 0.5
    %v2100 = vsel %vm2098, 0.0, %v2009
    %v2101 = vsel %vm2099, 0.0, %v2014
    %v2102 = vld [vmem:[%s9] sm:$0xff]
    %v2103 = vld [vmem:[%s9 + $0x8] sm:$0xff]
    %v2104 = vld [vmem:[%s9 + $0x10] sm:$0xff]
    %v2105 = vld [vmem:[%s9 + $0x18] sm:$0xff]
    %v2106 = vld [vmem:[%s9 + $0x20] sm:$0xff]
    %v2107 = vld [vmem:[%s9 + $0x28] sm:$0xff]
    %v2108 = vld [vmem:[%s9 + $0x30] sm:$0xff]
    %v2109 = vld [vmem:[%s9 + $0x38] sm:$0xff]
    %v2111 = vsel %vm756, %v2100, 0
    %v2114 = vsel %vm756, %v2101, 0
    %2116 = vmatprep.subr.mxu0 0.0
    %2117 = vmatpush1.msra.mxu0 %v2102
    %2118 = vmatprep.subr.mxu0 0.0
    %2119 = vmatpush1.msra.mxu0 %v2103
    %2120 = vmatprep.subr.mxu0 0.0
    %2121 = vmatpush1.msra.mxu0 %v2104
    %2122 = vmatprep.subr.mxu0 0.0
    %2123 = vmatpush1.msra.mxu0 %v2105
    %2124 = vmatprep.subr.mxu0 0.0
    %2125 = vmatpush1.msra.mxu0 %v2106
    %2126 = vmatprep.subr.mxu0 0.0
    %2127 = vmatpush1.msra.mxu0 %v2107
    %2128 = vmatprep.subr.mxu0 0.0
    %2129 = vmatpush1.msra.mxu0 %v2108
    %2130 = vmatprep.subr.mxu0 0.0
    %2131 = vmatpush1.msra.mxu0 %v2109
    %2132 = vmatprep.subr.mxu0 0.0
    %2133 = vmatpush1.msra.mxu0 0.0
    %2134 = vmatprep.subr.mxu0 0.0
    %2135 = vmatpush1.msra.mxu0 0.0
    %2136 = vmatprep.subr.mxu0 0.0
    %2137 = vmatpush1.msra.mxu0 0.0
    %2138 = vmatprep.subr.mxu0 0.0
    %2139 = vmatpush1.msra.mxu0 0.0
    %2140 = vmatprep.subr.mxu0 0.0
    %2141 = vmatpush1.msra.mxu0 0.0
    %2142 = vmatprep.subr.mxu0 0.0
    %2143 = vmatpush1.msra.mxu0 0.0
    %2144 = vmatprep.subr.mxu0 0.0
    %2145 = vmatpush1.msra.mxu0 0.0
    %2146 = vmatprep.subr.mxu0 0.0
    %2147 = vmatpush1.msra.mxu0 0.0
    %2148 = vmatprep.subr.mxu0 0.0
    %2149 = vmatpush1.msra.mxu0 0.0
    %2150 = vmatprep.subr.mxu0 0.0
    %2151 = vmatpush1.msra.mxu0 0.0
    %2152 = vmatprep.subr.mxu0 0.0
    %2153 = vmatpush1.msra.mxu0 0.0
    %2154 = vmatprep.subr.mxu0 0.0
    %2155 = vmatpush1.msra.mxu0 0.0
    %2156 = vmatprep.subr.mxu0 0.0
    %2157 = vmatpush1.msra.mxu0 0.0
    %2158 = vmatprep.subr.mxu0 0.0
    %2159 = vmatpush1.msra.mxu0 0.0
    %2160 = vmatprep.subr.mxu0 0.0
    %2161 = vmatpush1.msra.mxu0 0.0
    %2162 = vmatprep.subr.mxu0 0.0
    %2163 = vmatpush1.msra.mxu0 0.0
    %2164 = vmatprep.subr.mxu0 0.0
    %2165 = vmatpush1.msra.mxu0 0.0
    %2166 = vmatprep.subr.mxu0 0.0
    %2167 = vmatpush1.msra.mxu0 0.0
    %2168 = vmatprep.subr.mxu0 0.0
    %2169 = vmatpush1.msra.mxu0 0.0
    %2170 = vmatprep.subr.mxu0 0.0
    %2171 = vmatpush1.msra.mxu0 0.0
    %2172 = vmatprep.subr.mxu0 0.0
    %2173 = vmatpush1.msra.mxu0 0.0
    %2174 = vmatprep.subr.mxu0 0.0
    %2175 = vmatpush1.msra.mxu0 0.0
    %2176 = vmatprep.subr.mxu0 0.0
    %2177 = vmatpush1.msra.mxu0 0.0
    %2178 = vmatprep.subr.mxu0 0.0
    %2179 = vmatpush1.msra.mxu0 0.0
    %2180 = vmatprep.mubr.f32.mxu0 0.0
    %2181 = vmatmul.mubr.f32.gmra.mrb[0].mxu0 %v2111
    %v2182 = vpop.f32.mrb[0].mxu0
    %v2183 = vadd.f32 0.0, %v2182
    %v2184 = vpop.f32.mrb[0].mxu0
    %2185 = vmatprep.mubr.f32.mxu0 0.0
    %2186 = vmatmul.mubr.f32.gmra.mrb[0].mxu0 %v2114
    %v2187 = vpop.f32.mrb[0].mxu0
    %v2188 = vadd.f32 0.0, %v2187
    %v2189 = vpop.f32.mrb[0].mxu0
    %2190 = vdwg.mxu0
    %s2191 = scalar_lea.vmem [#allocation7], 8
    %2192 = vst.msk [vmem:[%s2191] sm:$0xff] %vm1217, %v2183
    %2194 = vrot.lane.b32.xlu0 %v2188, 120
    %v2195 = vpop.permute.xlu0 %2194
    %s2197 = scalar_lea.vmem [#allocation7], 40
    %2198 = vst.msk [vmem:[%s2197] sm:$0xff] %vm1217, %v2195
    %s2199 = scalar_lea.vmem %s3, 64
    %v2200 = vld [vmem:[%s2199] sm:$0xff]
    %v2201 = vld [vmem:[%s2199 + $0x8] sm:$0xff]
    %v2202 = vld [vmem:[%s2199 + $0x10] sm:$0xff]
    %v2203 = vld [vmem:[%s2199 + $0x18] sm:$0xff]
    %s2204 = scalar_lea.vmem %s4, 2
    %v2205 = vld [vmem:[%s2204] sm:$0x1]
    %v2207 = vlaneseq
    %v2208 = vshrl.u32 %v2207, 7
    %v2209 = vsub.s32 0, %v2208
    %v2210 = vrot.slane %v2205, %v2209
    %2212 = vmatprep.subr.mxu0 0.0
    %2213 = vmatpush1.msra.mxu0 %v2200
    %2214 = vmatprep.subr.mxu0 0.0
    %2215 = vmatpush1.msra.mxu0 %v2201
    %2216 = vmatprep.subr.mxu0 0.0
    %2217 = vmatpush1.msra.mxu0 %v2202
    %2218 = vmatprep.subr.mxu0 0.0
    %2219 = vmatpush1.msra.mxu0 %v2203
    %2220 = vmatprep.subr.mxu0 0.0
    %2221 = vmatpush1.msra.mxu0 0.0
    %2222 = vmatprep.subr.mxu0 0.0
    %2223 = vmatpush1.msra.mxu0 0.0
    %2224 = vmatprep.subr.mxu0 0.0
    %2225 = vmatpush1.msra.mxu0 0.0
    %2226 = vmatprep.subr.mxu0 0.0
    %2227 = vmatpush1.msra.mxu0 0.0
    %2228 = vmatprep.subr.mxu0 0.0
    %2229 = vmatpush1.msra.mxu0 0.0
    %2230 = vmatprep.subr.mxu0 0.0
    %2231 = vmatpush1.msra.mxu0 0.0
    %2232 = vmatprep.subr.mxu0 0.0
    %2233 = vmatpush1.msra.mxu0 0.0
    %2234 = vmatprep.subr.mxu0 0.0
    %2235 = vmatpush1.msra.mxu0 0.0
    %2236 = vmatprep.subr.mxu0 0.0
    %2237 = vmatpush1.msra.mxu0 0.0
    %2238 = vmatprep.subr.mxu0 0.0
    %2239 = vmatpush1.msra.mxu0 0.0
    %2240 = vmatprep.subr.mxu0 0.0
    %2241 = vmatpush1.msra.mxu0 0.0
    %2242 = vmatprep.subr.mxu0 0.0
    %2243 = vmatpush1.msra.mxu0 0.0
    %2244 = vmatprep.subr.mxu0 0.0
    %2245 = vmatpush1.msra.mxu0 0.0
    %2246 = vmatprep.subr.mxu0 0.0
    %2247 = vmatpush1.msra.mxu0 0.0
    %2248 = vmatprep.subr.mxu0 0.0
    %2249 = vmatpush1.msra.mxu0 0.0
    %2250 = vmatprep.subr.mxu0 0.0
    %2251 = vmatpush1.msra.mxu0 0.0
    %2252 = vmatprep.subr.mxu0 0.0
    %2253 = vmatpush1.msra.mxu0 0.0
    %2254 = vmatprep.subr.mxu0 0.0
    %2255 = vmatpush1.msra.mxu0 0.0
    %2256 = vmatprep.subr.mxu0 0.0
    %2257 = vmatpush1.msra.mxu0 0.0
    %2258 = vmatprep.subr.mxu0 0.0
    %2259 = vmatpush1.msra.mxu0 0.0
    %2260 = vmatprep.subr.mxu0 0.0
    %2261 = vmatpush1.msra.mxu0 0.0
    %2262 = vmatprep.subr.mxu0 0.0
    %2263 = vmatpush1.msra.mxu0 0.0
    %2264 = vmatprep.subr.mxu0 0.0
    %2265 = vmatpush1.msra.mxu0 0.0
    %2266 = vmatprep.subr.mxu0 0.0
    %2267 = vmatpush1.msra.mxu0 0.0
    %2268 = vmatprep.subr.mxu0 0.0
    %2269 = vmatpush1.msra.mxu0 0.0
    %2270 = vmatprep.subr.mxu0 0.0
    %2271 = vmatpush1.msra.mxu0 0.0
    %2272 = vmatprep.subr.mxu0 0.0
    %2273 = vmatpush1.msra.mxu0 0.0
    %2274 = vmatprep.subr.mxu0 0.0
    %2275 = vmatpush1.msra.mxu0 0.0
    %2276 = vmatprep.mubr.f32.mxu0 0.0
    %2277 = vmatmul.mubr.f32.gmra.mrb[0].mxu0 %v1021
    %v2278 = vpop.f32.mrb[0].mxu0
    %v2279 = vadd.f32 %v2210, %v2278
    %v2280 = vpop.f32.mrb[0].mxu0
    %2281 = vmatprep.mubr.f32.mxu0 0.0
    %2282 = vmatmul.mubr.f32.gmra.mrb[0].mxu0 %v1024
    %v2283 = vpop.f32.mrb[0].mxu0
    %v2284 = vadd.f32 %v2210, %v2283
    %v2285 = vpop.f32.mrb[0].mxu0
    %2286 = vdwg.mxu0
    %s2287 = scalar_lea.vmem %s5, 64
    %v2288 = vld [vmem:[%s2287] sm:$0xff]
    %v2289 = vld [vmem:[%s2287 + $0x8] sm:$0xff]
    %v2290 = vld [vmem:[%s2287 + $0x10] sm:$0xff]
    %v2291 = vld [vmem:[%s2287 + $0x18] sm:$0xff]
    %s2292 = scalar_lea.vmem %s6, 2
    %v2293 = vld [vmem:[%s2292] sm:$0x1]
    %v2295 = vlaneseq
    %v2296 = vshrl.u32 %v2295, 7
    %v2297 = vsub.s32 0, %v2296
    %v2298 = vrot.slane %v2293, %v2297
    %2300 = vmatprep.subr.mxu0 0.0
    %2301 = vmatpush1.msra.mxu0 %v2288
    %2302 = vmatprep.subr.mxu0 0.0
    %2303 = vmatpush1.msra.mxu0 %v2289
    %2304 = vmatprep.subr.mxu0 0.0
    %2305 = vmatpush1.msra.mxu0 %v2290
    %2306 = vmatprep.subr.mxu0 0.0
    %2307 = vmatpush1.msra.mxu0 %v2291
    %2308 = vmatprep.subr.mxu0 0.0
    %2309 = vmatpush1.msra.mxu0 0.0
    %2310 = vmatprep.subr.mxu0 0.0
    %2311 = vmatpush1.msra.mxu0 0.0
    %2312 = vmatprep.subr.mxu0 0.0
    %2313 = vmatpush1.msra.mxu0 0.0
    %2314 = vmatprep.subr.mxu0 0.0
    %2315 = vmatpush1.msra.mxu0 0.0
    %2316 = vmatprep.subr.mxu0 0.0
    %2317 = vmatpush1.msra.mxu0 0.0
    %2318 = vmatprep.subr.mxu0 0.0
    %2319 = vmatpush1.msra.mxu0 0.0
    %2320 = vmatprep.subr.mxu0 0.0
    %2321 = vmatpush1.msra.mxu0 0.0
    %2322 = vmatprep.subr.mxu0 0.0
    %2323 = vmatpush1.msra.mxu0 0.0
    %2324 = vmatprep.subr.mxu0 0.0
    %2325 = vmatpush1.msra.mxu0 0.0
    %2326 = vmatprep.subr.mxu0 0.0
    %2327 = vmatpush1.msra.mxu0 0.0
    %2328 = vmatprep.subr.mxu0 0.0
    %2329 = vmatpush1.msra.mxu0 0.0
    %2330 = vmatprep.subr.mxu0 0.0
    %2331 = vmatpush1.msra.mxu0 0.0
    %2332 = vmatprep.subr.mxu0 0.0
    %2333 = vmatpush1.msra.mxu0 0.0
    %2334 = vmatprep.subr.mxu0 0.0
    %2335 = vmatpush1.msra.mxu0 0.0
    %2336 = vmatprep.subr.mxu0 0.0
    %2337 = vmatpush1.msra.mxu0 0.0
    %2338 = vmatprep.subr.mxu0 0.0
    %2339 = vmatpush1.msra.mxu0 0.0
    %2340 = vmatprep.subr.mxu0 0.0
    %2341 = vmatpush1.msra.mxu0 0.0
    %2342 = vmatprep.subr.mxu0 0.0
    %2343 = vmatpush1.msra.mxu0 0.0
    %2344 = vmatprep.subr.mxu0 0.0
    %2345 = vmatpush1.msra.mxu0 0.0
    %2346 = vmatprep.subr.mxu0 0.0
    %2347 = vmatpush1.msra.mxu0 0.0
    %2348 = vmatprep.subr.mxu0 0.0
    %2349 = vmatpush1.msra.mxu0 0.0
    %2350 = vmatprep.subr.mxu0 0.0
    %2351 = vmatpush1.msra.mxu0 0.0
    %2352 = vmatprep.subr.mxu0 0.0
    %2353 = vmatpush1.msra.mxu0 0.0
    %2354 = vmatprep.subr.mxu0 0.0
    %2355 = vmatpush1.msra.mxu0 0.0
    %2356 = vmatprep.subr.mxu0 0.0
    %2357 = vmatpush1.msra.mxu0 0.0
    %2358 = vmatprep.subr.mxu0 0.0
    %2359 = vmatpush1.msra.mxu0 0.0
    %2360 = vmatprep.subr.mxu0 0.0
    %2361 = vmatpush1.msra.mxu0 0.0
    %2362 = vmatprep.subr.mxu0 0.0
    %2363 = vmatpush1.msra.mxu0 0.0
    %2364 = vmatprep.mubr.f32.mxu0 0.0
    %2365 = vmatmul.mubr.f32.gmra.mrb[0].mxu0 %v422
    %v2366 = vpop.f32.mrb[0].mxu0
    %v2367 = vadd.f32 %v2298, %v2366
    %v2368 = vpop.f32.mrb[0].mxu0
    %2369 = vmatprep.mubr.f32.mxu0 0.0
    %2370 = vmatmul.mubr.f32.gmra.mrb[0].mxu0 %v425
    %v2371 = vpop.f32.mrb[0].mxu0
    %v2372 = vadd.f32 %v2298, %v2371
    %v2373 = vpop.f32.mrb[0].mxu0
    %2374 = vmatprep.mubr.f32.mxu0 0.0
    %2375 = vmatmul.mubr.f32.gmra.mrb[0].mxu0 %v428
    %v2376 = vpop.f32.mrb[0].mxu0
    %v2377 = vadd.f32 %v2298, %v2376
    %v2378 = vpop.f32.mrb[0].mxu0
    %2379 = vmatprep.mubr.f32.mxu0 0.0
    %2380 = vmatmul.mubr.f32.gmra.mrb[0].mxu0 %v431
    %v2381 = vpop.f32.mrb[0].mxu0
    %v2382 = vadd.f32 %v2298, %v2381
    %v2383 = vpop.f32.mrb[0].mxu0
    %2384 = vmatprep.mubr.f32.mxu0 0.0
    %2385 = vmatmul.mubr.f32.gmra.mrb[0].mxu0 %v434
    %v2386 = vpop.f32.mrb[0].mxu0
    %v2387 = vadd.f32 %v2298, %v2386
    %v2388 = vpop.f32.mrb[0].mxu0
    %2389 = vmatprep.mubr.f32.mxu0 0.0
    %2390 = vmatmul.mubr.f32.gmra.mrb[0].mxu0 %v437
    %v2391 = vpop.f32.mrb[0].mxu0
    %v2392 = vadd.f32 %v2298, %v2391
    %v2393 = vpop.f32.mrb[0].mxu0
    %2394 = vmatprep.mubr.f32.mxu0 0.0
    %2395 = vmatmul.mubr.f32.gmra.mrb[0].mxu0 %v440
    %v2396 = vpop.f32.mrb[0].mxu0
    %v2397 = vadd.f32 %v2298, %v2396
    %v2398 = vpop.f32.mrb[0].mxu0
    %2399 = vmatprep.mubr.f32.mxu0 0.0
    %2400 = vmatmul.mubr.f32.gmra.mrb[0].mxu0 %v443
    %v2401 = vpop.f32.mrb[0].mxu0
    %v2402 = vadd.f32 %v2298, %v2401
    %v2403 = vpop.f32.mrb[0].mxu0
    %2404 = vdwg.mxu0
    %v2406 = vsel %vm1217, %v2279, 0
    %v2409 = vsel %vm1217, %v2284, 0
    %v2412 = vsel %vm1217, %v2367, 0
    %v2415 = vsel %vm1217, %v2372, 0
    %v2418 = vsel %vm1217, %v2377, 0
    %v2421 = vsel %vm1217, %v2382, 0
    %v2424 = vsel %vm1217, %v2387, 0
    %v2427 = vsel %vm1217, %v2392, 0
    %v2430 = vsel %vm1217, %v2397, 0
    %v2433 = vsel %vm1217, %v2402, 0
    %2435 = vmatprep.subr.mxu0 0.0
    %2436 = vmatpush1.xpose.msra.mxu0 %v2412
    %2437 = vmatprep.subr.mxu0 0.0
    %2438 = vmatpush1.xpose.msra.mxu0 %v2415
    %2439 = vmatprep.subr.mxu0 0.0
    %2440 = vmatpush1.xpose.msra.mxu0 %v2418
    %2441 = vmatprep.subr.mxu0 0.0
    %2442 = vmatpush1.xpose.msra.mxu0 %v2421
    %2443 = vmatprep.subr.mxu0 0.0
    %2444 = vmatpush1.xpose.msra.mxu0 %v2424
    %2445 = vmatprep.subr.mxu0 0.0
    %2446 = vmatpush1.xpose.msra.mxu0 %v2427
    %2447 = vmatprep.subr.mxu0 0.0
    %2448 = vmatpush1.xpose.msra.mxu0 %v2430
    %2449 = vmatprep.subr.mxu0 0.0
    %2450 = vmatpush1.xpose.msra.mxu0 %v2433
    %2451 = vmatprep.subr.mxu0 0.0
    %2452 = vmatpush1.xpose.msra.mxu0 0.0
    %2453 = vmatprep.subr.mxu0 0.0
    %2454 = vmatpush1.xpose.msra.mxu0 0.0
    %2455 = vmatprep.subr.mxu0 0.0
    %2456 = vmatpush1.xpose.msra.mxu0 0.0
    %2457 = vmatprep.subr.mxu0 0.0
    %2458 = vmatpush1.xpose.msra.mxu0 0.0
    %2459 = vmatprep.subr.mxu0 0.0
    %2460 = vmatpush1.xpose.msra.mxu0 0.0
    %2461 = vmatprep.subr.mxu0 0.0
    %2462 = vmatpush1.xpose.msra.mxu0 0.0
    %2463 = vmatprep.subr.mxu0 0.0
    %2464 = vmatpush1.xpose.msra.mxu0 0.0
    %2465 = vmatprep.subr.mxu0 0.0
    %2466 = vmatpush1.xpose.msra.mxu0 0.0
    %2467 = vmatprep.subr.mxu0 0.0
    %2468 = vmatpush1.xpose.msra.mxu0 0.0
    %2469 = vmatprep.subr.mxu0 0.0
    %2470 = vmatpush1.xpose.msra.mxu0 0.0
    %2471 = vmatprep.subr.mxu0 0.0
    %2472 = vmatpush1.xpose.msra.mxu0 0.0
    %2473 = vmatprep.subr.mxu0 0.0
    %2474 = vmatpush1.xpose.msra.mxu0 0.0
    %2475 = vmatprep.subr.mxu0 0.0
    %2476 = vmatpush1.xpose.msra.mxu0 0.0
    %2477 = vmatprep.subr.mxu0 0.0
    %2478 = vmatpush1.xpose.msra.mxu0 0.0
    %2479 = vmatprep.subr.mxu0 0.0
    %2480 = vmatpush1.xpose.msra.mxu0 0.0
    %2481 = vmatprep.subr.mxu0 0.0
    %2482 = vmatpush1.xpose.msra.mxu0 0.0
    %2483 = vmatprep.subr.mxu0 0.0
    %2484 = vmatpush1.xpose.msra.mxu0 0.0
    %2485 = vmatprep.subr.mxu0 0.0
    %2486 = vmatpush1.xpose.msra.mxu0 0.0
    %2487 = vmatprep.subr.mxu0 0.0
    %2488 = vmatpush1.xpose.msra.mxu0 0.0
    %2489 = vmatprep.subr.mxu0 0.0
    %2490 = vmatpush1.xpose.msra.mxu0 0.0
    %2491 = vmatprep.subr.mxu0 0.0
    %2492 = vmatpush1.xpose.msra.mxu0 0.0
    %2493 = vmatprep.subr.mxu0 0.0
    %2494 = vmatpush1.xpose.msra.mxu0 0.0
    %2495 = vmatprep.subr.mxu0 0.0
    %2496 = vmatpush1.xpose.msra.mxu0 0.0
    %2497 = vmatprep.subr.mxu0 0.0
    %2498 = vmatpush1.xpose.msra.mxu0 0.0
    %2499 = vmatprep.mubr.f32.mxu0 0.0
    %2500 = vmatmul.mubr.f32.gmra.mrb[0].mxu0 %v2406
    %v2501 = vpop.f32.mrb[0].mxu0
    %v2502 = vadd.f32 0.0, %v2501
    %v2503 = vpop.f32.mrb[0].mxu0
    %2504 = vmatprep.mubr.f32.mxu0 0.0
    %2505 = vmatmul.mubr.f32.gmra.mrb[0].mxu0 %v2409
    %v2506 = vpop.f32.mrb[0].mxu0
    %v2507 = vadd.f32 0.0, %v2506
    %v2508 = vpop.f32.mrb[0].mxu0
    %2509 = vdwg.mxu0
    %v2510 = vmul.f32 %v2502, 0.35355338
    %v2511 = vmul.f32 %v2507, 0.35355338
    %vm2512 = vcmp.eq.f32.partialorder %v2510, 0.0
    %vm2513 = vcmp.eq.f32.partialorder %v2511, 0.0
    %vm2514 = vcmp.eq.f32.partialorder %v2510, -1e-09
    %vm2515 = vcmp.eq.f32.partialorder %v2511, -1e-09
    %vm2516 = vmor %vm2512, %vm2514
    %vm2517 = vmor %vm2513, %vm2515
    %v2518 = vsel %vm2516, 1, 0
    %v2519 = vsel %vm2517, 1, 0
    %v2520 = vcvt.s32.f32 %v2518
    %v2521 = vcvt.s32.f32 %v2519
    %v2522 = vld [vmem:[%s8] sm:$0xff]
    %v2523 = vld [vmem:[%s8 + $0x8] sm:$0xff]
    %v2524 = vld [vmem:[%s8 + $0x10] sm:$0xff]
    %v2525 = vld [vmem:[%s8 + $0x18] sm:$0xff]
    %v2526 = vld [vmem:[%s8 + $0x20] sm:$0xff]
    %v2527 = vld [vmem:[%s8 + $0x28] sm:$0xff]
    %v2528 = vld [vmem:[%s8 + $0x30] sm:$0xff]
    %v2529 = vld [vmem:[%s8 + $0x38] sm:$0xff]
    %v2531 = vsel %vm756, %v2510, 0
    %v2534 = vsel %vm756, %v2511, 0
    %2536 = vmatprep.subr.mxu0 0.0
    %2537 = vmatpush1.msra.mxu0 %v2522
    %2538 = vmatprep.subr.mxu0 0.0
    %2539 = vmatpush1.msra.mxu0 %v2523
    %2540 = vmatprep.subr.mxu0 0.0
    %2541 = vmatpush1.msra.mxu0 %v2524
    %2542 = vmatprep.subr.mxu0 0.0
    %2543 = vmatpush1.msra.mxu0 %v2525
    %2544 = vmatprep.subr.mxu0 0.0
    %2545 = vmatpush1.msra.mxu0 %v2526
    %2546 = vmatprep.subr.mxu0 0.0
    %2547 = vmatpush1.msra.mxu0 %v2527
    %2548 = vmatprep.subr.mxu0 0.0
    %2549 = vmatpush1.msra.mxu0 %v2528
    %2550 = vmatprep.subr.mxu0 0.0
    %2551 = vmatpush1.msra.mxu0 %v2529
    %2552 = vmatprep.subr.mxu0 0.0
    %2553 = vmatpush1.msra.mxu0 0.0
    %2554 = vmatprep.subr.mxu0 0.0
    %2555 = vmatpush1.msra.mxu0 0.0
    %2556 = vmatprep.subr.mxu0 0.0
    %2557 = vmatpush1.msra.mxu0 0.0
    %2558 = vmatprep.subr.mxu0 0.0
    %2559 = vmatpush1.msra.mxu0 0.0
    %2560 = vmatprep.subr.mxu0 0.0
    %2561 = vmatpush1.msra.mxu0 0.0
    %2562 = vmatprep.subr.mxu0 0.0
    %2563 = vmatpush1.msra.mxu0 0.0
    %2564 = vmatprep.subr.mxu0 0.0
    %2565 = vmatpush1.msra.mxu0 0.0
    %2566 = vmatprep.subr.mxu0 0.0
    %2567 = vmatpush1.msra.mxu0 0.0
    %2568 = vmatprep.subr.mxu0 0.0
    %2569 = vmatpush1.msra.mxu0 0.0
    %2570 = vmatprep.subr.mxu0 0.0
    %2571 = vmatpush1.msra.mxu0 0.0
    %2572 = vmatprep.subr.mxu0 0.0
    %2573 = vmatpush1.msra.mxu0 0.0
    %2574 = vmatprep.subr.mxu0 0.0
    %2575 = vmatpush1.msra.mxu0 0.0
    %2576 = vmatprep.subr.mxu0 0.0
    %2577 = vmatpush1.msra.mxu0 0.0
    %2578 = vmatprep.subr.mxu0 0.0
    %2579 = vmatpush1.msra.mxu0 0.0
    %2580 = vmatprep.subr.mxu0 0.0
    %2581 = vmatpush1.msra.mxu0 0.0
    %2582 = vmatprep.subr.mxu0 0.0
    %2583 = vmatpush1.msra.mxu0 0.0
    %2584 = vmatprep.subr.mxu0 0.0
    %2585 = vmatpush1.msra.mxu0 0.0
    %2586 = vmatprep.subr.mxu0 0.0
    %2587 = vmatpush1.msra.mxu0 0.0
    %2588 = vmatprep.subr.mxu0 0.0
    %2589 = vmatpush1.msra.mxu0 0.0
    %2590 = vmatprep.subr.mxu0 0.0
    %2591 = vmatpush1.msra.mxu0 0.0
    %2592 = vmatprep.subr.mxu0 0.0
    %2593 = vmatpush1.msra.mxu0 0.0
    %2594 = vmatprep.subr.mxu0 0.0
    %2595 = vmatpush1.msra.mxu0 0.0
    %2596 = vmatprep.subr.mxu0 0.0
    %2597 = vmatpush1.msra.mxu0 0.0
    %2598 = vmatprep.subr.mxu0 0.0
    %2599 = vmatpush1.msra.mxu0 0.0
    %2600 = vmatprep.mubr.f32.mxu0 0.0
    %2601 = vmatmul.mubr.f32.gmra.mrb[0].mxu0 %v2531
    %v2602 = vpop.f32.mrb[0].mxu0
    %v2603 = vadd.f32 0.0, %v2602
    %v2604 = vpop.f32.mrb[0].mxu0
    %2605 = vmatprep.mubr.f32.mxu0 0.0
    %2606 = vmatmul.mubr.f32.gmra.mrb[0].mxu0 %v2534
    %v2607 = vpop.f32.mrb[0].mxu0
    %v2608 = vadd.f32 0.0, %v2607
    %v2609 = vpop.f32.mrb[0].mxu0
    %2610 = vdwg.mxu0
    %v2612 = vsel %vm756, %v2520, 0
    %v2615 = vsel %vm756, %v2521, 0
    %2617 = vmatprep.subr.mxu0 0.0
    %2618 = vmatpush1.msra.mxu0 %v2522
    %2619 = vmatprep.subr.mxu0 0.0
    %2620 = vmatpush1.msra.mxu0 %v2523
    %2621 = vmatprep.subr.mxu0 0.0
    %2622 = vmatpush1.msra.mxu0 %v2524
    %2623 = vmatprep.subr.mxu0 0.0
    %2624 = vmatpush1.msra.mxu0 %v2525
    %2625 = vmatprep.subr.mxu0 0.0
    %2626 = vmatpush1.msra.mxu0 %v2526
    %2627 = vmatprep.subr.mxu0 0.0
    %2628 = vmatpush1.msra.mxu0 %v2527
    %2629 = vmatprep.subr.mxu0 0.0
    %2630 = vmatpush1.msra.mxu0 %v2528
    %2631 = vmatprep.subr.mxu0 0.0
    %2632 = vmatpush1.msra.mxu0 %v2529
    %2633 = vmatprep.subr.mxu0 0.0
    %2634 = vmatpush1.msra.mxu0 0.0
    %2635 = vmatprep.subr.mxu0 0.0
    %2636 = vmatpush1.msra.mxu0 0.0
    %2637 = vmatprep.subr.mxu0 0.0
    %2638 = vmatpush1.msra.mxu0 0.0
    %2639 = vmatprep.subr.mxu0 0.0
    %2640 = vmatpush1.msra.mxu0 0.0
    %2641 = vmatprep.subr.mxu0 0.0
    %2642 = vmatpush1.msra.mxu0 0.0
    %2643 = vmatprep.subr.mxu0 0.0
    %2644 = vmatpush1.msra.mxu0 0.0
    %2645 = vmatprep.subr.mxu0 0.0
    %2646 = vmatpush1.msra.mxu0 0.0
    %2647 = vmatprep.subr.mxu0 0.0
    %2648 = vmatpush1.msra.mxu0 0.0
    %2649 = vmatprep.subr.mxu0 0.0
    %2650 = vmatpush1.msra.mxu0 0.0
    %2651 = vmatprep.subr.mxu0 0.0
    %2652 = vmatpush1.msra.mxu0 0.0
    %2653 = vmatprep.subr.mxu0 0.0
    %2654 = vmatpush1.msra.mxu0 0.0
    %2655 = vmatprep.subr.mxu0 0.0
    %2656 = vmatpush1.msra.mxu0 0.0
    %2657 = vmatprep.subr.mxu0 0.0
    %2658 = vmatpush1.msra.mxu0 0.0
    %2659 = vmatprep.subr.mxu0 0.0
    %2660 = vmatpush1.msra.mxu0 0.0
    %2661 = vmatprep.subr.mxu0 0.0
    %2662 = vmatpush1.msra.mxu0 0.0
    %2663 = vmatprep.subr.mxu0 0.0
    %2664 = vmatpush1.msra.mxu0 0.0
    %2665 = vmatprep.subr.mxu0 0.0
    %2666 = vmatpush1.msra.mxu0 0.0
    %2667 = vmatprep.subr.mxu0 0.0
    %2668 = vmatpush1.msra.mxu0 0.0
    %2669 = vmatprep.subr.mxu0 0.0
    %2670 = vmatpush1.msra.mxu0 0.0
    %2671 = vmatprep.subr.mxu0 0.0
    %2672 = vmatpush1.msra.mxu0 0.0
    %2673 = vmatprep.subr.mxu0 0.0
    %2674 = vmatpush1.msra.mxu0 0.0
    %2675 = vmatprep.subr.mxu0 0.0
    %2676 = vmatpush1.msra.mxu0 0.0
    %2677 = vmatprep.subr.mxu0 0.0
    %2678 = vmatpush1.msra.mxu0 0.0
    %2679 = vmatprep.subr.mxu0 0.0
    %2680 = vmatpush1.msra.mxu0 0.0
    %2681 = vmatprep.mubr.f32.mxu0 0.0
    %2682 = vmatmul.mubr.f32.gmra.mrb[0].mxu0 %v2612
    %v2683 = vpop.f32.mrb[0].mxu0
    %v2684 = vadd.f32 0.0, %v2683
    %v2685 = vpop.f32.mrb[0].mxu0
    %2686 = vmatprep.mubr.f32.mxu0 0.0
    %2687 = vmatmul.mubr.f32.gmra.mrb[0].mxu0 %v2615
    %v2688 = vpop.f32.mrb[0].mxu0
    %v2689 = vadd.f32 0.0, %v2688
    %v2690 = vpop.f32.mrb[0].mxu0
    %2691 = vdwg.mxu0
    %vm2692 = vcmp.gt.f32.partialorder %v2684, 0.5
    %vm2693 = vcmp.gt.f32.partialorder %v2689, 0.5
    %v2694 = vsel %vm2692, 0.0, %v2603
    %v2695 = vsel %vm2693, 0.0, %v2608
    %v2696 = vld [vmem:[%s9] sm:$0xff]
    %v2697 = vld [vmem:[%s9 + $0x8] sm:$0xff]
    %v2698 = vld [vmem:[%s9 + $0x10] sm:$0xff]
    %v2699 = vld [vmem:[%s9 + $0x18] sm:$0xff]
    %v2700 = vld [vmem:[%s9 + $0x20] sm:$0xff]
    %v2701 = vld [vmem:[%s9 + $0x28] sm:$0xff]
    %v2702 = vld [vmem:[%s9 + $0x30] sm:$0xff]
    %v2703 = vld [vmem:[%s9 + $0x38] sm:$0xff]
    %v2705 = vsel %vm756, %v2694, 0
    %v2708 = vsel %vm756, %v2695, 0
    %2710 = vmatprep.subr.mxu0 0.0
    %2711 = vmatpush1.msra.mxu0 %v2696
    %2712 = vmatprep.subr.mxu0 0.0
    %2713 = vmatpush1.msra.mxu0 %v2697
    %2714 = vmatprep.subr.mxu0 0.0
    %2715 = vmatpush1.msra.mxu0 %v2698
    %2716 = vmatprep.subr.mxu0 0.0
    %2717 = vmatpush1.msra.mxu0 %v2699
    %2718 = vmatprep.subr.mxu0 0.0
    %2719 = vmatpush1.msra.mxu0 %v2700
    %2720 = vmatprep.subr.mxu0 0.0
    %2721 = vmatpush1.msra.mxu0 %v2701
    %2722 = vmatprep.subr.mxu0 0.0
    %2723 = vmatpush1.msra.mxu0 %v2702
    %2724 = vmatprep.subr.mxu0 0.0
    %2725 = vmatpush1.msra.mxu0 %v2703
    %2726 = vmatprep.subr.mxu0 0.0
    %2727 = vmatpush1.msra.mxu0 0.0
    %2728 = vmatprep.subr.mxu0 0.0
    %2729 = vmatpush1.msra.mxu0 0.0
    %2730 = vmatprep.subr.mxu0 0.0
    %2731 = vmatpush1.msra.mxu0 0.0
    %2732 = vmatprep.subr.mxu0 0.0
    %2733 = vmatpush1.msra.mxu0 0.0
    %2734 = vmatprep.subr.mxu0 0.0
    %2735 = vmatpush1.msra.mxu0 0.0
    %2736 = vmatprep.subr.mxu0 0.0
    %2737 = vmatpush1.msra.mxu0 0.0
    %2738 = vmatprep.subr.mxu0 0.0
    %2739 = vmatpush1.msra.mxu0 0.0
    %2740 = vmatprep.subr.mxu0 0.0
    %2741 = vmatpush1.msra.mxu0 0.0
    %2742 = vmatprep.subr.mxu0 0.0
    %2743 = vmatpush1.msra.mxu0 0.0
    %2744 = vmatprep.subr.mxu0 0.0
    %2745 = vmatpush1.msra.mxu0 0.0
    %2746 = vmatprep.subr.mxu0 0.0
    %2747 = vmatpush1.msra.mxu0 0.0
    %2748 = vmatprep.subr.mxu0 0.0
    %2749 = vmatpush1.msra.mxu0 0.0
    %2750 = vmatprep.subr.mxu0 0.0
    %2751 = vmatpush1.msra.mxu0 0.0
    %2752 = vmatprep.subr.mxu0 0.0
    %2753 = vmatpush1.msra.mxu0 0.0
    %2754 = vmatprep.subr.mxu0 0.0
    %2755 = vmatpush1.msra.mxu0 0.0
    %2756 = vmatprep.subr.mxu0 0.0
    %2757 = vmatpush1.msra.mxu0 0.0
    %2758 = vmatprep.subr.mxu0 0.0
    %2759 = vmatpush1.msra.mxu0 0.0
    %2760 = vmatprep.subr.mxu0 0.0
    %2761 = vmatpush1.msra.mxu0 0.0
    %2762 = vmatprep.subr.mxu0 0.0
    %2763 = vmatpush1.msra.mxu0 0.0
    %2764 = vmatprep.subr.mxu0 0.0
    %2765 = vmatpush1.msra.mxu0 0.0
    %2766 = vmatprep.subr.mxu0 0.0
    %2767 = vmatpush1.msra.mxu0 0.0
    %2768 = vmatprep.subr.mxu0 0.0
    %2769 = vmatpush1.msra.mxu0 0.0
    %2770 = vmatprep.subr.mxu0 0.0
    %2771 = vmatpush1.msra.mxu0 0.0
    %2772 = vmatprep.subr.mxu0 0.0
    %2773 = vmatpush1.msra.mxu0 0.0
    %2774 = vmatprep.mubr.f32.mxu0 0.0
    %2775 = vmatmul.mubr.f32.gmra.mrb[0].mxu0 %v2705
    %v2776 = vpop.f32.mrb[0].mxu0
    %v2777 = vadd.f32 0.0, %v2776
    %v2778 = vpop.f32.mrb[0].mxu0
    %2779 = vmatprep.mubr.f32.mxu0 0.0
    %2780 = vmatmul.mubr.f32.gmra.mrb[0].mxu0 %v2708
    %v2781 = vpop.f32.mrb[0].mxu0
    %v2782 = vadd.f32 0.0, %v2781
    %v2783 = vpop.f32.mrb[0].mxu0
    %2784 = vdwg.mxu0
    %s2785 = scalar_lea.vmem [#allocation7], 16
    %2786 = vst.msk [vmem:[%s2785] sm:$0xff] %vm1217, %v2777
    %2788 = vrot.lane.b32.xlu0 %v2782, 120
    %v2789 = vpop.permute.xlu0 %2788
    %s2791 = scalar_lea.vmem [#allocation7], 48
    %2792 = vst.msk [vmem:[%s2791] sm:$0xff] %vm1217, %v2789
    %s2793 = scalar_lea.vmem %s3, 96
    %v2794 = vld [vmem:[%s2793] sm:$0xff]
    %v2795 = vld [vmem:[%s2793 + $0x8] sm:$0xff]
    %v2796 = vld [vmem:[%s2793 + $0x10] sm:$0xff]
    %v2797 = vld [vmem:[%s2793 + $0x18] sm:$0xff]
    %s2798 = scalar_lea.vmem %s4, 3
    %v2799 = vld [vmem:[%s2798] sm:$0x1]
    %v2801 = vlaneseq
    %v2802 = vshrl.u32 %v2801, 7
    %v2803 = vsub.s32 0, %v2802
    %v2804 = vrot.slane %v2799, %v2803
    %2806 = vmatprep.subr.mxu0 0.0
    %2807 = vmatpush1.msra.mxu0 %v2794
    %2808 = vmatprep.subr.mxu0 0.0
    %2809 = vmatpush1.msra.mxu0 %v2795
    %2810 = vmatprep.subr.mxu0 0.0
    %2811 = vmatpush1.msra.mxu0 %v2796
    %2812 = vmatprep.subr.mxu0 0.0
    %2813 = vmatpush1.msra.mxu0 %v2797
    %2814 = vmatprep.subr.mxu0 0.0
    %2815 = vmatpush1.msra.mxu0 0.0
    %2816 = vmatprep.subr.mxu0 0.0
    %2817 = vmatpush1.msra.mxu0 0.0
    %2818 = vmatprep.subr.mxu0 0.0
    %2819 = vmatpush1.msra.mxu0 0.0
    %2820 = vmatprep.subr.mxu0 0.0
    %2821 = vmatpush1.msra.mxu0 0.0
    %2822 = vmatprep.subr.mxu0 0.0
    %2823 = vmatpush1.msra.mxu0 0.0
    %2824 = vmatprep.subr.mxu0 0.0
    %2825 = vmatpush1.msra.mxu0 0.0
    %2826 = vmatprep.subr.mxu0 0.0
    %2827 = vmatpush1.msra.mxu0 0.0
    %2828 = vmatprep.subr.mxu0 0.0
    %2829 = vmatpush1.msra.mxu0 0.0
    %2830 = vmatprep.subr.mxu0 0.0
    %2831 = vmatpush1.msra.mxu0 0.0
    %2832 = vmatprep.subr.mxu0 0.0
    %2833 = vmatpush1.msra.mxu0 0.0
    %2834 = vmatprep.subr.mxu0 0.0
    %2835 = vmatpush1.msra.mxu0 0.0
    %2836 = vmatprep.subr.mxu0 0.0
    %2837 = vmatpush1.msra.mxu0 0.0
    %2838 = vmatprep.subr.mxu0 0.0
    %2839 = vmatpush1.msra.mxu0 0.0
    %2840 = vmatprep.subr.mxu0 0.0
    %2841 = vmatpush1.msra.mxu0 0.0
    %2842 = vmatprep.subr.mxu0 0.0
    %2843 = vmatpush1.msra.mxu0 0.0
    %2844 = vmatprep.subr.mxu0 0.0
    %2845 = vmatpush1.msra.mxu0 0.0
    %2846 = vmatprep.subr.mxu0 0.0
    %2847 = vmatpush1.msra.mxu0 0.0
    %2848 = vmatprep.subr.mxu0 0.0
    %2849 = vmatpush1.msra.mxu0 0.0
    %2850 = vmatprep.subr.mxu0 0.0
    %2851 = vmatpush1.msra.mxu0 0.0
    %2852 = vmatprep.subr.mxu0 0.0
    %2853 = vmatpush1.msra.mxu0 0.0
    %2854 = vmatprep.subr.mxu0 0.0
    %2855 = vmatpush1.msra.mxu0 0.0
    %2856 = vmatprep.subr.mxu0 0.0
    %2857 = vmatpush1.msra.mxu0 0.0
    %2858 = vmatprep.subr.mxu0 0.0
    %2859 = vmatpush1.msra.mxu0 0.0
    %2860 = vmatprep.subr.mxu0 0.0
    %2861 = vmatpush1.msra.mxu0 0.0
    %2862 = vmatprep.subr.mxu0 0.0
    %2863 = vmatpush1.msra.mxu0 0.0
    %2864 = vmatprep.subr.mxu0 0.0
    %2865 = vmatpush1.msra.mxu0 0.0
    %2866 = vmatprep.subr.mxu0 0.0
    %2867 = vmatpush1.msra.mxu0 0.0
    %2868 = vmatprep.subr.mxu0 0.0
    %2869 = vmatpush1.msra.mxu0 0.0
    %2870 = vmatprep.mubr.f32.mxu0 0.0
    %2871 = vmatmul.mubr.f32.gmra.mrb[0].mxu0 %v1021
    %v2872 = vpop.f32.mrb[0].mxu0
    %v2873 = vadd.f32 %v2804, %v2872
    %v2874 = vpop.f32.mrb[0].mxu0
    %2875 = vmatprep.mubr.f32.mxu0 0.0
    %2876 = vmatmul.mubr.f32.gmra.mrb[0].mxu0 %v1024
    %v2877 = vpop.f32.mrb[0].mxu0
    %v2878 = vadd.f32 %v2804, %v2877
    %v2879 = vpop.f32.mrb[0].mxu0
    %2880 = vdwg.mxu0
    %s2881 = scalar_lea.vmem %s5, 96
    %v2882 = vld [vmem:[%s2881] sm:$0xff]
    %v2883 = vld [vmem:[%s2881 + $0x8] sm:$0xff]
    %v2884 = vld [vmem:[%s2881 + $0x10] sm:$0xff]
    %v2885 = vld [vmem:[%s2881 + $0x18] sm:$0xff]
    %s2886 = scalar_lea.vmem %s6, 3
    %v2887 = vld [vmem:[%s2886] sm:$0x1]
    %v2889 = vlaneseq
    %v2890 = vshrl.u32 %v2889, 7
    %v2891 = vsub.s32 0, %v2890
    %v2892 = vrot.slane %v2887, %v2891
    %2894 = vmatprep.subr.mxu0 0.0
    %2895 = vmatpush1.msra.mxu0 %v2882
    %2896 = vmatprep.subr.mxu0 0.0
    %2897 = vmatpush1.msra.mxu0 %v2883
    %2898 = vmatprep.subr.mxu0 0.0
    %2899 = vmatpush1.msra.mxu0 %v2884
    %2900 = vmatprep.subr.mxu0 0.0
    %2901 = vmatpush1.msra.mxu0 %v2885
    %2902 = vmatprep.subr.mxu0 0.0
    %2903 = vmatpush1.msra.mxu0 0.0
    %2904 = vmatprep.subr.mxu0 0.0
    %2905 = vmatpush1.msra.mxu0 0.0
    %2906 = vmatprep.subr.mxu0 0.0
    %2907 = vmatpush1.msra.mxu0 0.0
    %2908 = vmatprep.subr.mxu0 0.0
    %2909 = vmatpush1.msra.mxu0 0.0
    %2910 = vmatprep.subr.mxu0 0.0
    %2911 = vmatpush1.msra.mxu0 0.0
    %2912 = vmatprep.subr.mxu0 0.0
    %2913 = vmatpush1.msra.mxu0 0.0
    %2914 = vmatprep.subr.mxu0 0.0
    %2915 = vmatpush1.msra.mxu0 0.0
    %2916 = vmatprep.subr.mxu0 0.0
    %2917 = vmatpush1.msra.mxu0 0.0
    %2918 = vmatprep.subr.mxu0 0.0
    %2919 = vmatpush1.msra.mxu0 0.0
    %2920 = vmatprep.subr.mxu0 0.0
    %2921 = vmatpush1.msra.mxu0 0.0
    %2922 = vmatprep.subr.mxu0 0.0
    %2923 = vmatpush1.msra.mxu0 0.0
    %2924 = vmatprep.subr.mxu0 0.0
    %2925 = vmatpush1.msra.mxu0 0.0
    %2926 = vmatprep.subr.mxu0 0.0
    %2927 = vmatpush1.msra.mxu0 0.0
    %2928 = vmatprep.subr.mxu0 0.0
    %2929 = vmatpush1.msra.mxu0 0.0
    %2930 = vmatprep.subr.mxu0 0.0
    %2931 = vmatpush1.msra.mxu0 0.0
    %2932 = vmatprep.subr.mxu0 0.0
    %2933 = vmatpush1.msra.mxu0 0.0
    %2934 = vmatprep.subr.mxu0 0.0
    %2935 = vmatpush1.msra.mxu0 0.0
    %2936 = vmatprep.subr.mxu0 0.0
    %2937 = vmatpush1.msra.mxu0 0.0
    %2938 = vmatprep.subr.mxu0 0.0
    %2939 = vmatpush1.msra.mxu0 0.0
    %2940 = vmatprep.subr.mxu0 0.0
    %2941 = vmatpush1.msra.mxu0 0.0
    %2942 = vmatprep.subr.mxu0 0.0
    %2943 = vmatpush1.msra.mxu0 0.0
    %2944 = vmatprep.subr.mxu0 0.0
    %2945 = vmatpush1.msra.mxu0 0.0
    %2946 = vmatprep.subr.mxu0 0.0
    %2947 = vmatpush1.msra.mxu0 0.0
    %2948 = vmatprep.subr.mxu0 0.0
    %2949 = vmatpush1.msra.mxu0 0.0
    %2950 = vmatprep.subr.mxu0 0.0
    %2951 = vmatpush1.msra.mxu0 0.0
    %2952 = vmatprep.subr.mxu0 0.0
    %2953 = vmatpush1.msra.mxu0 0.0
    %2954 = vmatprep.subr.mxu0 0.0
    %2955 = vmatpush1.msra.mxu0 0.0
    %2956 = vmatprep.subr.mxu0 0.0
    %2957 = vmatpush1.msra.mxu0 0.0
    %2958 = vmatprep.mubr.f32.mxu0 0.0
    %2959 = vmatmul.mubr.f32.gmra.mrb[0].mxu0 %v422
    %v2960 = vpop.f32.mrb[0].mxu0
    %v2961 = vadd.f32 %v2892, %v2960
    %v2962 = vpop.f32.mrb[0].mxu0
    %2963 = vmatprep.mubr.f32.mxu0 0.0
    %2964 = vmatmul.mubr.f32.gmra.mrb[0].mxu0 %v425
    %v2965 = vpop.f32.mrb[0].mxu0
    %v2966 = vadd.f32 %v2892, %v2965
    %v2967 = vpop.f32.mrb[0].mxu0
    %2968 = vmatprep.mubr.f32.mxu0 0.0
    %2969 = vmatmul.mubr.f32.gmra.mrb[0].mxu0 %v428
    %v2970 = vpop.f32.mrb[0].mxu0
    %v2971 = vadd.f32 %v2892, %v2970
    %v2972 = vpop.f32.mrb[0].mxu0
    %2973 = vmatprep.mubr.f32.mxu0 0.0
    %2974 = vmatmul.mubr.f32.gmra.mrb[0].mxu0 %v431
    %v2975 = vpop.f32.mrb[0].mxu0
    %v2976 = vadd.f32 %v2892, %v2975
    %v2977 = vpop.f32.mrb[0].mxu0
    %2978 = vmatprep.mubr.f32.mxu0 0.0
    %2979 = vmatmul.mubr.f32.gmra.mrb[0].mxu0 %v434
    %v2980 = vpop.f32.mrb[0].mxu0
    %v2981 = vadd.f32 %v2892, %v2980
    %v2982 = vpop.f32.mrb[0].mxu0
    %2983 = vmatprep.mubr.f32.mxu0 0.0
    %2984 = vmatmul.mubr.f32.gmra.mrb[0].mxu0 %v437
    %v2985 = vpop.f32.mrb[0].mxu0
    %v2986 = vadd.f32 %v2892, %v2985
    %v2987 = vpop.f32.mrb[0].mxu0
    %2988 = vmatprep.mubr.f32.mxu0 0.0
    %2989 = vmatmul.mubr.f32.gmra.mrb[0].mxu0 %v440
    %v2990 = vpop.f32.mrb[0].mxu0
    %v2991 = vadd.f32 %v2892, %v2990
    %v2992 = vpop.f32.mrb[0].mxu0
    %2993 = vmatprep.mubr.f32.mxu0 0.0
    %2994 = vmatmul.mubr.f32.gmra.mrb[0].mxu0 %v443
    %v2995 = vpop.f32.mrb[0].mxu0
    %v2996 = vadd.f32 %v2892, %v2995
    %v2997 = vpop.f32.mrb[0].mxu0
    %2998 = vdwg.mxu0
    %v3000 = vsel %vm1217, %v2873, 0
    %v3003 = vsel %vm1217, %v2878, 0
    %v3006 = vsel %vm1217, %v2961, 0
    %v3009 = vsel %vm1217, %v2966, 0
    %v3012 = vsel %vm1217, %v2971, 0
    %v3015 = vsel %vm1217, %v2976, 0
    %v3018 = vsel %vm1217, %v2981, 0
    %v3021 = vsel %vm1217, %v2986, 0
    %v3024 = vsel %vm1217, %v2991, 0
    %v3027 = vsel %vm1217, %v2996, 0
    %3029 = vmatprep.subr.mxu0 0.0
    %3030 = vmatpush1.xpose.msra.mxu0 %v3006
    %3031 = vmatprep.subr.mxu0 0.0
    %3032 = vmatpush1.xpose.msra.mxu0 %v3009
    %3033 = vmatprep.subr.mxu0 0.0
    %3034 = vmatpush1.xpose.msra.mxu0 %v3012
    %3035 = vmatprep.subr.mxu0 0.0
    %3036 = vmatpush1.xpose.msra.mxu0 %v3015
    %3037 = vmatprep.subr.mxu0 0.0
    %3038 = vmatpush1.xpose.msra.mxu0 %v3018
    %3039 = vmatprep.subr.mxu0 0.0
    %3040 = vmatpush1.xpose.msra.mxu0 %v3021
    %3041 = vmatprep.subr.mxu0 0.0
    %3042 = vmatpush1.xpose.msra.mxu0 %v3024
    %3043 = vmatprep.subr.mxu0 0.0
    %3044 = vmatpush1.xpose.msra.mxu0 %v3027
    %3045 = vmatprep.subr.mxu0 0.0
    %3046 = vmatpush1.xpose.msra.mxu0 0.0
    %3047 = vmatprep.subr.mxu0 0.0
    %3048 = vmatpush1.xpose.msra.mxu0 0.0
    %3049 = vmatprep.subr.mxu0 0.0
    %3050 = vmatpush1.xpose.msra.mxu0 0.0
    %3051 = vmatprep.subr.mxu0 0.0
    %3052 = vmatpush1.xpose.msra.mxu0 0.0
    %3053 = vmatprep.subr.mxu0 0.0
    %3054 = vmatpush1.xpose.msra.mxu0 0.0
    %3055 = vmatprep.subr.mxu0 0.0
    %3056 = vmatpush1.xpose.msra.mxu0 0.0
    %3057 = vmatprep.subr.mxu0 0.0
    %3058 = vmatpush1.xpose.msra.mxu0 0.0
    %3059 = vmatprep.subr.mxu0 0.0
    %3060 = vmatpush1.xpose.msra.mxu0 0.0
    %3061 = vmatprep.subr.mxu0 0.0
    %3062 = vmatpush1.xpose.msra.mxu0 0.0
    %3063 = vmatprep.subr.mxu0 0.0
    %3064 = vmatpush1.xpose.msra.mxu0 0.0
    %3065 = vmatprep.subr.mxu0 0.0
    %3066 = vmatpush1.xpose.msra.mxu0 0.0
    %3067 = vmatprep.subr.mxu0 0.0
    %3068 = vmatpush1.xpose.msra.mxu0 0.0
    %3069 = vmatprep.subr.mxu0 0.0
    %3070 = vmatpush1.xpose.msra.mxu0 0.0
    %3071 = vmatprep.subr.mxu0 0.0
    %3072 = vmatpush1.xpose.msra.mxu0 0.0
    %3073 = vmatprep.subr.mxu0 0.0
    %3074 = vmatpush1.xpose.msra.mxu0 0.0
    %3075 = vmatprep.subr.mxu0 0.0
    %3076 = vmatpush1.xpose.msra.mxu0 0.0
    %3077 = vmatprep.subr.mxu0 0.0
    %3078 = vmatpush1.xpose.msra.mxu0 0.0
    %3079 = vmatprep.subr.mxu0 0.0
    %3080 = vmatpush1.xpose.msra.mxu0 0.0
    %3081 = vmatprep.subr.mxu0 0.0
    %3082 = vmatpush1.xpose.msra.mxu0 0.0
    %3083 = vmatprep.subr.mxu0 0.0
    %3084 = vmatpush1.xpose.msra.mxu0 0.0
    %3085 = vmatprep.subr.mxu0 0.0
    %3086 = vmatpush1.xpose.msra.mxu0 0.0
    %3087 = vmatprep.subr.mxu0 0.0
    %3088 = vmatpush1.xpose.msra.mxu0 0.0
    %3089 = vmatprep.subr.mxu0 0.0
    %3090 = vmatpush1.xpose.msra.mxu0 0.0
    %3091 = vmatprep.subr.mxu0 0.0
    %3092 = vmatpush1.xpose.msra.mxu0 0.0
    %3093 = vmatprep.mubr.f32.mxu0 0.0
    %3094 = vmatmul.mubr.f32.gmra.mrb[0].mxu0 %v3000
    %v3095 = vpop.f32.mrb[0].mxu0
    %v3096 = vadd.f32 0.0, %v3095
    %v3097 = vpop.f32.mrb[0].mxu0
    %3098 = vmatprep.mubr.f32.mxu0 0.0
    %3099 = vmatmul.mubr.f32.gmra.mrb[0].mxu0 %v3003
    %v3100 = vpop.f32.mrb[0].mxu0
    %v3101 = vadd.f32 0.0, %v3100
    %v3102 = vpop.f32.mrb[0].mxu0
    %3103 = vdwg.mxu0
    %v3104 = vmul.f32 %v3096, 0.35355338
    %v3105 = vmul.f32 %v3101, 0.35355338
    %vm3106 = vcmp.eq.f32.partialorder %v3104, 0.0
    %vm3107 = vcmp.eq.f32.partialorder %v3105, 0.0
    %vm3108 = vcmp.eq.f32.partialorder %v3104, -1e-09
    %vm3109 = vcmp.eq.f32.partialorder %v3105, -1e-09
    %vm3110 = vmor %vm3106, %vm3108
    %vm3111 = vmor %vm3107, %vm3109
    %v3112 = vsel %vm3110, 1, 0
    %v3113 = vsel %vm3111, 1, 0
    %v3114 = vcvt.s32.f32 %v3112
    %v3115 = vcvt.s32.f32 %v3113
    %v3116 = vld [vmem:[%s8] sm:$0xff]
    %v3117 = vld [vmem:[%s8 + $0x8] sm:$0xff]
    %v3118 = vld [vmem:[%s8 + $0x10] sm:$0xff]
    %v3119 = vld [vmem:[%s8 + $0x18] sm:$0xff]
    %v3120 = vld [vmem:[%s8 + $0x20] sm:$0xff]
    %v3121 = vld [vmem:[%s8 + $0x28] sm:$0xff]
    %v3122 = vld [vmem:[%s8 + $0x30] sm:$0xff]
    %v3123 = vld [vmem:[%s8 + $0x38] sm:$0xff]
    %v3125 = vsel %vm756, %v3104, 0
    %v3128 = vsel %vm756, %v3105, 0
    %3130 = vmatprep.subr.mxu0 0.0
    %3131 = vmatpush1.msra.mxu0 %v3116
    %3132 = vmatprep.subr.mxu0 0.0
    %3133 = vmatpush1.msra.mxu0 %v3117
    %3134 = vmatprep.subr.mxu0 0.0
    %3135 = vmatpush1.msra.mxu0 %v3118
    %3136 = vmatprep.subr.mxu0 0.0
    %3137 = vmatpush1.msra.mxu0 %v3119
    %3138 = vmatprep.subr.mxu0 0.0
    %3139 = vmatpush1.msra.mxu0 %v3120
    %3140 = vmatprep.subr.mxu0 0.0
    %3141 = vmatpush1.msra.mxu0 %v3121
    %3142 = vmatprep.subr.mxu0 0.0
    %3143 = vmatpush1.msra.mxu0 %v3122
    %3144 = vmatprep.subr.mxu0 0.0
    %3145 = vmatpush1.msra.mxu0 %v3123
    %3146 = vmatprep.subr.mxu0 0.0
    %3147 = vmatpush1.msra.mxu0 0.0
    %3148 = vmatprep.subr.mxu0 0.0
    %3149 = vmatpush1.msra.mxu0 0.0
    %3150 = vmatprep.subr.mxu0 0.0
    %3151 = vmatpush1.msra.mxu0 0.0
    %3152 = vmatprep.subr.mxu0 0.0
    %3153 = vmatpush1.msra.mxu0 0.0
    %3154 = vmatprep.subr.mxu0 0.0
    %3155 = vmatpush1.msra.mxu0 0.0
    %3156 = vmatprep.subr.mxu0 0.0
    %3157 = vmatpush1.msra.mxu0 0.0
    %3158 = vmatprep.subr.mxu0 0.0
    %3159 = vmatpush1.msra.mxu0 0.0
    %3160 = vmatprep.subr.mxu0 0.0
    %3161 = vmatpush1.msra.mxu0 0.0
    %3162 = vmatprep.subr.mxu0 0.0
    %3163 = vmatpush1.msra.mxu0 0.0
    %3164 = vmatprep.subr.mxu0 0.0
    %3165 = vmatpush1.msra.mxu0 0.0
    %3166 = vmatprep.subr.mxu0 0.0
    %3167 = vmatpush1.msra.mxu0 0.0
    %3168 = vmatprep.subr.mxu0 0.0
    %3169 = vmatpush1.msra.mxu0 0.0
    %3170 = vmatprep.subr.mxu0 0.0
    %3171 = vmatpush1.msra.mxu0 0.0
    %3172 = vmatprep.subr.mxu0 0.0
    %3173 = vmatpush1.msra.mxu0 0.0
    %3174 = vmatprep.subr.mxu0 0.0
    %3175 = vmatpush1.msra.mxu0 0.0
    %3176 = vmatprep.subr.mxu0 0.0
    %3177 = vmatpush1.msra.mxu0 0.0
    %3178 = vmatprep.subr.mxu0 0.0
    %3179 = vmatpush1.msra.mxu0 0.0
    %3180 = vmatprep.subr.mxu0 0.0
    %3181 = vmatpush1.msra.mxu0 0.0
    %3182 = vmatprep.subr.mxu0 0.0
    %3183 = vmatpush1.msra.mxu0 0.0
    %3184 = vmatprep.subr.mxu0 0.0
    %3185 = vmatpush1.msra.mxu0 0.0
    %3186 = vmatprep.subr.mxu0 0.0
    %3187 = vmatpush1.msra.mxu0 0.0
    %3188 = vmatprep.subr.mxu0 0.0
    %3189 = vmatpush1.msra.mxu0 0.0
    %3190 = vmatprep.subr.mxu0 0.0
    %3191 = vmatpush1.msra.mxu0 0.0
    %3192 = vmatprep.subr.mxu0 0.0
    %3193 = vmatpush1.msra.mxu0 0.0
    %3194 = vmatprep.mubr.f32.mxu0 0.0
    %3195 = vmatmul.mubr.f32.gmra.mrb[0].mxu0 %v3125
    %v3196 = vpop.f32.mrb[0].mxu0
    %v3197 = vadd.f32 0.0, %v3196
    %v3198 = vpop.f32.mrb[0].mxu0
    %3199 = vmatprep.mubr.f32.mxu0 0.0
    %3200 = vmatmul.mubr.f32.gmra.mrb[0].mxu0 %v3128
    %v3201 = vpop.f32.mrb[0].mxu0
    %v3202 = vadd.f32 0.0, %v3201
    %v3203 = vpop.f32.mrb[0].mxu0
    %3204 = vdwg.mxu0
    %v3206 = vsel %vm756, %v3114, 0
    %v3209 = vsel %vm756, %v3115, 0
    %3211 = vmatprep.subr.mxu0 0.0
    %3212 = vmatpush1.msra.mxu0 %v3116
    %3213 = vmatprep.subr.mxu0 0.0
    %3214 = vmatpush1.msra.mxu0 %v3117
    %3215 = vmatprep.subr.mxu0 0.0
    %3216 = vmatpush1.msra.mxu0 %v3118
    %3217 = vmatprep.subr.mxu0 0.0
    %3218 = vmatpush1.msra.mxu0 %v3119
    %3219 = vmatprep.subr.mxu0 0.0
    %3220 = vmatpush1.msra.mxu0 %v3120
    %3221 = vmatprep.subr.mxu0 0.0
    %3222 = vmatpush1.msra.mxu0 %v3121
    %3223 = vmatprep.subr.mxu0 0.0
    %3224 = vmatpush1.msra.mxu0 %v3122
    %3225 = vmatprep.subr.mxu0 0.0
    %3226 = vmatpush1.msra.mxu0 %v3123
    %3227 = vmatprep.subr.mxu0 0.0
    %3228 = vmatpush1.msra.mxu0 0.0
    %3229 = vmatprep.subr.mxu0 0.0
    %3230 = vmatpush1.msra.mxu0 0.0
    %3231 = vmatprep.subr.mxu0 0.0
    %3232 = vmatpush1.msra.mxu0 0.0
    %3233 = vmatprep.subr.mxu0 0.0
    %3234 = vmatpush1.msra.mxu0 0.0
    %3235 = vmatprep.subr.mxu0 0.0
    %3236 = vmatpush1.msra.mxu0 0.0
    %3237 = vmatprep.subr.mxu0 0.0
    %3238 = vmatpush1.msra.mxu0 0.0
    %3239 = vmatprep.subr.mxu0 0.0
    %3240 = vmatpush1.msra.mxu0 0.0
    %3241 = vmatprep.subr.mxu0 0.0
    %3242 = vmatpush1.msra.mxu0 0.0
    %3243 = vmatprep.subr.mxu0 0.0
    %3244 = vmatpush1.msra.mxu0 0.0
    %3245 = vmatprep.subr.mxu0 0.0
    %3246 = vmatpush1.msra.mxu0 0.0
    %3247 = vmatprep.subr.mxu0 0.0
    %3248 = vmatpush1.msra.mxu0 0.0
    %3249 = vmatprep.subr.mxu0 0.0
    %3250 = vmatpush1.msra.mxu0 0.0
    %3251 = vmatprep.subr.mxu0 0.0
    %3252 = vmatpush1.msra.mxu0 0.0
    %3253 = vmatprep.subr.mxu0 0.0
    %3254 = vmatpush1.msra.mxu0 0.0
    %3255 = vmatprep.subr.mxu0 0.0
    %3256 = vmatpush1.msra.mxu0 0.0
    %3257 = vmatprep.subr.mxu0 0.0
    %3258 = vmatpush1.msra.mxu0 0.0
    %3259 = vmatprep.subr.mxu0 0.0
    %3260 = vmatpush1.msra.mxu0 0.0
    %3261 = vmatprep.subr.mxu0 0.0
    %3262 = vmatpush1.msra.mxu0 0.0
    %3263 = vmatprep.subr.mxu0 0.0
    %3264 = vmatpush1.msra.mxu0 0.0
    %3265 = vmatprep.subr.mxu0 0.0
    %3266 = vmatpush1.msra.mxu0 0.0
    %3267 = vmatprep.subr.mxu0 0.0
    %3268 = vmatpush1.msra.mxu0 0.0
    %3269 = vmatprep.subr.mxu0 0.0
    %3270 = vmatpush1.msra.mxu0 0.0
    %3271 = vmatprep.subr.mxu0 0.0
    %3272 = vmatpush1.msra.mxu0 0.0
    %3273 = vmatprep.subr.mxu0 0.0
    %3274 = vmatpush1.msra.mxu0 0.0
    %3275 = vmatprep.mubr.f32.mxu0 0.0
    %3276 = vmatmul.mubr.f32.gmra.mrb[0].mxu0 %v3206
    %v3277 = vpop.f32.mrb[0].mxu0
    %v3278 = vadd.f32 0.0, %v3277
    %v3279 = vpop.f32.mrb[0].mxu0
    %3280 = vmatprep.mubr.f32.mxu0 0.0
    %3281 = vmatmul.mubr.f32.gmra.mrb[0].mxu0 %v3209
    %v3282 = vpop.f32.mrb[0].mxu0
    %v3283 = vadd.f32 0.0, %v3282
    %v3284 = vpop.f32.mrb[0].mxu0
    %3285 = vdwg.mxu0
    %vm3286 = vcmp.gt.f32.partialorder %v3278, 0.5
    %vm3287 = vcmp.gt.f32.partialorder %v3283, 0.5
    %v3288 = vsel %vm3286, 0.0, %v3197
    %v3289 = vsel %vm3287, 0.0, %v3202
    %v3290 = vld [vmem:[%s9] sm:$0xff]
    %v3291 = vld [vmem:[%s9 + $0x8] sm:$0xff]
    %v3292 = vld [vmem:[%s9 + $0x10] sm:$0xff]
    %v3293 = vld [vmem:[%s9 + $0x18] sm:$0xff]
    %v3294 = vld [vmem:[%s9 + $0x20] sm:$0xff]
    %v3295 = vld [vmem:[%s9 + $0x28] sm:$0xff]
    %v3296 = vld [vmem:[%s9 + $0x30] sm:$0xff]
    %v3297 = vld [vmem:[%s9 + $0x38] sm:$0xff]
    %v3299 = vsel %vm756, %v3288, 0
    %v3302 = vsel %vm756, %v3289, 0
    %3304 = vmatprep.subr.mxu0 0.0
    %3305 = vmatpush1.msra.mxu0 %v3290
    %3306 = vmatprep.subr.mxu0 0.0
    %3307 = vmatpush1.msra.mxu0 %v3291
    %3308 = vmatprep.subr.mxu0 0.0
    %3309 = vmatpush1.msra.mxu0 %v3292
    %3310 = vmatprep.subr.mxu0 0.0
    %3311 = vmatpush1.msra.mxu0 %v3293
    %3312 = vmatprep.subr.mxu0 0.0
    %3313 = vmatpush1.msra.mxu0 %v3294
    %3314 = vmatprep.subr.mxu0 0.0
    %3315 = vmatpush1.msra.mxu0 %v3295
    %3316 = vmatprep.subr.mxu0 0.0
    %3317 = vmatpush1.msra.mxu0 %v3296
    %3318 = vmatprep.subr.mxu0 0.0
    %3319 = vmatpush1.msra.mxu0 %v3297
    %3320 = vmatprep.subr.mxu0 0.0
    %3321 = vmatpush1.msra.mxu0 0.0
    %3322 = vmatprep.subr.mxu0 0.0
    %3323 = vmatpush1.msra.mxu0 0.0
    %3324 = vmatprep.subr.mxu0 0.0
    %3325 = vmatpush1.msra.mxu0 0.0
    %3326 = vmatprep.subr.mxu0 0.0
    %3327 = vmatpush1.msra.mxu0 0.0
    %3328 = vmatprep.subr.mxu0 0.0
    %3329 = vmatpush1.msra.mxu0 0.0
    %3330 = vmatprep.subr.mxu0 0.0
    %3331 = vmatpush1.msra.mxu0 0.0
    %3332 = vmatprep.subr.mxu0 0.0
    %3333 = vmatpush1.msra.mxu0 0.0
    %3334 = vmatprep.subr.mxu0 0.0
    %3335 = vmatpush1.msra.mxu0 0.0
    %3336 = vmatprep.subr.mxu0 0.0
    %3337 = vmatpush1.msra.mxu0 0.0
    %3338 = vmatprep.subr.mxu0 0.0
    %3339 = vmatpush1.msra.mxu0 0.0
    %3340 = vmatprep.subr.mxu0 0.0
    %3341 = vmatpush1.msra.mxu0 0.0
    %3342 = vmatprep.subr.mxu0 0.0
    %3343 = vmatpush1.msra.mxu0 0.0
    %3344 = vmatprep.subr.mxu0 0.0
    %3345 = vmatpush1.msra.mxu0 0.0
    %3346 = vmatprep.subr.mxu0 0.0
    %3347 = vmatpush1.msra.mxu0 0.0
    %3348 = vmatprep.subr.mxu0 0.0
    %3349 = vmatpush1.msra.mxu0 0.0
    %3350 = vmatprep.subr.mxu0 0.0
    %3351 = vmatpush1.msra.mxu0 0.0
    %3352 = vmatprep.subr.mxu0 0.0
    %3353 = vmatpush1.msra.mxu0 0.0
    %3354 = vmatprep.subr.mxu0 0.0
    %3355 = vmatpush1.msra.mxu0 0.0
    %3356 = vmatprep.subr.mxu0 0.0
    %3357 = vmatpush1.msra.mxu0 0.0
    %3358 = vmatprep.subr.mxu0 0.0
    %3359 = vmatpush1.msra.mxu0 0.0
    %3360 = vmatprep.subr.mxu0 0.0
    %3361 = vmatpush1.msra.mxu0 0.0
    %3362 = vmatprep.subr.mxu0 0.0
    %3363 = vmatpush1.msra.mxu0 0.0
    %3364 = vmatprep.subr.mxu0 0.0
    %3365 = vmatpush1.msra.mxu0 0.0
    %3366 = vmatprep.subr.mxu0 0.0
    %3367 = vmatpush1.msra.mxu0 0.0
    %3368 = vmatprep.mubr.f32.mxu0 0.0
    %3369 = vmatmul.mubr.f32.gmra.mrb[0].mxu0 %v3299
    %v3370 = vpop.f32.mrb[0].mxu0
    %v3371 = vadd.f32 0.0, %v3370
    %v3372 = vpop.f32.mrb[0].mxu0
    %3373 = vmatprep.mubr.f32.mxu0 0.0
    %3374 = vmatmul.mubr.f32.gmra.mrb[0].mxu0 %v3302
    %v3375 = vpop.f32.mrb[0].mxu0
    %v3376 = vadd.f32 0.0, %v3375
    %v3377 = vpop.f32.mrb[0].mxu0
    %3378 = vdwg.mxu0
    %s3379 = scalar_lea.vmem [#allocation7], 24
    %3380 = vst.msk [vmem:[%s3379] sm:$0xff] %vm1217, %v3371
    %3382 = vrot.lane.b32.xlu0 %v3376, 120
    %v3383 = vpop.permute.xlu0 %3382
    %s3385 = scalar_lea.vmem [#allocation7], 56
    %3386 = vst.msk [vmem:[%s3385] sm:$0xff] %vm1217, %v3383
    // Predicated region
    $region62: #{forward.1} parent=1 // pred_check
      _
    $region63: #{forward.1} parent=1 // pred_check_branch
      %3388 = sbr.rel (0) target = $region65
    $region64: #{forward.1} parent=1 // pred_region
      %s3390 = ssub.s32 256, 256
      %3391 = vsyncadd [#allocation4], %s3390
      %s3392 = sshll.u32 [#allocation6], 4
      %s3393 = int_to_ptr.vmem [resolvable:$true] %s3392
      %3398 = dma.vmem_to_hbm [thread:$0]  %s3393, 256, %s14, [#allocation4], 128, 128, 8
    $region65: #{forward.1} parent=1 // pred_fallthru
      _
    // Predicated region
    $region66: #{forward.1} parent=1 // pred_check
      _
    $region67: #{forward.1} parent=1 // pred_check_branch
      %3400 = sbr.rel (0) target = $region69
    $region68: #{forward.1} parent=1 // pred_region
      %s3402 = ssub.s32 1024, 1024
      %3403 = vsyncadd [#allocation8], %s3402
      %s3404 = sshll.u32 [#allocation7], 4
      %s3405 = int_to_ptr.vmem [resolvable:$true] %s3404
      %3410 = dma.vmem_to_hbm [thread:$0]  %s3405, 1024, %s15, [#allocation8], 128, 128, 8
    $region69: #{forward.1} parent=1 // pred_fallthru
      _
    // Predicated region
    $region70: #{forward.1} parent=1 // pred_check
      _
    $region71: #{forward.1} parent=1 // pred_check_branch
      %3412 = sbr.rel (0) target = $region73
    $region72: #{forward.1} parent=1 // pred_region
      %3413 = dma.done [#allocation4], 256
    $region73: #{forward.1} parent=1 // pred_fallthru
      _
    // Predicated region
    $region74: #{forward.1} parent=1 // pred_check
      _
    $region75: #{forward.1} parent=1 // pred_check_branch
      %3415 = sbr.rel (0) target = $region77
    $region76: #{forward.1} parent=1 // pred_region
      %3416 = dma.done [#allocation8], 1024
    $region77: #{forward.1} parent=1 // pred_fallthru
      _
    %3417 = vsyncpa [#allocation4], 1
    %3418 = vsyncpa [#allocation8], 1
    %3419 = vsyncpa [#allocation5], 1

</llo_original>
